<compile_context>
chip_gen: v5e
topology: v5e:2x2
jax: 0.10.0
libtpu: 0.0.40
codegen_flags: <defaults>
</compile_context>

<pallas_src>
import math
import jax
import jax.numpy as jnp
from jax.experimental import pallas as pl
from jax.experimental.pallas import tpu as pltpu


def _layer_norm(x, gamma, beta, eps=1e-5):
    mu = jnp.mean(x, axis=-1, keepdims=True)
    var = jnp.mean((x - mu) ** 2, axis=-1, keepdims=True)
    return (x - mu) * jax.lax.rsqrt(var + eps) * gamma + beta


def _gelu_exact(x):
    # nn.GELU() default (erf-based, not tanh approximation)
    return 0.5 * x * (1.0 + jax.lax.erf(x * (1.0 / math.sqrt(2.0))))


def make_encoder_layer_kernel(num_heads):
    def kernel(src_ref, pos_ref,
               qk_w_ref, qk_b_ref, v_w_ref, v_b_ref,
               out_w_ref, out_b_ref,
               fc1_w_ref, fc1_b_ref, fc2_w_ref, fc2_b_ref,
               ln1_g_ref, ln1_b_ref, ln2_g_ref, ln2_b_ref,
               o_ref, attn_scratch):
        x = src_ref[0].astype(jnp.float32)            # (N, C)
        pos = pos_ref[0].astype(jnp.float32)          # (N, C)
        N, C = x.shape
        H = num_heads
        d = C // H
        scale = 1.0 / math.sqrt(d)

        qk_in_bf = (x + pos).astype(jnp.bfloat16)     # with_pos_embed(src, pos)
        x_bf = x.astype(jnp.bfloat16)

        # Fused Q/K projection: one (N,C)@(C,2C) bf16 MXU op sharing qk_in.
        qk = jnp.dot(qk_in_bf, qk_w_ref[...],
                     preferred_element_type=jnp.float32) + qk_b_ref[...]   # (N, 2C)
        # Value projection uses src (no pos), as in forward_post.
        v = jnp.dot(x_bf, v_w_ref[...],
                    preferred_element_type=jnp.float32) + v_b_ref[...]     # (N, C)

        q = qk[:, 0:C]
        k = qk[:, C:2 * C]

        # Multi-head attention: each head's output is written directly into a
        # VMEM scratch column slice (no list + lane concatenate).
        for h in range(H):
            qh = q[:, h * d:(h + 1) * d].astype(jnp.bfloat16)
            kh = k[:, h * d:(h + 1) * d].astype(jnp.bfloat16)
            vh = v[:, h * d:(h + 1) * d].astype(jnp.bfloat16)
            # q @ k^T without materializing a transpose: contract lane dims.
            s = jax.lax.dot_general(
                qh, kh, (((1,), (1,)), ((), ())),
                preferred_element_type=jnp.float32) * scale                # (N, N)
            s = s - jnp.max(s, axis=-1, keepdims=True)
            p = jnp.exp(s)
            p = p * pl.reciprocal(jnp.sum(p, axis=-1, keepdims=True), approx=True)
            pv = jnp.dot(p.astype(jnp.bfloat16), vh,
                         preferred_element_type=jnp.float32)               # (N, d)
            attn_scratch[:, h * d:(h + 1) * d] = pv.astype(attn_scratch.dtype)

        attn = attn_scratch[...]                                           # (N, C) bf16
        attn_out = jnp.dot(attn, out_w_ref[...],
                           preferred_element_type=jnp.float32) + out_b_ref[...]

        # residual + norm1
        x1 = _layer_norm(x + attn_out, ln1_g_ref[...], ln1_b_ref[...])

        # FFN: fc2(gelu(fc1(x1)))
        hdn = jnp.dot(x1.astype(jnp.bfloat16), fc1_w_ref[...],
                      preferred_element_type=jnp.float32) + fc1_b_ref[...]
        hdn = _gelu_exact(hdn)
        ffn = jnp.dot(hdn.astype(jnp.bfloat16), fc2_w_ref[...],
                      preferred_element_type=jnp.float32) + fc2_b_ref[...]

        # residual + norm2
        y = _layer_norm(x1 + ffn, ln2_g_ref[...], ln2_b_ref[...])
        o_ref[0] = y.astype(o_ref.dtype)

    return kernel


def _prepare_args(src, pos, params):
    """Host-side layout plumbing: split in_proj into fused QK + V, pre-transpose
    all weights to (in, out), and cast matmul weights to bf16."""
    C = src.shape[-1]
    in_w = params["in_w"].astype(jnp.float32)          # (3C, C)
    in_b = params["in_b"].astype(jnp.float32)          # (1, 3C)
    qk_w = jnp.transpose(in_w[:2 * C, :]).astype(jnp.bfloat16)    # (C, 2C)
    v_w = jnp.transpose(in_w[2 * C:, :]).astype(jnp.bfloat16)     # (C, C)
    qk_b = in_b[:, :2 * C]                                         # (1, 2C) f32
    v_b = in_b[:, 2 * C:]                                          # (1, C)  f32
    out_w = jnp.transpose(params["out_w"]).astype(jnp.bfloat16)    # (C, C)
    fc1_w = jnp.transpose(params["fc1_w"]).astype(jnp.bfloat16)    # (C, Cm)
    fc2_w = jnp.transpose(params["fc2_w"]).astype(jnp.bfloat16)    # (Cm, C)
    return (src, pos,
            qk_w, qk_b, v_w, v_b,
            out_w, params["out_b"].astype(jnp.float32),
            fc1_w, params["fc1_b"].astype(jnp.float32),
            fc2_w, params["fc2_b"].astype(jnp.float32),
            params["ln1_g"].astype(jnp.float32), params["ln1_b"].astype(jnp.float32),
            params["ln2_g"].astype(jnp.float32), params["ln2_b"].astype(jnp.float32))


def _build_call(B, N, C, Cm, num_heads, out_dtype, single_buffer_weights):
    def const2d(shape):
        # Grid-invariant operands: request a single VMEM buffer (the second
        # pipeline buffer is pure waste since the block never changes).
        if single_buffer_weights:
            return pl.BlockSpec(shape, lambda b: (0, 0),
                                pipeline_mode=pl.Buffered(1))
        return pl.BlockSpec(shape, lambda b: (0, 0))

    in_specs = [
        pl.BlockSpec((1, N, C), lambda b: (b, 0, 0)),   # src
        pl.BlockSpec((1, N, C), lambda b: (b, 0, 0)),   # pos
        const2d((C, 2 * C)),                            # fused QK weight (bf16)
        const2d((1, 2 * C)),                            # fused QK bias
        const2d((C, C)),                                # V weight (bf16)
        const2d((1, C)),                                # V bias
        const2d((C, C)),                                # out_proj weight (bf16)
        const2d((1, C)),                                # out_proj bias
        const2d((C, Cm)),                               # fc1 weight (bf16)
        const2d((1, Cm)),                               # fc1 bias
        const2d((Cm, C)),                               # fc2 weight (bf16)
        const2d((1, C)),                                # fc2 bias
        const2d((1, C)), const2d((1, C)),               # norm1 gamma / beta
        const2d((1, C)), const2d((1, C)),               # norm2 gamma / beta
    ]

    # Advisory cost estimate (per pallas_call, all batch elements).
    flops = B * (8 * N * C * C + 4 * N * N * C + 4 * N * C * Cm)
    transcendentals = B * (N * Cm + num_heads * N * N + 2 * N)
    weight_bytes = 2 * (2 * C * C + C * C + 2 * C * Cm) + 4 * (9 * C + Cm)
    bytes_accessed = 3 * B * N * C * 4 + weight_bytes

    # VMEM budget: pipelined activation blocks + weights (assume worst-case
    # double buffering) + scratch + headroom for live intermediates.
    vmem_est = (2 * 3 * N * C * 4
                + 2 * weight_bytes
                + N * C * 2
                + (2 * N * C + 2 * N * Cm + 2 * N * N + 8 * N * C) * 4)
    vmem_limit = int(min(2 * vmem_est + (4 << 20), 64 << 20))

    return pl.pallas_call(
        make_encoder_layer_kernel(num_heads),
        out_shape=jax.ShapeDtypeStruct((B, N, C), out_dtype),
        grid_spec=pltpu.PrefetchScalarGridSpec(
            num_scalar_prefetch=0,
            grid=(B,),
            in_specs=in_specs,
            out_specs=pl.BlockSpec((1, N, C), lambda b: (b, 0, 0)),
            scratch_shapes=[pltpu.VMEM((N, C), jnp.bfloat16)],
        ),
        compiler_params=pltpu.CompilerParams(
            dimension_semantics=("parallel",),
            vmem_limit_bytes=vmem_limit),
        cost_estimate=pl.CostEstimate(
            flops=int(flops),
            transcendentals=int(transcendentals),
            bytes_accessed=int(bytes_accessed)),
    )


def transformer_encoder_layer(src, pos, params, num_heads):
    """src, pos: (B, N, C). params: dict of PyTorch-layout weights. Returns (B, N, C)."""
    B, N, C = src.shape
    Cm = params["fc1_w"].shape[0]
    args = _prepare_args(src, pos, params)
    try:
        out = _build_call(B, N, C, Cm, num_heads, src.dtype, True)(*args)
        return jax.block_until_ready(out)
    except Exception:
        # Fallback for JAX builds where pipeline_mode=pl.Buffered(1) is not
        # supported on the pallas_call pipeline: default double buffering.
        out = _build_call(B, N, C, Cm, num_heads, src.dtype, False)(*args)
        return jax.block_until_ready(out)


def reference_forward(src, pos, params, num_heads):
    """Pure-JAX fp32 reference of forward_post (dropout=0)."""
    B, N, C = src.shape
    H = num_heads
    d = C // H
    x = src.astype(jnp.float32)
    qk_in = x + pos.astype(jnp.float32)

    in_w, in_b = params["in_w"], params["in_b"][0]
    wq, wk, wv = in_w[:C], in_w[C:2 * C], in_w[2 * C:]
    q = qk_in @ wq.T + in_b[:C]
    k = qk_in @ wk.T + in_b[C:2 * C]
    v = x @ wv.T + in_b[2 * C:]

    q = q.reshape(B, N, H, d).transpose(0, 2, 1, 3)
    k = k.reshape(B, N, H, d).transpose(0, 2, 1, 3)
    v = v.reshape(B, N, H, d).transpose(0, 2, 1, 3)
    s = jnp.einsum("bhqd,bhkd->bhqk", q, k) / math.sqrt(d)
    p = jax.nn.softmax(s, axis=-1)
    a = jnp.einsum("bhqk,bhkd->bhqd", p, v).transpose(0, 2, 1, 3).reshape(B, N, C)
    attn_out = a @ params["out_w"].T + params["out_b"][0]

    def ln(y, g, b):
        mu = y.mean(-1, keepdims=True)
        var = ((y - mu) ** 2).mean(-1, keepdims=True)
        return (y - mu) / jnp.sqrt(var + 1e-5) * g[0] + b[0]

    x1 = ln(x + attn_out, params["ln1_g"], params["ln1_b"])
    h = x1 @ params["fc1_w"].T + params["fc1_b"][0]
    h = 0.5 * h * (1.0 + jax.lax.erf(h / math.sqrt(2.0)))
    ffn = h @ params["fc2_w"].T + params["fc2_b"][0]
    return ln(x1 + ffn, params["ln2_g"], params["ln2_b"])


if __name__ == "__main__":
    B, N, C, Cm, H = 2, 16, 32, 64, 4

    key = jax.random.PRNGKey(0)
    keys = jax.random.split(key, 10)

    src = jax.random.normal(keys[0], (B, N, C), jnp.float32)
    pos = jax.random.normal(keys[1], (B, N, C), jnp.float32) * 0.1

    params = {
        "in_w":  jax.random.normal(keys[2], (3 * C, C), jnp.float32) * 0.05,
        "in_b":  jax.random.normal(keys[3], (1, 3 * C), jnp.float32) * 0.02,
        "out_w": jax.random.normal(keys[4], (C, C), jnp.float32) * 0.05,
        "out_b": jax.random.normal(keys[5], (1, C), jnp.float32) * 0.02,
        "fc1_w": jax.random.normal(keys[6], (Cm, C), jnp.float32) * 0.05,
        "fc1_b": jax.random.normal(keys[7], (1, Cm), jnp.float32) * 0.02,
        "fc2_w": jax.random.normal(keys[8], (C, Cm), jnp.float32) * 0.05,
        "fc2_b": jax.random.normal(keys[9], (1, C), jnp.float32) * 0.02,
        "ln1_g": jnp.ones((1, C), jnp.float32),
        "ln1_b": jnp.zeros((1, C), jnp.float32),
        "ln2_g": jnp.ones((1, C), jnp.float32),
        "ln2_b": jnp.zeros((1, C), jnp.float32),
    }

    out = transformer_encoder_layer(src, pos, params, num_heads=H)
    out = jax.block_until_ready(out)

    ref = reference_forward(src, pos, params, num_heads=H)
    assert out.shape == (B, N, C)
    # bf16 MXU operands + approx reciprocal vs fp32 reference -> looser tolerance.
    assert jnp.allclose(out, ref, atol=2e-2, rtol=2e-2), \
        f"max abs err {jnp.max(jnp.abs(out - ref))}"

    print("KERNEL_OK")
</pallas_src>

<mosaic_0001>
module attributes {stable_mosaic.version = 11 : i64} {
  func.func @kernel(%arg0: i32, %arg1: memref<1x16x32xf32, #tpu.memory_space<vmem>>, %arg2: memref<1x16x32xf32, #tpu.memory_space<vmem>>, %arg3: memref<32x64xbf16, #tpu.memory_space<vmem>>, %arg4: memref<1x64xf32, #tpu.memory_space<vmem>>, %arg5: memref<32x32xbf16, #tpu.memory_space<vmem>>, %arg6: memref<1x32xf32, #tpu.memory_space<vmem>>, %arg7: memref<32x32xbf16, #tpu.memory_space<vmem>>, %arg8: memref<1x32xf32, #tpu.memory_space<vmem>>, %arg9: memref<32x64xbf16, #tpu.memory_space<vmem>>, %arg10: memref<1x64xf32, #tpu.memory_space<vmem>>, %arg11: memref<64x32xbf16, #tpu.memory_space<vmem>>, %arg12: memref<1x32xf32, #tpu.memory_space<vmem>>, %arg13: memref<1x32xf32, #tpu.memory_space<vmem>>, %arg14: memref<1x32xf32, #tpu.memory_space<vmem>>, %arg15: memref<1x32xf32, #tpu.memory_space<vmem>>, %arg16: memref<1x32xf32, #tpu.memory_space<vmem>>, %arg17: memref<1x16x32xf32, #tpu.memory_space<vmem>>, %arg18: memref<16x32xbf16, #tpu.memory_space<vmem>>) attributes {dimension_semantics = [#tpu.dimension_semantics<parallel>], iteration_bounds = array<i64: 2>, scalar_prefetch = 0 : i64, scratch_operands = 1 : i64, tpu.core_type = #tpu.core_type<tc>, window_params = [{transform_indices = @transform_0, window_bounds = array<i64: 1, 16, 32>}, {transform_indices = @transform_1, window_bounds = array<i64: 1, 16, 32>}, {pipeline_mode = #tpu.pipeline_mode<synchronous>, transform_indices = @transform_2, window_bounds = array<i64: 32, 64>}, {pipeline_mode = #tpu.pipeline_mode<synchronous>, transform_indices = @transform_3, window_bounds = array<i64: 1, 64>}, {pipeline_mode = #tpu.pipeline_mode<synchronous>, transform_indices = @transform_4, window_bounds = array<i64: 32, 32>}, {pipeline_mode = #tpu.pipeline_mode<synchronous>, transform_indices = @transform_5, window_bounds = array<i64: 1, 32>}, {pipeline_mode = #tpu.pipeline_mode<synchronous>, transform_indices = @transform_6, window_bounds = array<i64: 32, 32>}, {pipeline_mode = #tpu.pipeline_mode<synchronous>, transform_indices = @transform_7, window_bounds = array<i64: 1, 32>}, {pipeline_mode = #tpu.pipeline_mode<synchronous>, transform_indices = @transform_8, window_bounds = array<i64: 32, 64>}, {pipeline_mode = #tpu.pipeline_mode<synchronous>, transform_indices = @transform_9, window_bounds = array<i64: 1, 64>}, {pipeline_mode = #tpu.pipeline_mode<synchronous>, transform_indices = @transform_10, window_bounds = array<i64: 64, 32>}, {pipeline_mode = #tpu.pipeline_mode<synchronous>, transform_indices = @transform_11, window_bounds = array<i64: 1, 32>}, {pipeline_mode = #tpu.pipeline_mode<synchronous>, transform_indices = @transform_12, window_bounds = array<i64: 1, 32>}, {pipeline_mode = #tpu.pipeline_mode<synchronous>, transform_indices = @transform_13, window_bounds = array<i64: 1, 32>}, {pipeline_mode = #tpu.pipeline_mode<synchronous>, transform_indices = @transform_14, window_bounds = array<i64: 1, 32>}, {pipeline_mode = #tpu.pipeline_mode<synchronous>, transform_indices = @transform_15, window_bounds = array<i64: 1, 32>}, {transform_indices = @transform_16, window_bounds = array<i64: 1, 16, 32>}]} {
    %c0 = arith.constant 0 : index
    %c0_0 = arith.constant 0 : index
    %c0_1 = arith.constant 0 : index
    %0 = vector.load %arg1[%c0, %c0_0, %c0_1] : memref<1x16x32xf32, #tpu.memory_space<vmem>>, vector<1x16x32xf32>
    %1 = vector.shape_cast %0 : vector<1x16x32xf32> to vector<16x32xf32>
    %c0_2 = arith.constant 0 : index
    %c0_3 = arith.constant 0 : index
    %c0_4 = arith.constant 0 : index
    %2 = vector.load %arg2[%c0_2, %c0_3, %c0_4] : memref<1x16x32xf32, #tpu.memory_space<vmem>>, vector<1x16x32xf32>
    %3 = vector.shape_cast %2 : vector<1x16x32xf32> to vector<16x32xf32>
    %4 = arith.addf %1, %3 : vector<16x32xf32>
    %5 = arith.truncf %4 : vector<16x32xf32> to vector<16x32xbf16>
    %6 = arith.truncf %1 : vector<16x32xf32> to vector<16x32xbf16>
    %c0_5 = arith.constant 0 : index
    %c0_6 = arith.constant 0 : index
    %7 = vector.load %arg3[%c0_5, %c0_6] : memref<32x64xbf16, #tpu.memory_space<vmem>>, vector<32x64xbf16>
    %cst = arith.constant dense<0.000000e+00> : vector<16x64xf32>
    %8 = tpu.matmul %5, %7, %cst {dimension_numbers = #tpu.dot_dimension_numbers<[1], [0], [0], [1], [0, 0, 1, 1], [], []>} : vector<16x32xbf16>, vector<32x64xbf16>, vector<16x64xf32> -> vector<16x64xf32>
    %c0_7 = arith.constant 0 : index
    %c0_8 = arith.constant 0 : index
    %9 = vector.load %arg4[%c0_7, %c0_8] : memref<1x64xf32, #tpu.memory_space<vmem>>, vector<1x64xf32>
    %10 = vector.broadcast %9 : vector<1x64xf32> to vector<16x64xf32>
    %11 = arith.addf %8, %10 : vector<16x64xf32>
    %c0_9 = arith.constant 0 : index
    %c0_10 = arith.constant 0 : index
    %12 = vector.load %arg5[%c0_9, %c0_10] : memref<32x32xbf16, #tpu.memory_space<vmem>>, vector<32x32xbf16>
    %cst_11 = arith.constant dense<0.000000e+00> : vector<16x32xf32>
    %13 = tpu.matmul %6, %12, %cst_11 {dimension_numbers = #tpu.dot_dimension_numbers<[1], [0], [0], [1], [0, 0, 1, 1], [], []>} : vector<16x32xbf16>, vector<32x32xbf16>, vector<16x32xf32> -> vector<16x32xf32>
    %c0_12 = arith.constant 0 : index
    %c0_13 = arith.constant 0 : index
    %14 = vector.load %arg6[%c0_12, %c0_13] : memref<1x32xf32, #tpu.memory_space<vmem>>, vector<1x32xf32>
    %15 = vector.broadcast %14 : vector<1x32xf32> to vector<16x32xf32>
    %16 = arith.addf %13, %15 : vector<16x32xf32>
    %17 = vector.extract_strided_slice %11 {offsets = [0, 0], sizes = [16, 32], strides = [1, 1]} : vector<16x64xf32> to vector<16x32xf32>
    %18 = vector.extract_strided_slice %11 {offsets = [0, 32], sizes = [16, 32], strides = [1, 1]} : vector<16x64xf32> to vector<16x32xf32>
    %19 = vector.extract_strided_slice %17 {offsets = [0, 0], sizes = [16, 8], strides = [1, 1]} : vector<16x32xf32> to vector<16x8xf32>
    %20 = arith.truncf %19 : vector<16x8xf32> to vector<16x8xbf16>
    %21 = vector.extract_strided_slice %18 {offsets = [0, 0], sizes = [16, 8], strides = [1, 1]} : vector<16x32xf32> to vector<16x8xf32>
    %22 = arith.truncf %21 : vector<16x8xf32> to vector<16x8xbf16>
    %23 = vector.extract_strided_slice %16 {offsets = [0, 0], sizes = [16, 8], strides = [1, 1]} : vector<16x32xf32> to vector<16x8xf32>
    %24 = arith.truncf %23 : vector<16x8xf32> to vector<16x8xbf16>
    %cst_14 = arith.constant dense<0.000000e+00> : vector<16x16xf32>
    %25 = tpu.matmul %20, %22, %cst_14 {dimension_numbers = #tpu.dot_dimension_numbers<[1], [1], [0], [0], [0, 0, 1, 0], [], []>} : vector<16x8xbf16>, vector<16x8xbf16>, vector<16x16xf32> -> vector<16x16xf32>
    %cst_15 = arith.constant 0.353553385 : f32
    %26 = vector.broadcast %cst_15 : f32 to vector<16x16xf32>
    %27 = arith.mulf %25, %26 : vector<16x16xf32>
    %cst_16 = arith.constant dense<0xFF800000> : vector<16xf32>
    %28 = vector.multi_reduction <maximumf>, %27, %cst_16 [1] : vector<16x16xf32> to vector<16xf32>
    %29 = vector.shape_cast %28 : vector<16xf32> to vector<16x1xf32>
    %30 = vector.broadcast %29 : vector<16x1xf32> to vector<16x16xf32>
    %31 = arith.subf %27, %30 : vector<16x16xf32>
    %32 = math.exp %31 : vector<16x16xf32>
    %cst_17 = arith.constant dense<0.000000e+00> : vector<16xf32>
    %33 = vector.multi_reduction <add>, %32, %cst_17 [1] : vector<16x16xf32> to vector<16xf32>
    %34 = vector.shape_cast %33 : vector<16xf32> to vector<16x1xf32>
    %35 = tpu.reciprocal %34 {approx = true} : vector<16x1xf32> -> vector<16x1xf32>
    %36 = vector.broadcast %35 : vector<16x1xf32> to vector<16x16xf32>
    %37 = arith.mulf %32, %36 : vector<16x16xf32>
    %38 = arith.truncf %37 : vector<16x16xf32> to vector<16x16xbf16>
    %cst_18 = arith.constant dense<0.000000e+00> : vector<16x8xf32>
    %39 = tpu.matmul %38, %24, %cst_18 {dimension_numbers = #tpu.dot_dimension_numbers<[1], [0], [0], [1], [0, 0, 1, 1], [], []>} : vector<16x16xbf16>, vector<16x8xbf16>, vector<16x8xf32> -> vector<16x8xf32>
    %40 = arith.truncf %39 : vector<16x8xf32> to vector<16x8xbf16>
    %c0_19 = arith.constant 0 : index
    %c0_20 = arith.constant 0 : index
    %41 = vector.load %arg18[%c0_19, %c0_20] : memref<16x32xbf16, #tpu.memory_space<vmem>>, vector<16x8xbf16>
    tpu.vector_store %arg18[%c0_19, %c0_20], %40 {strides = array<i32>} : memref<16x32xbf16, #tpu.memory_space<vmem>>, vector<16x8xbf16>,
    %42 = vector.extract_strided_slice %17 {offsets = [0, 8], sizes = [16, 8], strides = [1, 1]} : vector<16x32xf32> to vector<16x8xf32>
    %43 = arith.truncf %42 : vector<16x8xf32> to vector<16x8xbf16>
    %44 = vector.extract_strided_slice %18 {offsets = [0, 8], sizes = [16, 8], strides = [1, 1]} : vector<16x32xf32> to vector<16x8xf32>
    %45 = arith.truncf %44 : vector<16x8xf32> to vector<16x8xbf16>
    %46 = vector.extract_strided_slice %16 {offsets = [0, 8], sizes = [16, 8], strides = [1, 1]} : vector<16x32xf32> to vector<16x8xf32>
    %47 = arith.truncf %46 : vector<16x8xf32> to vector<16x8xbf16>
    %cst_21 = arith.constant dense<0.000000e+00> : vector<16x16xf32>
    %48 = tpu.matmul %43, %45, %cst_21 {dimension_numbers = #tpu.dot_dimension_numbers<[1], [1], [0], [0], [0, 0, 1, 0], [], []>} : vector<16x8xbf16>, vector<16x8xbf16>, vector<16x16xf32> -> vector<16x16xf32>
    %cst_22 = arith.constant 0.353553385 : f32
    %49 = vector.broadcast %cst_22 : f32 to vector<16x16xf32>
    %50 = arith.mulf %48, %49 : vector<16x16xf32>
    %cst_23 = arith.constant dense<0xFF800000> : vector<16xf32>
    %51 = vector.multi_reduction <maximumf>, %50, %cst_23 [1] : vector<16x16xf32> to vector<16xf32>
    %52 = vector.shape_cast %51 : vector<16xf32> to vector<16x1xf32>
    %53 = vector.broadcast %52 : vector<16x1xf32> to vector<16x16xf32>
    %54 = arith.subf %50, %53 : vector<16x16xf32>
    %55 = math.exp %54 : vector<16x16xf32>
    %cst_24 = arith.constant dense<0.000000e+00> : vector<16xf32>
    %56 = vector.multi_reduction <add>, %55, %cst_24 [1] : vector<16x16xf32> to vector<16xf32>
    %57 = vector.shape_cast %56 : vector<16xf32> to vector<16x1xf32>
    %58 = tpu.reciprocal %57 {approx = true} : vector<16x1xf32> -> vector<16x1xf32>
    %59 = vector.broadcast %58 : vector<16x1xf32> to vector<16x16xf32>
    %60 = arith.mulf %55, %59 : vector<16x16xf32>
    %61 = arith.truncf %60 : vector<16x16xf32> to vector<16x16xbf16>
    %cst_25 = arith.constant dense<0.000000e+00> : vector<16x8xf32>
    %62 = tpu.matmul %61, %47, %cst_25 {dimension_numbers = #tpu.dot_dimension_numbers<[1], [0], [0], [1], [0, 0, 1, 1], [], []>} : vector<16x16xbf16>, vector<16x8xbf16>, vector<16x8xf32> -> vector<16x8xf32>
    %63 = arith.truncf %62 : vector<16x8xf32> to vector<16x8xbf16>
    %c0_26 = arith.constant 0 : index
    %c8 = arith.constant 8 : index
    %64 = vector.load %arg18[%c0_26, %c8] : memref<16x32xbf16, #tpu.memory_space<vmem>>, vector<16x8xbf16>
    tpu.vector_store %arg18[%c0_26, %c8], %63 {strides = array<i32>} : memref<16x32xbf16, #tpu.memory_space<vmem>>, vector<16x8xbf16>,
    %65 = vector.extract_strided_slice %17 {offsets = [0, 16], sizes = [16, 8], strides = [1, 1]} : vector<16x32xf32> to vector<16x8xf32>
    %66 = arith.truncf %65 : vector<16x8xf32> to vector<16x8xbf16>
    %67 = vector.extract_strided_slice %18 {offsets = [0, 16], sizes = [16, 8], strides = [1, 1]} : vector<16x32xf32> to vector<16x8xf32>
    %68 = arith.truncf %67 : vector<16x8xf32> to vector<16x8xbf16>
    %69 = vector.extract_strided_slice %16 {offsets = [0, 16], sizes = [16, 8], strides = [1, 1]} : vector<16x32xf32> to vector<16x8xf32>
    %70 = arith.truncf %69 : vector<16x8xf32> to vector<16x8xbf16>
    %cst_27 = arith.constant dense<0.000000e+00> : vector<16x16xf32>
    %71 = tpu.matmul %66, %68, %cst_27 {dimension_numbers = #tpu.dot_dimension_numbers<[1], [1], [0], [0], [0, 0, 1, 0], [], []>} : vector<16x8xbf16>, vector<16x8xbf16>, vector<16x16xf32> -> vector<16x16xf32>
    %cst_28 = arith.constant 0.353553385 : f32
    %72 = vector.broadcast %cst_28 : f32 to vector<16x16xf32>
    %73 = arith.mulf %71, %72 : vector<16x16xf32>
    %cst_29 = arith.constant dense<0xFF800000> : vector<16xf32>
    %74 = vector.multi_reduction <maximumf>, %73, %cst_29 [1] : vector<16x16xf32> to vector<16xf32>
    %75 = vector.shape_cast %74 : vector<16xf32> to vector<16x1xf32>
    %76 = vector.broadcast %75 : vector<16x1xf32> to vector<16x16xf32>
    %77 = arith.subf %73, %76 : vector<16x16xf32>
    %78 = math.exp %77 : vector<16x16xf32>
    %cst_30 = arith.constant dense<0.000000e+00> : vector<16xf32>
    %79 = vector.multi_reduction <add>, %78, %cst_30 [1] : vector<16x16xf32> to vector<16xf32>
    %80 = vector.shape_cast %79 : vector<16xf32> to vector<16x1xf32>
    %81 = tpu.reciprocal %80 {approx = true} : vector<16x1xf32> -> vector<16x1xf32>
    %82 = vector.broadcast %81 : vector<16x1xf32> to vector<16x16xf32>
    %83 = arith.mulf %78, %82 : vector<16x16xf32>
    %84 = arith.truncf %83 : vector<16x16xf32> to vector<16x16xbf16>
    %cst_31 = arith.constant dense<0.000000e+00> : vector<16x8xf32>
    %85 = tpu.matmul %84, %70, %cst_31 {dimension_numbers = #tpu.dot_dimension_numbers<[1], [0], [0], [1], [0, 0, 1, 1], [], []>} : vector<16x16xbf16>, vector<16x8xbf16>, vector<16x8xf32> -> vector<16x8xf32>
    %86 = arith.truncf %85 : vector<16x8xf32> to vector<16x8xbf16>
    %c0_32 = arith.constant 0 : index
    %c16 = arith.constant 16 : index
    %87 = vector.load %arg18[%c0_32, %c16] : memref<16x32xbf16, #tpu.memory_space<vmem>>, vector<16x8xbf16>
    tpu.vector_store %arg18[%c0_32, %c16], %86 {strides = array<i32>} : memref<16x32xbf16, #tpu.memory_space<vmem>>, vector<16x8xbf16>,
    %88 = vector.extract_strided_slice %17 {offsets = [0, 24], sizes = [16, 8], strides = [1, 1]} : vector<16x32xf32> to vector<16x8xf32>
    %89 = arith.truncf %88 : vector<16x8xf32> to vector<16x8xbf16>
    %90 = vector.extract_strided_slice %18 {offsets = [0, 24], sizes = [16, 8], strides = [1, 1]} : vector<16x32xf32> to vector<16x8xf32>
    %91 = arith.truncf %90 : vector<16x8xf32> to vector<16x8xbf16>
    %92 = vector.extract_strided_slice %16 {offsets = [0, 24], sizes = [16, 8], strides = [1, 1]} : vector<16x32xf32> to vector<16x8xf32>
    %93 = arith.truncf %92 : vector<16x8xf32> to vector<16x8xbf16>
    %cst_33 = arith.constant dense<0.000000e+00> : vector<16x16xf32>
    %94 = tpu.matmul %89, %91, %cst_33 {dimension_numbers = #tpu.dot_dimension_numbers<[1], [1], [0], [0], [0, 0, 1, 0], [], []>} : vector<16x8xbf16>, vector<16x8xbf16>, vector<16x16xf32> -> vector<16x16xf32>
    %cst_34 = arith.constant 0.353553385 : f32
    %95 = vector.broadcast %cst_34 : f32 to vector<16x16xf32>
    %96 = arith.mulf %94, %95 : vector<16x16xf32>
    %cst_35 = arith.constant dense<0xFF800000> : vector<16xf32>
    %97 = vector.multi_reduction <maximumf>, %96, %cst_35 [1] : vector<16x16xf32> to vector<16xf32>
    %98 = vector.shape_cast %97 : vector<16xf32> to vector<16x1xf32>
    %99 = vector.broadcast %98 : vector<16x1xf32> to vector<16x16xf32>
    %100 = arith.subf %96, %99 : vector<16x16xf32>
    %101 = math.exp %100 : vector<16x16xf32>
    %cst_36 = arith.constant dense<0.000000e+00> : vector<16xf32>
    %102 = vector.multi_reduction <add>, %101, %cst_36 [1] : vector<16x16xf32> to vector<16xf32>
    %103 = vector.shape_cast %102 : vector<16xf32> to vector<16x1xf32>
    %104 = tpu.reciprocal %103 {approx = true} : vector<16x1xf32> -> vector<16x1xf32>
    %105 = vector.broadcast %104 : vector<16x1xf32> to vector<16x16xf32>
    %106 = arith.mulf %101, %105 : vector<16x16xf32>
    %107 = arith.truncf %106 : vector<16x16xf32> to vector<16x16xbf16>
    %cst_37 = arith.constant dense<0.000000e+00> : vector<16x8xf32>
    %108 = tpu.matmul %107, %93, %cst_37 {dimension_numbers = #tpu.dot_dimension_numbers<[1], [0], [0], [1], [0, 0, 1, 1], [], []>} : vector<16x16xbf16>, vector<16x8xbf16>, vector<16x8xf32> -> vector<16x8xf32>
    %109 = arith.truncf %108 : vector<16x8xf32> to vector<16x8xbf16>
    %c0_38 = arith.constant 0 : index
    %c24 = arith.constant 24 : index
    %110 = vector.load %arg18[%c0_38, %c24] : memref<16x32xbf16, #tpu.memory_space<vmem>>, vector<16x8xbf16>
    tpu.vector_store %arg18[%c0_38, %c24], %109 {strides = array<i32>} : memref<16x32xbf16, #tpu.memory_space<vmem>>, vector<16x8xbf16>,
    %c0_39 = arith.constant 0 : index
    %c0_40 = arith.constant 0 : index
    %111 = vector.load %arg18[%c0_39, %c0_40] : memref<16x32xbf16, #tpu.memory_space<vmem>>, vector<16x32xbf16>
    %c0_41 = arith.constant 0 : index
    %c0_42 = arith.constant 0 : index
    %112 = vector.load %arg7[%c0_41, %c0_42] : memref<32x32xbf16, #tpu.memory_space<vmem>>, vector<32x32xbf16>
    %cst_43 = arith.constant dense<0.000000e+00> : vector<16x32xf32>
    %113 = tpu.matmul %111, %112, %cst_43 {dimension_numbers = #tpu.dot_dimension_numbers<[1], [0], [0], [1], [0, 0, 1, 1], [], []>} : vector<16x32xbf16>, vector<32x32xbf16>, vector<16x32xf32> -> vector<16x32xf32>
    %c0_44 = arith.constant 0 : index
    %c0_45 = arith.constant 0 : index
    %114 = vector.load %arg8[%c0_44, %c0_45] : memref<1x32xf32, #tpu.memory_space<vmem>>, vector<1x32xf32>
    %115 = vector.broadcast %114 : vector<1x32xf32> to vector<16x32xf32>
    %116 = arith.addf %113, %115 : vector<16x32xf32>
    %117 = arith.addf %1, %116 : vector<16x32xf32>
    %c0_46 = arith.constant 0 : index
    %c0_47 = arith.constant 0 : index
    %118 = vector.load %arg13[%c0_46, %c0_47] : memref<1x32xf32, #tpu.memory_space<vmem>>, vector<1x32xf32>
    %c0_48 = arith.constant 0 : index
    %c0_49 = arith.constant 0 : index
    %119 = vector.load %arg14[%c0_48, %c0_49] : memref<1x32xf32, #tpu.memory_space<vmem>>, vector<1x32xf32>
    %cst_50 = arith.constant dense<0.000000e+00> : vector<16xf32>
    %120 = vector.multi_reduction <add>, %117, %cst_50 [1] : vector<16x32xf32> to vector<16xf32>
    %121 = vector.shape_cast %120 : vector<16xf32> to vector<16x1xf32>
    %cst_51 = arith.constant 3.200000e+01 : f32
    %122 = vector.broadcast %cst_51 : f32 to vector<16x1xf32>
    %123 = arith.divf %121, %122 : vector<16x1xf32>
    %124 = vector.broadcast %123 : vector<16x1xf32> to vector<16x32xf32>
    %125 = arith.subf %117, %124 : vector<16x32xf32>
    %126 = arith.mulf %125, %125 : vector<16x32xf32>
    %cst_52 = arith.constant dense<0.000000e+00> : vector<16xf32>
    %127 = vector.multi_reduction <add>, %126, %cst_52 [1] : vector<16x32xf32> to vector<16xf32>
    %128 = vector.shape_cast %127 : vector<16xf32> to vector<16x1xf32>
    %cst_53 = arith.constant 3.200000e+01 : f32
    %129 = vector.broadcast %cst_53 : f32 to vector<16x1xf32>
    %130 = arith.divf %128, %129 : vector<16x1xf32>
    %131 = vector.broadcast %123 : vector<16x1xf32> to vector<16x32xf32>
    %132 = arith.subf %117, %131 : vector<16x32xf32>
    %cst_54 = arith.constant 9.99999974E-6 : f32
    %133 = vector.broadcast %cst_54 : f32 to vector<16x1xf32>
    %134 = arith.addf %130, %133 : vector<16x1xf32>
    %135 = math.rsqrt %134 : vector<16x1xf32>
    %136 = vector.broadcast %135 : vector<16x1xf32> to vector<16x32xf32>
    %137 = arith.mulf %132, %136 : vector<16x32xf32>
    %138 = vector.broadcast %118 : vector<1x32xf32> to vector<16x32xf32>
    %139 = arith.mulf %137, %138 : vector<16x32xf32>
    %140 = vector.broadcast %119 : vector<1x32xf32> to vector<16x32xf32>
    %141 = arith.addf %139, %140 : vector<16x32xf32>
    %142 = arith.truncf %141 : vector<16x32xf32> to vector<16x32xbf16>
    %c0_55 = arith.constant 0 : index
    %c0_56 = arith.constant 0 : index
    %143 = vector.load %arg9[%c0_55, %c0_56] : memref<32x64xbf16, #tpu.memory_space<vmem>>, vector<32x64xbf16>
    %cst_57 = arith.constant dense<0.000000e+00> : vector<16x64xf32>
    %144 = tpu.matmul %142, %143, %cst_57 {dimension_numbers = #tpu.dot_dimension_numbers<[1], [0], [0], [1], [0, 0, 1, 1], [], []>} : vector<16x32xbf16>, vector<32x64xbf16>, vector<16x64xf32> -> vector<16x64xf32>
    %c0_58 = arith.constant 0 : index
    %c0_59 = arith.constant 0 : index
    %145 = vector.load %arg10[%c0_58, %c0_59] : memref<1x64xf32, #tpu.memory_space<vmem>>, vector<1x64xf32>
    %146 = vector.broadcast %145 : vector<1x64xf32> to vector<16x64xf32>
    %147 = arith.addf %144, %146 : vector<16x64xf32>
    %cst_60 = arith.constant 5.000000e-01 : f32
    %148 = vector.broadcast %cst_60 : f32 to vector<16x64xf32>
    %149 = arith.mulf %148, %147 : vector<16x64xf32>
    %cst_61 = arith.constant 0.707106769 : f32
    %150 = vector.broadcast %cst_61 : f32 to vector<16x64xf32>
    %151 = arith.mulf %147, %150 : vector<16x64xf32>
    %152 = math.erf %151 : vector<16x64xf32>
    %cst_62 = arith.constant 1.000000e+00 : f32
    %153 = vector.broadcast %cst_62 : f32 to vector<16x64xf32>
    %154 = arith.addf %153, %152 : vector<16x64xf32>
    %155 = arith.mulf %149, %154 : vector<16x64xf32>
    %156 = arith.truncf %155 : vector<16x64xf32> to vector<16x64xbf16>
    %c0_63 = arith.constant 0 : index
    %c0_64 = arith.constant 0 : index
    %157 = vector.load %arg11[%c0_63, %c0_64] : memref<64x32xbf16, #tpu.memory_space<vmem>>, vector<64x32xbf16>
    %cst_65 = arith.constant dense<0.000000e+00> : vector<16x32xf32>
    %158 = tpu.matmul %156, %157, %cst_65 {dimension_numbers = #tpu.dot_dimension_numbers<[1], [0], [0], [1], [0, 0, 1, 1], [], []>} : vector<16x64xbf16>, vector<64x32xbf16>, vector<16x32xf32> -> vector<16x32xf32>
    %c0_66 = arith.constant 0 : index
    %c0_67 = arith.constant 0 : index
    %159 = vector.load %arg12[%c0_66, %c0_67] : memref<1x32xf32, #tpu.memory_space<vmem>>, vector<1x32xf32>
    %160 = vector.broadcast %159 : vector<1x32xf32> to vector<16x32xf32>
    %161 = arith.addf %158, %160 : vector<16x32xf32>
    %162 = arith.addf %141, %161 : vector<16x32xf32>
    %c0_68 = arith.constant 0 : index
    %c0_69 = arith.constant 0 : index
    %163 = vector.load %arg15[%c0_68, %c0_69] : memref<1x32xf32, #tpu.memory_space<vmem>>, vector<1x32xf32>
    %c0_70 = arith.constant 0 : index
    %c0_71 = arith.constant 0 : index
    %164 = vector.load %arg16[%c0_70, %c0_71] : memref<1x32xf32, #tpu.memory_space<vmem>>, vector<1x32xf32>
    %cst_72 = arith.constant dense<0.000000e+00> : vector<16xf32>
    %165 = vector.multi_reduction <add>, %162, %cst_72 [1] : vector<16x32xf32> to vector<16xf32>
    %166 = vector.shape_cast %165 : vector<16xf32> to vector<16x1xf32>
    %cst_73 = arith.constant 3.200000e+01 : f32
    %167 = vector.broadcast %cst_73 : f32 to vector<16x1xf32>
    %168 = arith.divf %166, %167 : vector<16x1xf32>
    %169 = vector.broadcast %168 : vector<16x1xf32> to vector<16x32xf32>
    %170 = arith.subf %162, %169 : vector<16x32xf32>
    %171 = arith.mulf %170, %170 : vector<16x32xf32>
    %cst_74 = arith.constant dense<0.000000e+00> : vector<16xf32>
    %172 = vector.multi_reduction <add>, %171, %cst_74 [1] : vector<16x32xf32> to vector<16xf32>
    %173 = vector.shape_cast %172 : vector<16xf32> to vector<16x1xf32>
    %cst_75 = arith.constant 3.200000e+01 : f32
    %174 = vector.broadcast %cst_75 : f32 to vector<16x1xf32>
    %175 = arith.divf %173, %174 : vector<16x1xf32>
    %176 = vector.broadcast %168 : vector<16x1xf32> to vector<16x32xf32>
    %177 = arith.subf %162, %176 : vector<16x32xf32>
    %cst_76 = arith.constant 9.99999974E-6 : f32
    %178 = vector.broadcast %cst_76 : f32 to vector<16x1xf32>
    %179 = arith.addf %175, %178 : vector<16x1xf32>
    %180 = math.rsqrt %179 : vector<16x1xf32>
    %181 = vector.broadcast %180 : vector<16x1xf32> to vector<16x32xf32>
    %182 = arith.mulf %177, %181 : vector<16x32xf32>
    %183 = vector.broadcast %163 : vector<1x32xf32> to vector<16x32xf32>
    %184 = arith.mulf %182, %183 : vector<16x32xf32>
    %185 = vector.broadcast %164 : vector<1x32xf32> to vector<16x32xf32>
    %186 = arith.addf %184, %185 : vector<16x32xf32>
    %c0_77 = arith.constant 0 : index
    %c0_78 = arith.constant 0 : index
    %c0_79 = arith.constant 0 : index
    %187 = vector.load %arg17[%c0_77, %c0_78, %c0_79] : memref<1x16x32xf32, #tpu.memory_space<vmem>>, vector<1x16x32xf32>
    %188 = vector.shape_cast %187 : vector<1x16x32xf32> to vector<16x32xf32>
    %189 = vector.shape_cast %186 : vector<16x32xf32> to vector<1x16x32xf32>
    tpu.vector_store %arg17[%c0_77, %c0_78, %c0_79], %189 {strides = array<i32>} : memref<1x16x32xf32, #tpu.memory_space<vmem>>, vector<1x16x32xf32>,
    return
  }
  func.func @transform_0(%arg0: i32) -> (i32, i32, i32) {
    %c0_i32 = arith.constant 0 : i32
    %c0_i32_0 = arith.constant 0 : i32
    %c0_i32_1 = arith.constant 0 : i32
    return %arg0, %c0_i32, %c0_i32_0 : i32, i32, i32
  }
  func.func @transform_1(%arg0: i32) -> (i32, i32, i32) {
    %c0_i32 = arith.constant 0 : i32
    %c0_i32_0 = arith.constant 0 : i32
    %c0_i32_1 = arith.constant 0 : i32
    return %arg0, %c0_i32, %c0_i32_0 : i32, i32, i32
  }
  func.func @transform_2(%arg0: i32) -> (i32, i32) {
    %c0_i32 = arith.constant 0 : i32
    %c0_i32_0 = arith.constant 0 : i32
    %c0_i32_1 = arith.constant 0 : i32
    return %c0_i32, %c0_i32_0 : i32, i32
  }
  func.func @transform_3(%arg0: i32) -> (i32, i32) {
    %c0_i32 = arith.constant 0 : i32
    %c0_i32_0 = arith.constant 0 : i32
    %c0_i32_1 = arith.constant 0 : i32
    return %c0_i32, %c0_i32_0 : i32, i32
  }
  func.func @transform_4(%arg0: i32) -> (i32, i32) {
    %c0_i32 = arith.constant 0 : i32
    %c0_i32_0 = arith.constant 0 : i32
    %c0_i32_1 = arith.constant 0 : i32
    return %c0_i32, %c0_i32_0 : i32, i32
  }
  func.func @transform_5(%arg0: i32) -> (i32, i32) {
    %c0_i32 = arith.constant 0 : i32
    %c0_i32_0 = arith.constant 0 : i32
    %c0_i32_1 = arith.constant 0 : i32
    return %c0_i32, %c0_i32_0 : i32, i32
  }
  func.func @transform_6(%arg0: i32) -> (i32, i32) {
    %c0_i32 = arith.constant 0 : i32
    %c0_i32_0 = arith.constant 0 : i32
    %c0_i32_1 = arith.constant 0 : i32
    return %c0_i32, %c0_i32_0 : i32, i32
  }
  func.func @transform_7(%arg0: i32) -> (i32, i32) {
    %c0_i32 = arith.constant 0 : i32
    %c0_i32_0 = arith.constant 0 : i32
    %c0_i32_1 = arith.constant 0 : i32
    return %c0_i32, %c0_i32_0 : i32, i32
  }
  func.func @transform_8(%arg0: i32) -> (i32, i32) {
    %c0_i32 = arith.constant 0 : i32
    %c0_i32_0 = arith.constant 0 : i32
    %c0_i32_1 = arith.constant 0 : i32
    return %c0_i32, %c0_i32_0 : i32, i32
  }
  func.func @transform_9(%arg0: i32) -> (i32, i32) {
    %c0_i32 = arith.constant 0 : i32
    %c0_i32_0 = arith.constant 0 : i32
    %c0_i32_1 = arith.constant 0 : i32
    return %c0_i32, %c0_i32_0 : i32, i32
  }
  func.func @transform_10(%arg0: i32) -> (i32, i32) {
    %c0_i32 = arith.constant 0 : i32
    %c0_i32_0 = arith.constant 0 : i32
    %c0_i32_1 = arith.constant 0 : i32
    return %c0_i32, %c0_i32_0 : i32, i32
  }
  func.func @transform_11(%arg0: i32) -> (i32, i32) {
    %c0_i32 = arith.constant 0 : i32
    %c0_i32_0 = arith.constant 0 : i32
    %c0_i32_1 = arith.constant 0 : i32
    return %c0_i32, %c0_i32_0 : i32, i32
  }
  func.func @transform_12(%arg0: i32) -> (i32, i32) {
    %c0_i32 = arith.constant 0 : i32
    %c0_i32_0 = arith.constant 0 : i32
    %c0_i32_1 = arith.constant 0 : i32
    return %c0_i32, %c0_i32_0 : i32, i32
  }
  func.func @transform_13(%arg0: i32) -> (i32, i32) {
    %c0_i32 = arith.constant 0 : i32
    %c0_i32_0 = arith.constant 0 : i32
    %c0_i32_1 = arith.constant 0 : i32
    return %c0_i32, %c0_i32_0 : i32, i32
  }
  func.func @transform_14(%arg0: i32) -> (i32, i32) {
    %c0_i32 = arith.constant 0 : i32
    %c0_i32_0 = arith.constant 0 : i32
    %c0_i32_1 = arith.constant 0 : i32
    return %c0_i32, %c0_i32_0 : i32, i32
  }
  func.func @transform_15(%arg0: i32) -> (i32, i32) {
    %c0_i32 = arith.constant 0 : i32
    %c0_i32_0 = arith.constant 0 : i32
    %c0_i32_1 = arith.constant 0 : i32
    return %c0_i32, %c0_i32_0 : i32, i32
  }
  func.func @transform_16(%arg0: i32) -> (i32, i32, i32) {
    %c0_i32 = arith.constant 0 : i32
    %c0_i32_0 = arith.constant 0 : i32
    %c0_i32_1 = arith.constant 0 : i32
    return %arg0, %c0_i32, %c0_i32_0 : i32, i32, i32
  }
}

module attributes {stable_mosaic.version = 11 : i64} {
  func.func @kernel(%arg0: i32, %arg1: memref<1x16x32xf32, #tpu.memory_space<vmem>>, %arg2: memref<1x16x32xf32, #tpu.memory_space<vmem>>, %arg3: memref<32x64xbf16, #tpu.memory_space<vmem>>, %arg4: memref<1x64xf32, #tpu.memory_space<vmem>>, %arg5: memref<32x32xbf16, #tpu.memory_space<vmem>>, %arg6: memref<1x32xf32, #tpu.memory_space<vmem>>, %arg7: memref<32x32xbf16, #tpu.memory_space<vmem>>, %arg8: memref<1x32xf32, #tpu.memory_space<vmem>>, %arg9: memref<32x64xbf16, #tpu.memory_space<vmem>>, %arg10: memref<1x64xf32, #tpu.memory_space<vmem>>, %arg11: memref<64x32xbf16, #tpu.memory_space<vmem>>, %arg12: memref<1x32xf32, #tpu.memory_space<vmem>>, %arg13: memref<1x32xf32, #tpu.memory_space<vmem>>, %arg14: memref<1x32xf32, #tpu.memory_space<vmem>>, %arg15: memref<1x32xf32, #tpu.memory_space<vmem>>, %arg16: memref<1x32xf32, #tpu.memory_space<vmem>>, %arg17: memref<1x16x32xf32, #tpu.memory_space<vmem>>, %arg18: memref<16x32xbf16, #tpu.memory_space<vmem>>) attributes {dimension_semantics = [#tpu.dimension_semantics<parallel>], iteration_bounds = array<i64: 2>, scalar_prefetch = 0 : i64, scratch_operands = 1 : i64, tpu.core_type = #tpu.core_type<tc>, window_params = [{transform_indices = @transform_0, window_bounds = array<i64: 1, 16, 32>}, {transform_indices = @transform_1, window_bounds = array<i64: 1, 16, 32>}, {pipeline_mode = #tpu.pipeline_mode<synchronous>, transform_indices = @transform_2, window_bounds = array<i64: 32, 64>}, {pipeline_mode = #tpu.pipeline_mode<synchronous>, transform_indices = @transform_3, window_bounds = array<i64: 1, 64>}, {pipeline_mode = #tpu.pipeline_mode<synchronous>, transform_indices = @transform_4, window_bounds = array<i64: 32, 32>}, {pipeline_mode = #tpu.pipeline_mode<synchronous>, transform_indices = @transform_5, window_bounds = array<i64: 1, 32>}, {pipeline_mode = #tpu.pipeline_mode<synchronous>, transform_indices = @transform_6, window_bounds = array<i64: 32, 32>}, {pipeline_mode = #tpu.pipeline_mode<synchronous>, transform_indices = @transform_7, window_bounds = array<i64: 1, 32>}, {pipeline_mode = #tpu.pipeline_mode<synchronous>, transform_indices = @transform_8, window_bounds = array<i64: 32, 64>}, {pipeline_mode = #tpu.pipeline_mode<synchronous>, transform_indices = @transform_9, window_bounds = array<i64: 1, 64>}, {pipeline_mode = #tpu.pipeline_mode<synchronous>, transform_indices = @transform_10, window_bounds = array<i64: 64, 32>}, {pipeline_mode = #tpu.pipeline_mode<synchronous>, transform_indices = @transform_11, window_bounds = array<i64: 1, 32>}, {pipeline_mode = #tpu.pipeline_mode<synchronous>, transform_indices = @transform_12, window_bounds = array<i64: 1, 32>}, {pipeline_mode = #tpu.pipeline_mode<synchronous>, transform_indices = @transform_13, window_bounds = array<i64: 1, 32>}, {pipeline_mode = #tpu.pipeline_mode<synchronous>, transform_indices = @transform_14, window_bounds = array<i64: 1, 32>}, {pipeline_mode = #tpu.pipeline_mode<synchronous>, transform_indices = @transform_15, window_bounds = array<i64: 1, 32>}, {transform_indices = @transform_16, window_bounds = array<i64: 1, 16, 32>}]} {
    %c0 = arith.constant 0 : index
    %c0_0 = arith.constant 0 : index
    %c0_1 = arith.constant 0 : index
    %0 = vector.load %arg1[%c0, %c0_0, %c0_1] : memref<1x16x32xf32, #tpu.memory_space<vmem>>, vector<1x16x32xf32>
    %1 = vector.shape_cast %0 : vector<1x16x32xf32> to vector<16x32xf32>
    %c0_2 = arith.constant 0 : index
    %c0_3 = arith.constant 0 : index
    %c0_4 = arith.constant 0 : index
    %2 = vector.load %arg2[%c0_2, %c0_3, %c0_4] : memref<1x16x32xf32, #tpu.memory_space<vmem>>, vector<1x16x32xf32>
    %3 = vector.shape_cast %2 : vector<1x16x32xf32> to vector<16x32xf32>
    %4 = arith.addf %1, %3 : vector<16x32xf32>
    %5 = arith.truncf %4 : vector<16x32xf32> to vector<16x32xbf16>
    %6 = arith.truncf %1 : vector<16x32xf32> to vector<16x32xbf16>
    %c0_5 = arith.constant 0 : index
    %c0_6 = arith.constant 0 : index
    %7 = vector.load %arg3[%c0_5, %c0_6] : memref<32x64xbf16, #tpu.memory_space<vmem>>, vector<32x64xbf16>
    %cst = arith.constant dense<0.000000e+00> : vector<16x64xf32>
    %8 = tpu.matmul %5, %7, %cst {dimension_numbers = #tpu.dot_dimension_numbers<[1], [0], [0], [1], [0, 0, 1, 1], [], []>} : vector<16x32xbf16>, vector<32x64xbf16>, vector<16x64xf32> -> vector<16x64xf32>
    %c0_7 = arith.constant 0 : index
    %c0_8 = arith.constant 0 : index
    %9 = vector.load %arg4[%c0_7, %c0_8] : memref<1x64xf32, #tpu.memory_space<vmem>>, vector<1x64xf32>
    %10 = vector.broadcast %9 : vector<1x64xf32> to vector<16x64xf32>
    %11 = arith.addf %8, %10 : vector<16x64xf32>
    %c0_9 = arith.constant 0 : index
    %c0_10 = arith.constant 0 : index
    %12 = vector.load %arg5[%c0_9, %c0_10] : memref<32x32xbf16, #tpu.memory_space<vmem>>, vector<32x32xbf16>
    %cst_11 = arith.constant dense<0.000000e+00> : vector<16x32xf32>
    %13 = tpu.matmul %6, %12, %cst_11 {dimension_numbers = #tpu.dot_dimension_numbers<[1], [0], [0], [1], [0, 0, 1, 1], [], []>} : vector<16x32xbf16>, vector<32x32xbf16>, vector<16x32xf32> -> vector<16x32xf32>
    %c0_12 = arith.constant 0 : index
    %c0_13 = arith.constant 0 : index
    %14 = vector.load %arg6[%c0_12, %c0_13] : memref<1x32xf32, #tpu.memory_space<vmem>>, vector<1x32xf32>
    %15 = vector.broadcast %14 : vector<1x32xf32> to vector<16x32xf32>
    %16 = arith.addf %13, %15 : vector<16x32xf32>
    %17 = vector.extract_strided_slice %11 {offsets = [0, 0], sizes = [16, 32], strides = [1, 1]} : vector<16x64xf32> to vector<16x32xf32>
    %18 = vector.extract_strided_slice %11 {offsets = [0, 32], sizes = [16, 32], strides = [1, 1]} : vector<16x64xf32> to vector<16x32xf32>
    %19 = vector.extract_strided_slice %17 {offsets = [0, 0], sizes = [16, 8], strides = [1, 1]} : vector<16x32xf32> to vector<16x8xf32>
    %20 = arith.truncf %19 : vector<16x8xf32> to vector<16x8xbf16>
    %21 = vector.extract_strided_slice %18 {offsets = [0, 0], sizes = [16, 8], strides = [1, 1]} : vector<16x32xf32> to vector<16x8xf32>
    %22 = arith.truncf %21 : vector<16x8xf32> to vector<16x8xbf16>
    %23 = vector.extract_strided_slice %16 {offsets = [0, 0], sizes = [16, 8], strides = [1, 1]} : vector<16x32xf32> to vector<16x8xf32>
    %24 = arith.truncf %23 : vector<16x8xf32> to vector<16x8xbf16>
    %cst_14 = arith.constant dense<0.000000e+00> : vector<16x16xf32>
    %25 = tpu.matmul %20, %22, %cst_14 {dimension_numbers = #tpu.dot_dimension_numbers<[1], [1], [0], [0], [0, 0, 1, 0], [], []>} : vector<16x8xbf16>, vector<16x8xbf16>, vector<16x16xf32> -> vector<16x16xf32>
    %cst_15 = arith.constant 0.353553385 : f32
    %26 = vector.broadcast %cst_15 : f32 to vector<16x16xf32>
    %27 = arith.mulf %25, %26 : vector<16x16xf32>
    %cst_16 = arith.constant dense<0xFF800000> : vector<16xf32>
    %28 = vector.multi_reduction <maximumf>, %27, %cst_16 [1] : vector<16x16xf32> to vector<16xf32>
    %29 = vector.shape_cast %28 : vector<16xf32> to vector<16x1xf32>
    %30 = vector.broadcast %29 : vector<16x1xf32> to vector<16x16xf32>
    %31 = arith.subf %27, %30 : vector<16x16xf32>
    %32 = math.exp %31 : vector<16x16xf32>
    %cst_17 = arith.constant dense<0.000000e+00> : vector<16xf32>
    %33 = vector.multi_reduction <add>, %32, %cst_17 [1] : vector<16x16xf32> to vector<16xf32>
    %34 = vector.shape_cast %33 : vector<16xf32> to vector<16x1xf32>
    %35 = tpu.reciprocal %34 {approx = true} : vector<16x1xf32> -> vector<16x1xf32>
    %36 = vector.broadcast %35 : vector<16x1xf32> to vector<16x16xf32>
    %37 = arith.mulf %32, %36 : vector<16x16xf32>
    %38 = arith.truncf %37 : vector<16x16xf32> to vector<16x16xbf16>
    %cst_18 = arith.constant dense<0.000000e+00> : vector<16x8xf32>
    %39 = tpu.matmul %38, %24, %cst_18 {dimension_numbers = #tpu.dot_dimension_numbers<[1], [0], [0], [1], [0, 0, 1, 1], [], []>} : vector<16x16xbf16>, vector<16x8xbf16>, vector<16x8xf32> -> vector<16x8xf32>
    %40 = arith.truncf %39 : vector<16x8xf32> to vector<16x8xbf16>
    %c0_19 = arith.constant 0 : index
    %c0_20 = arith.constant 0 : index
    %41 = vector.load %arg18[%c0_19, %c0_20] : memref<16x32xbf16, #tpu.memory_space<vmem>>, vector<16x8xbf16>
    tpu.vector_store %arg18[%c0_19, %c0_20], %40 {strides = array<i32>} : memref<16x32xbf16, #tpu.memory_space<vmem>>, vector<16x8xbf16>,
    %42 = vector.extract_strided_slice %17 {offsets = [0, 8], sizes = [16, 8], strides = [1, 1]} : vector<16x32xf32> to vector<16x8xf32>
    %43 = arith.truncf %42 : vector<16x8xf32> to vector<16x8xbf16>
    %44 = vector.extract_strided_slice %18 {offsets = [0, 8], sizes = [16, 8], strides = [1, 1]} : vector<16x32xf32> to vector<16x8xf32>
    %45 = arith.truncf %44 : vector<16x8xf32> to vector<16x8xbf16>
    %46 = vector.extract_strided_slice %16 {offsets = [0, 8], sizes = [16, 8], strides = [1, 1]} : vector<16x32xf32> to vector<16x8xf32>
    %47 = arith.truncf %46 : vector<16x8xf32> to vector<16x8xbf16>
    %cst_21 = arith.constant dense<0.000000e+00> : vector<16x16xf32>
    %48 = tpu.matmul %43, %45, %cst_21 {dimension_numbers = #tpu.dot_dimension_numbers<[1], [1], [0], [0], [0, 0, 1, 0], [], []>} : vector<16x8xbf16>, vector<16x8xbf16>, vector<16x16xf32> -> vector<16x16xf32>
    %cst_22 = arith.constant 0.353553385 : f32
    %49 = vector.broadcast %cst_22 : f32 to vector<16x16xf32>
    %50 = arith.mulf %48, %49 : vector<16x16xf32>
    %cst_23 = arith.constant dense<0xFF800000> : vector<16xf32>
    %51 = vector.multi_reduction <maximumf>, %50, %cst_23 [1] : vector<16x16xf32> to vector<16xf32>
    %52 = vector.shape_cast %51 : vector<16xf32> to vector<16x1xf32>
    %53 = vector.broadcast %52 : vector<16x1xf32> to vector<16x16xf32>
    %54 = arith.subf %50, %53 : vector<16x16xf32>
    %55 = math.exp %54 : vector<16x16xf32>
    %cst_24 = arith.constant dense<0.000000e+00> : vector<16xf32>
    %56 = vector.multi_reduction <add>, %55, %cst_24 [1] : vector<16x16xf32> to vector<16xf32>
    %57 = vector.shape_cast %56 : vector<16xf32> to vector<16x1xf32>
    %58 = tpu.reciprocal %57 {approx = true} : vector<16x1xf32> -> vector<16x1xf32>
    %59 = vector.broadcast %58 : vector<16x1xf32> to vector<16x16xf32>
    %60 = arith.mulf %55, %59 : vector<16x16xf32>
    %61 = arith.truncf %60 : vector<16x16xf32> to vector<16x16xbf16>
    %cst_25 = arith.constant dense<0.000000e+00> : vector<16x8xf32>
    %62 = tpu.matmul %61, %47, %cst_25 {dimension_numbers = #tpu.dot_dimension_numbers<[1], [0], [0], [1], [0, 0, 1, 1], [], []>} : vector<16x16xbf16>, vector<16x8xbf16>, vector<16x8xf32> -> vector<16x8xf32>
    %63 = arith.truncf %62 : vector<16x8xf32> to vector<16x8xbf16>
    %c0_26 = arith.constant 0 : index
    %c8 = arith.constant 8 : index
    %64 = vector.load %arg18[%c0_26, %c8] : memref<16x32xbf16, #tpu.memory_space<vmem>>, vector<16x8xbf16>
    tpu.vector_store %arg18[%c0_26, %c8], %63 {strides = array<i32>} : memref<16x32xbf16, #tpu.memory_space<vmem>>, vector<16x8xbf16>,
    %65 = vector.extract_strided_slice %17 {offsets = [0, 16], sizes = [16, 8], strides = [1, 1]} : vector<16x32xf32> to vector<16x8xf32>
    %66 = arith.truncf %65 : vector<16x8xf32> to vector<16x8xbf16>
    %67 = vector.extract_strided_slice %18 {offsets = [0, 16], sizes = [16, 8], strides = [1, 1]} : vector<16x32xf32> to vector<16x8xf32>
    %68 = arith.truncf %67 : vector<16x8xf32> to vector<16x8xbf16>
    %69 = vector.extract_strided_slice %16 {offsets = [0, 16], sizes = [16, 8], strides = [1, 1]} : vector<16x32xf32> to vector<16x8xf32>
    %70 = arith.truncf %69 : vector<16x8xf32> to vector<16x8xbf16>
    %cst_27 = arith.constant dense<0.000000e+00> : vector<16x16xf32>
    %71 = tpu.matmul %66, %68, %cst_27 {dimension_numbers = #tpu.dot_dimension_numbers<[1], [1], [0], [0], [0, 0, 1, 0], [], []>} : vector<16x8xbf16>, vector<16x8xbf16>, vector<16x16xf32> -> vector<16x16xf32>
    %cst_28 = arith.constant 0.353553385 : f32
    %72 = vector.broadcast %cst_28 : f32 to vector<16x16xf32>
    %73 = arith.mulf %71, %72 : vector<16x16xf32>
    %cst_29 = arith.constant dense<0xFF800000> : vector<16xf32>
    %74 = vector.multi_reduction <maximumf>, %73, %cst_29 [1] : vector<16x16xf32> to vector<16xf32>
    %75 = vector.shape_cast %74 : vector<16xf32> to vector<16x1xf32>
    %76 = vector.broadcast %75 : vector<16x1xf32> to vector<16x16xf32>
    %77 = arith.subf %73, %76 : vector<16x16xf32>
    %78 = math.exp %77 : vector<16x16xf32>
    %cst_30 = arith.constant dense<0.000000e+00> : vector<16xf32>
    %79 = vector.multi_reduction <add>, %78, %cst_30 [1] : vector<16x16xf32> to vector<16xf32>
    %80 = vector.shape_cast %79 : vector<16xf32> to vector<16x1xf32>
    %81 = tpu.reciprocal %80 {approx = true} : vector<16x1xf32> -> vector<16x1xf32>
    %82 = vector.broadcast %81 : vector<16x1xf32> to vector<16x16xf32>
    %83 = arith.mulf %78, %82 : vector<16x16xf32>
    %84 = arith.truncf %83 : vector<16x16xf32> to vector<16x16xbf16>
    %cst_31 = arith.constant dense<0.000000e+00> : vector<16x8xf32>
    %85 = tpu.matmul %84, %70, %cst_31 {dimension_numbers = #tpu.dot_dimension_numbers<[1], [0], [0], [1], [0, 0, 1, 1], [], []>} : vector<16x16xbf16>, vector<16x8xbf16>, vector<16x8xf32> -> vector<16x8xf32>
    %86 = arith.truncf %85 : vector<16x8xf32> to vector<16x8xbf16>
    %c0_32 = arith.constant 0 : index
    %c16 = arith.constant 16 : index
    %87 = vector.load %arg18[%c0_32, %c16] : memref<16x32xbf16, #tpu.memory_space<vmem>>, vector<16x8xbf16>
    tpu.vector_store %arg18[%c0_32, %c16], %86 {strides = array<i32>} : memref<16x32xbf16, #tpu.memory_space<vmem>>, vector<16x8xbf16>,
    %88 = vector.extract_strided_slice %17 {offsets = [0, 24], sizes = [16, 8], strides = [1, 1]} : vector<16x32xf32> to vector<16x8xf32>
    %89 = arith.truncf %88 : vector<16x8xf32> to vector<16x8xbf16>
    %90 = vector.extract_strided_slice %18 {offsets = [0, 24], sizes = [16, 8], strides = [1, 1]} : vector<16x32xf32> to vector<16x8xf32>
    %91 = arith.truncf %90 : vector<16x8xf32> to vector<16x8xbf16>
    %92 = vector.extract_strided_slice %16 {offsets = [0, 24], sizes = [16, 8], strides = [1, 1]} : vector<16x32xf32> to vector<16x8xf32>
    %93 = arith.truncf %92 : vector<16x8xf32> to vector<16x8xbf16>
    %cst_33 = arith.constant dense<0.000000e+00> : vector<16x16xf32>
    %94 = tpu.matmul %89, %91, %cst_33 {dimension_numbers = #tpu.dot_dimension_numbers<[1], [1], [0], [0], [0, 0, 1, 0], [], []>} : vector<16x8xbf16>, vector<16x8xbf16>, vector<16x16xf32> -> vector<16x16xf32>
    %cst_34 = arith.constant 0.353553385 : f32
    %95 = vector.broadcast %cst_34 : f32 to vector<16x16xf32>
    %96 = arith.mulf %94, %95 : vector<16x16xf32>
    %cst_35 = arith.constant dense<0xFF800000> : vector<16xf32>
    %97 = vector.multi_reduction <maximumf>, %96, %cst_35 [1] : vector<16x16xf32> to vector<16xf32>
    %98 = vector.shape_cast %97 : vector<16xf32> to vector<16x1xf32>
    %99 = vector.broadcast %98 : vector<16x1xf32> to vector<16x16xf32>
    %100 = arith.subf %96, %99 : vector<16x16xf32>
    %101 = math.exp %100 : vector<16x16xf32>
    %cst_36 = arith.constant dense<0.000000e+00> : vector<16xf32>
    %102 = vector.multi_reduction <add>, %101, %cst_36 [1] : vector<16x16xf32> to vector<16xf32>
    %103 = vector.shape_cast %102 : vector<16xf32> to vector<16x1xf32>
    %104 = tpu.reciprocal %103 {approx = true} : vector<16x1xf32> -> vector<16x1xf32>
    %105 = vector.broadcast %104 : vector<16x1xf32> to vector<16x16xf32>
    %106 = arith.mulf %101, %105 : vector<16x16xf32>
    %107 = arith.truncf %106 : vector<16x16xf32> to vector<16x16xbf16>
    %cst_37 = arith.constant dense<0.000000e+00> : vector<16x8xf32>
    %108 = tpu.matmul %107, %93, %cst_37 {dimension_numbers = #tpu.dot_dimension_numbers<[1], [0], [0], [1], [0, 0, 1, 1], [], []>} : vector<16x16xbf16>, vector<16x8xbf16>, vector<16x8xf32> -> vector<16x8xf32>
    %109 = arith.truncf %108 : vector<16x8xf32> to vector<16x8xbf16>
    %c0_38 = arith.constant 0 : index
    %c24 = arith.constant 24 : index
    %110 = vector.load %arg18[%c0_38, %c24] : memref<16x32xbf16, #tpu.memory_space<vmem>>, vector<16x8xbf16>
    tpu.vector_store %arg18[%c0_38, %c24], %109 {strides = array<i32>} : memref<16x32xbf16, #tpu.memory_space<vmem>>, vector<16x8xbf16>,
    %c0_39 = arith.constant 0 : index
    %c0_40 = arith.constant 0 : index
    %111 = vector.load %arg18[%c0_39, %c0_40] : memref<16x32xbf16, #tpu.memory_space<vmem>>, vector<16x32xbf16>
    %c0_41 = arith.constant 0 : index
    %c0_42 = arith.constant 0 : index
    %112 = vector.load %arg7[%c0_41, %c0_42] : memref<32x32xbf16, #tpu.memory_space<vmem>>, vector<32x32xbf16>
    %cst_43 = arith.constant dense<0.000000e+00> : vector<16x32xf32>
    %113 = tpu.matmul %111, %112, %cst_43 {dimension_numbers = #tpu.dot_dimension_numbers<[1], [0], [0], [1], [0, 0, 1, 1], [], []>} : vector<16x32xbf16>, vector<32x32xbf16>, vector<16x32xf32> -> vector<16x32xf32>
    %c0_44 = arith.constant 0 : index
    %c0_45 = arith.constant 0 : index
    %114 = vector.load %arg8[%c0_44, %c0_45] : memref<1x32xf32, #tpu.memory_space<vmem>>, vector<1x32xf32>
    %115 = vector.broadcast %114 : vector<1x32xf32> to vector<16x32xf32>
    %116 = arith.addf %113, %115 : vector<16x32xf32>
    %117 = arith.addf %1, %116 : vector<16x32xf32>
    %c0_46 = arith.constant 0 : index
    %c0_47 = arith.constant 0 : index
    %118 = vector.load %arg13[%c0_46, %c0_47] : memref<1x32xf32, #tpu.memory_space<vmem>>, vector<1x32xf32>
    %c0_48 = arith.constant 0 : index
    %c0_49 = arith.constant 0 : index
    %119 = vector.load %arg14[%c0_48, %c0_49] : memref<1x32xf32, #tpu.memory_space<vmem>>, vector<1x32xf32>
    %cst_50 = arith.constant dense<0.000000e+00> : vector<16xf32>
    %120 = vector.multi_reduction <add>, %117, %cst_50 [1] : vector<16x32xf32> to vector<16xf32>
    %121 = vector.shape_cast %120 : vector<16xf32> to vector<16x1xf32>
    %cst_51 = arith.constant 3.200000e+01 : f32
    %122 = vector.broadcast %cst_51 : f32 to vector<16x1xf32>
    %123 = arith.divf %121, %122 : vector<16x1xf32>
    %124 = vector.broadcast %123 : vector<16x1xf32> to vector<16x32xf32>
    %125 = arith.subf %117, %124 : vector<16x32xf32>
    %126 = arith.mulf %125, %125 : vector<16x32xf32>
    %cst_52 = arith.constant dense<0.000000e+00> : vector<16xf32>
    %127 = vector.multi_reduction <add>, %126, %cst_52 [1] : vector<16x32xf32> to vector<16xf32>
    %128 = vector.shape_cast %127 : vector<16xf32> to vector<16x1xf32>
    %cst_53 = arith.constant 3.200000e+01 : f32
    %129 = vector.broadcast %cst_53 : f32 to vector<16x1xf32>
    %130 = arith.divf %128, %129 : vector<16x1xf32>
    %131 = vector.broadcast %123 : vector<16x1xf32> to vector<16x32xf32>
    %132 = arith.subf %117, %131 : vector<16x32xf32>
    %cst_54 = arith.constant 9.99999974E-6 : f32
    %133 = vector.broadcast %cst_54 : f32 to vector<16x1xf32>
    %134 = arith.addf %130, %133 : vector<16x1xf32>
    %135 = math.rsqrt %134 : vector<16x1xf32>
    %136 = vector.broadcast %135 : vector<16x1xf32> to vector<16x32xf32>
    %137 = arith.mulf %132, %136 : vector<16x32xf32>
    %138 = vector.broadcast %118 : vector<1x32xf32> to vector<16x32xf32>
    %139 = arith.mulf %137, %138 : vector<16x32xf32>
    %140 = vector.broadcast %119 : vector<1x32xf32> to vector<16x32xf32>
    %141 = arith.addf %139, %140 : vector<16x32xf32>
    %142 = arith.truncf %141 : vector<16x32xf32> to vector<16x32xbf16>
    %c0_55 = arith.constant 0 : index
    %c0_56 = arith.constant 0 : index
    %143 = vector.load %arg9[%c0_55, %c0_56] : memref<32x64xbf16, #tpu.memory_space<vmem>>, vector<32x64xbf16>
    %cst_57 = arith.constant dense<0.000000e+00> : vector<16x64xf32>
    %144 = tpu.matmul %142, %143, %cst_57 {dimension_numbers = #tpu.dot_dimension_numbers<[1], [0], [0], [1], [0, 0, 1, 1], [], []>} : vector<16x32xbf16>, vector<32x64xbf16>, vector<16x64xf32> -> vector<16x64xf32>
    %c0_58 = arith.constant 0 : index
    %c0_59 = arith.constant 0 : index
    %145 = vector.load %arg10[%c0_58, %c0_59] : memref<1x64xf32, #tpu.memory_space<vmem>>, vector<1x64xf32>
    %146 = vector.broadcast %145 : vector<1x64xf32> to vector<16x64xf32>
    %147 = arith.addf %144, %146 : vector<16x64xf32>
    %cst_60 = arith.constant 5.000000e-01 : f32
    %148 = vector.broadcast %cst_60 : f32 to vector<16x64xf32>
    %149 = arith.mulf %148, %147 : vector<16x64xf32>
    %cst_61 = arith.constant 0.707106769 : f32
    %150 = vector.broadcast %cst_61 : f32 to vector<16x64xf32>
    %151 = arith.mulf %147, %150 : vector<16x64xf32>
    %152 = math.erf %151 : vector<16x64xf32>
    %cst_62 = arith.constant 1.000000e+00 : f32
    %153 = vector.broadcast %cst_62 : f32 to vector<16x64xf32>
    %154 = arith.addf %153, %152 : vector<16x64xf32>
    %155 = arith.mulf %149, %154 : vector<16x64xf32>
    %156 = arith.truncf %155 : vector<16x64xf32> to vector<16x64xbf16>
    %c0_63 = arith.constant 0 : index
    %c0_64 = arith.constant 0 : index
    %157 = vector.load %arg11[%c0_63, %c0_64] : memref<64x32xbf16, #tpu.memory_space<vmem>>, vector<64x32xbf16>
    %cst_65 = arith.constant dense<0.000000e+00> : vector<16x32xf32>
    %158 = tpu.matmul %156, %157, %cst_65 {dimension_numbers = #tpu.dot_dimension_numbers<[1], [0], [0], [1], [0, 0, 1, 1], [], []>} : vector<16x64xbf16>, vector<64x32xbf16>, vector<16x32xf32> -> vector<16x32xf32>
    %c0_66 = arith.constant 0 : index
    %c0_67 = arith.constant 0 : index
    %159 = vector.load %arg12[%c0_66, %c0_67] : memref<1x32xf32, #tpu.memory_space<vmem>>, vector<1x32xf32>
    %160 = vector.broadcast %159 : vector<1x32xf32> to vector<16x32xf32>
    %161 = arith.addf %158, %160 : vector<16x32xf32>
    %162 = arith.addf %141, %161 : vector<16x32xf32>
    %c0_68 = arith.constant 0 : index
    %c0_69 = arith.constant 0 : index
    %163 = vector.load %arg15[%c0_68, %c0_69] : memref<1x32xf32, #tpu.memory_space<vmem>>, vector<1x32xf32>
    %c0_70 = arith.constant 0 : index
    %c0_71 = arith.constant 0 : index
    %164 = vector.load %arg16[%c0_70, %c0_71] : memref<1x32xf32, #tpu.memory_space<vmem>>, vector<1x32xf32>
    %cst_72 = arith.constant dense<0.000000e+00> : vector<16xf32>
    %165 = vector.multi_reduction <add>, %162, %cst_72 [1] : vector<16x32xf32> to vector<16xf32>
    %166 = vector.shape_cast %165 : vector<16xf32> to vector<16x1xf32>
    %cst_73 = arith.constant 3.200000e+01 : f32
    %167 = vector.broadcast %cst_73 : f32 to vector<16x1xf32>
    %168 = arith.divf %166, %167 : vector<16x1xf32>
    %169 = vector.broadcast %168 : vector<16x1xf32> to vector<16x32xf32>
    %170 = arith.subf %162, %169 : vector<16x32xf32>
    %171 = arith.mulf %170, %170 : vector<16x32xf32>
    %cst_74 = arith.constant dense<0.000000e+00> : vector<16xf32>
    %172 = vector.multi_reduction <add>, %171, %cst_74 [1] : vector<16x32xf32> to vector<16xf32>
    %173 = vector.shape_cast %172 : vector<16xf32> to vector<16x1xf32>
    %cst_75 = arith.constant 3.200000e+01 : f32
    %174 = vector.broadcast %cst_75 : f32 to vector<16x1xf32>
    %175 = arith.divf %173, %174 : vector<16x1xf32>
    %176 = vector.broadcast %168 : vector<16x1xf32> to vector<16x32xf32>
    %177 = arith.subf %162, %176 : vector<16x32xf32>
    %cst_76 = arith.constant 9.99999974E-6 : f32
    %178 = vector.broadcast %cst_76 : f32 to vector<16x1xf32>
    %179 = arith.addf %175, %178 : vector<16x1xf32>
    %180 = math.rsqrt %179 : vector<16x1xf32>
    %181 = vector.broadcast %180 : vector<16x1xf32> to vector<16x32xf32>
    %182 = arith.mulf %177, %181 : vector<16x32xf32>
    %183 = vector.broadcast %163 : vector<1x32xf32> to vector<16x32xf32>
    %184 = arith.mulf %182, %183 : vector<16x32xf32>
    %185 = vector.broadcast %164 : vector<1x32xf32> to vector<16x32xf32>
    %186 = arith.addf %184, %185 : vector<16x32xf32>
    %c0_77 = arith.constant 0 : index
    %c0_78 = arith.constant 0 : index
    %c0_79 = arith.constant 0 : index
    %187 = vector.load %arg17[%c0_77, %c0_78, %c0_79] : memref<1x16x32xf32, #tpu.memory_space<vmem>>, vector<1x16x32xf32>
    %188 = vector.shape_cast %187 : vector<1x16x32xf32> to vector<16x32xf32>
    %189 = vector.shape_cast %186 : vector<16x32xf32> to vector<1x16x32xf32>
    tpu.vector_store %arg17[%c0_77, %c0_78, %c0_79], %189 {strides = array<i32>} : memref<1x16x32xf32, #tpu.memory_space<vmem>>, vector<1x16x32xf32>,
    return
  }
  func.func @transform_0(%arg0: i32) -> (i32, i32, i32) {
    %c0_i32 = arith.constant 0 : i32
    %c0_i32_0 = arith.constant 0 : i32
    %c0_i32_1 = arith.constant 0 : i32
    return %arg0, %c0_i32, %c0_i32_0 : i32, i32, i32
  }
  func.func @transform_1(%arg0: i32) -> (i32, i32, i32) {
    %c0_i32 = arith.constant 0 : i32
    %c0_i32_0 = arith.constant 0 : i32
    %c0_i32_1 = arith.constant 0 : i32
    return %arg0, %c0_i32, %c0_i32_0 : i32, i32, i32
  }
  func.func @transform_2(%arg0: i32) -> (i32, i32) {
    %c0_i32 = arith.constant 0 : i32
    %c0_i32_0 = arith.constant 0 : i32
    %c0_i32_1 = arith.constant 0 : i32
    return %c0_i32, %c0_i32_0 : i32, i32
  }
  func.func @transform_3(%arg0: i32) -> (i32, i32) {
    %c0_i32 = arith.constant 0 : i32
    %c0_i32_0 = arith.constant 0 : i32
    %c0_i32_1 = arith.constant 0 : i32
    return %c0_i32, %c0_i32_0 : i32, i32
  }
  func.func @transform_4(%arg0: i32) -> (i32, i32) {
    %c0_i32 = arith.constant 0 : i32
    %c0_i32_0 = arith.constant 0 : i32
    %c0_i32_1 = arith.constant 0 : i32
    return %c0_i32, %c0_i32_0 : i32, i32
  }
  func.func @transform_5(%arg0: i32) -> (i32, i32) {
    %c0_i32 = arith.constant 0 : i32
    %c0_i32_0 = arith.constant 0 : i32
    %c0_i32_1 = arith.constant 0 : i32
    return %c0_i32, %c0_i32_0 : i32, i32
  }
  func.func @transform_6(%arg0: i32) -> (i32, i32) {
    %c0_i32 = arith.constant 0 : i32
    %c0_i32_0 = arith.constant 0 : i32
    %c0_i32_1 = arith.constant 0 : i32
    return %c0_i32, %c0_i32_0 : i32, i32
  }
  func.func @transform_7(%arg0: i32) -> (i32, i32) {
    %c0_i32 = arith.constant 0 : i32
    %c0_i32_0 = arith.constant 0 : i32
    %c0_i32_1 = arith.constant 0 : i32
    return %c0_i32, %c0_i32_0 : i32, i32
  }
  func.func @transform_8(%arg0: i32) -> (i32, i32) {
    %c0_i32 = arith.constant 0 : i32
    %c0_i32_0 = arith.constant 0 : i32
    %c0_i32_1 = arith.constant 0 : i32
    return %c0_i32, %c0_i32_0 : i32, i32
  }
  func.func @transform_9(%arg0: i32) -> (i32, i32) {
    %c0_i32 = arith.constant 0 : i32
    %c0_i32_0 = arith.constant 0 : i32
    %c0_i32_1 = arith.constant 0 : i32
    return %c0_i32, %c0_i32_0 : i32, i32
  }
  func.func @transform_10(%arg0: i32) -> (i32, i32) {
    %c0_i32 = arith.constant 0 : i32
    %c0_i32_0 = arith.constant 0 : i32
    %c0_i32_1 = arith.constant 0 : i32
    return %c0_i32, %c0_i32_0 : i32, i32
  }
  func.func @transform_11(%arg0: i32) -> (i32, i32) {
    %c0_i32 = arith.constant 0 : i32
    %c0_i32_0 = arith.constant 0 : i32
    %c0_i32_1 = arith.constant 0 : i32
    return %c0_i32, %c0_i32_0 : i32, i32
  }
  func.func @transform_12(%arg0: i32) -> (i32, i32) {
    %c0_i32 = arith.constant 0 : i32
    %c0_i32_0 = arith.constant 0 : i32
    %c0_i32_1 = arith.constant 0 : i32
    return %c0_i32, %c0_i32_0 : i32, i32
  }
  func.func @transform_13(%arg0: i32) -> (i32, i32) {
    %c0_i32 = arith.constant 0 : i32
    %c0_i32_0 = arith.constant 0 : i32
    %c0_i32_1 = arith.constant 0 : i32
    return %c0_i32, %c0_i32_0 : i32, i32
  }
  func.func @transform_14(%arg0: i32) -> (i32, i32) {
    %c0_i32 = arith.constant 0 : i32
    %c0_i32_0 = arith.constant 0 : i32
    %c0_i32_1 = arith.constant 0 : i32
    return %c0_i32, %c0_i32_0 : i32, i32
  }
  func.func @transform_15(%arg0: i32) -> (i32, i32) {
    %c0_i32 = arith.constant 0 : i32
    %c0_i32_0 = arith.constant 0 : i32
    %c0_i32_1 = arith.constant 0 : i32
    return %c0_i32, %c0_i32_0 : i32, i32
  }
  func.func @transform_16(%arg0: i32) -> (i32, i32, i32) {
    %c0_i32 = arith.constant 0 : i32
    %c0_i32_0 = arith.constant 0 : i32
    %c0_i32_1 = arith.constant 0 : i32
    return %arg0, %c0_i32, %c0_i32_0 : i32, i32, i32
  }
}

</mosaic_0001>

<llo_original>
// kernel: tpu_custom_call.1
$region0: #{tpu_custom_call.1}
  #allocation0 [shape = 'u32[]', space=smem, size = 0x4, offset = 0x4, fixed_abs, tag = 'smem constant byte address 0x4 - core index']
  #allocation1 [shape = 'u32[72,128]{1,0:T(1,128)}', space=vmem, size = 0x9000, scoped, tag = 'internal scratch']
  #allocation2 [shape = 'bf16[16,32]{1,0:T(8,128)(2,1)}', space=vmem, size = 0x1000, scoped, tag = 'scratch operand']
  %s0 = inlined_call_operand.vmem [shape: f32[2,16,32], index: 0, kind: input, shape index: {}]
  %s1 = inlined_call_operand.hbm [shape: f32[2,16,32], index: 1, kind: input, shape index: {}]
  %s2 = inlined_call_operand.vmem [shape: bf16[32,64], index: 2, kind: input, shape index: {}]
  %s3 = inlined_call_operand.vmem [shape: f32[1,64], index: 3, kind: input, shape index: {}]
  %s4 = inlined_call_operand.hbm [shape: bf16[32,32], index: 4, kind: input, shape index: {}]
  %s5 = inlined_call_operand.vmem [shape: f32[1,32], index: 5, kind: input, shape index: {}]
  %s6 = inlined_call_operand.hbm [shape: bf16[32,32], index: 6, kind: input, shape index: {}]
  %s7 = inlined_call_operand.vmem [shape: f32[1,32], index: 7, kind: input, shape index: {}]
  %s8 = inlined_call_operand.hbm [shape: bf16[32,64], index: 8, kind: input, shape index: {}]
  %s9 = inlined_call_operand.vmem [shape: f32[1,64], index: 9, kind: input, shape index: {}]
  %s10 = inlined_call_operand.vmem [shape: bf16[64,32], index: 10, kind: input, shape index: {}]
  %s11 = inlined_call_operand.vmem [shape: f32[1,32], index: 11, kind: input, shape index: {}]
  %s12 = inlined_call_operand.vmem [shape: f32[1,32], index: 12, kind: input, shape index: {}]
  %s13 = inlined_call_operand.vmem [shape: f32[1,32], index: 13, kind: input, shape index: {}]
  %s14 = inlined_call_operand.vmem [shape: f32[1,32], index: 14, kind: input, shape index: {}]
  %s15 = inlined_call_operand.vmem [shape: f32[1,32], index: 15, kind: input, shape index: {}]
  %s16 = inlined_call_operand.hbm [shape: f32[2,16,32], index: 16, kind: output, shape index: {}]
  %s17 = sld [smem:[#allocation0]]
  $region113: #{tpu_custom_call.1} parent=0
    _
  %s19 = ssub.s32 1, %s17
  %s20 = scalar_select 0, %s19, %s17
  $region1: #{tpu_custom_call.1} parent=0
    #allocation3 [shape = 'u8[16384]{0}', space=vmem, size = 0x4000, scoped, tag = 'input window, operand 1']
    #allocation4 [shape = 's32[2]{0}', space=sflag, size = 0x8, scoped, tag = 'scoped memory for tpu_custom_call.1']
    #allocation5 [shape = 's32[2]{0}', space=sflag, size = 0x8, scoped, tag = 'scoped memory for tpu_custom_call.1']
    #allocation6 [shape = 'u8[8192]{0}', space=vmem, size = 0x2000, scoped, tag = 'input window, operand 4, single buffered']
    #allocation7 [shape = 's32[1]{0}', space=sflag, size = 0x4, scoped, tag = 'scoped memory for tpu_custom_call.1']
    #allocation8 [shape = 'u8[8192]{0}', space=vmem, size = 0x2000, scoped, tag = 'input window, operand 6, single buffered']
    #allocation9 [shape = 'u8[8192]{0}', space=vmem, size = 0x2000, scoped, tag = 'input window, operand 8, single buffered']
    #allocation10 [shape = 's32[1]{0}', space=sflag, size = 0x4, scoped, tag = 'scoped memory for tpu_custom_call.1']
    #allocation11 [shape = 'u8[16384]{0}', space=vmem, size = 0x4000, scoped, tag = 'output window, operand 0']
    %21 = vsyncpa [#allocation4], 0
    %s22 = scalar_lea.sflag [#allocation4], 1
    %23 = vsyncpa %s22, 0
    %24 = vsyncpa [#allocation7], 0
    %25 = vsyncpa [#allocation10], 0
    %26 = vsyncpa [#allocation5], 0
    %s27 = scalar_lea.sflag [#allocation5], 1
    %28 = vsyncpa %s27, 0
    loop: start=0, step=1, limit=4
    $region2: #{tpu_custom_call.1} parent=1 // loop_pre_header
      _
    $region3: #{tpu_custom_call.1} parent=1 // loop_header
      %s30 = sphi 0, %s34
      %p31 = scmp.ge.s32.totalorder %s30, 4
      %s40 = sphi 0, %s42
      %s43 = sphi 0, %s40
      %s44 = sphi 0, %s43
      %s60 = sphi 0, %s44
      %s66 = sphi 0, %s68
      %s69 = sphi 0, %s66
      %s70 = sphi 0, %s69
      %s86 = sphi 0, %s70
      %s90 = sphi 0, %s90
      %s92 = sphi 0, %s90
      %s93 = sphi 0, %s92
      %s107 = sphi 0, %s93
      %s111 = sphi 0, %s111
      %s113 = sphi 0, %s111
      %s114 = sphi 0, %s113
      %s128 = sphi 0, %s114
      %s132 = sphi 0, %s132
      %s134 = sphi 0, %s132
      %s135 = sphi 0, %s134
      %s149 = sphi 0, %s135
      %s153 = sphi 0, %s153
      %s155 = sphi 0, %s153
      %s156 = sphi 0, %s155
      %s170 = sphi 0, %s156
      %s174 = sphi 0, %s174
      %s176 = sphi 0, %s174
      %s177 = sphi 0, %s176
      %s191 = sphi 0, %s177
      %s195 = sphi 0, %s195
      %s197 = sphi 0, %s195
      %s198 = sphi 0, %s197
      %s212 = sphi 0, %s198
      %s216 = sphi 0, %s216
      %s218 = sphi 0, %s216
      %s219 = sphi 0, %s218
      %s233 = sphi 0, %s219
      %s237 = sphi 0, %s237
      %s239 = sphi 0, %s237
      %s240 = sphi 0, %s239
      %s254 = sphi 0, %s240
      %s258 = sphi 0, %s258
      %s260 = sphi 0, %s258
      %s261 = sphi 0, %s260
      %s275 = sphi 0, %s261
      %s279 = sphi 0, %s279
      %s281 = sphi 0, %s279
      %s282 = sphi 0, %s281
      %s296 = sphi 0, %s282
      %s300 = sphi 0, %s300
      %s302 = sphi 0, %s300
      %s303 = sphi 0, %s302
      %s317 = sphi 0, %s303
      %s321 = sphi 0, %s321
      %s323 = sphi 0, %s321
      %s324 = sphi 0, %s323
      %s338 = sphi 0, %s324
      %s342 = sphi 0, %s342
      %s344 = sphi 0, %s342
      %s345 = sphi 0, %s344
      %s359 = sphi 0, %s345
      %s363 = sphi 0, %s363
      %s365 = sphi 0, %s363
      %s366 = sphi 0, %s365
      %s380 = sphi 0, %s366
      %s386 = sphi 0, %s388
      %s389 = sphi 0, %s386
      %s390 = sphi 0, %s389
      %s406 = sphi 0, %s390
    $region4: #{tpu_custom_call.1} parent=1 // loop_header_branch
      %33 = sbr.rel (%p31) target = $region8
    $region5: #{tpu_custom_call.1} parent=1 // loop_body
      %s35 = ssub.s32 %s30, 1
      %s36 = ssub.s32 %s30, 2
      %s37 = sadd.s32 %s30, 1
      %s38 = ssub.s32 %s30, %s37
      %p39 = scmp.eq.s32.totalorder %s38, 0
      %s41 = sadd.s32 %s40, 1
      %s42 = scalar_select %p39, %s40, %s41
      %p45 = pneg %p39
      %p46 = scmp.eq.s32.totalorder %s30, 1
      %p47 = por %p45, %p46
      %p48 = scmp.ne.s32.totalorder %s40, %s43
      %p49 = scmp.eq.s32.totalorder %s30, 0
      %p50 = por %p48, %p49
      %p51 = scmp.ne.s32.totalorder %s40, %s43
      %p52 = scmp.eq.s32.totalorder %s35, 1
      %p53 = por %p51, %p52
      %p54 = scmp.ne.s32.totalorder %s43, %s44
      %p55 = scmp.eq.s32.totalorder %s35, 0
      %p56 = por %p54, %p55
      %p57 = scmp.ne.s32.totalorder %s43, %s44
      %p58 = scmp.eq.s32.totalorder %s36, 1
      %p59 = por %p57, %p58
      %p61 = scmp.ne.s32.totalorder %s44, %s60
      %p62 = scmp.eq.s32.totalorder %s36, 0
      %p63 = por %p61, %p62
      %s64 = ssub.s32 %s30, %s37
      %p65 = scmp.eq.s32.totalorder %s64, 0
      %s67 = sadd.s32 %s66, 1
      %s68 = scalar_select %p65, %s66, %s67
      %p71 = pneg %p65
      %p72 = scmp.eq.s32.totalorder %s30, 1
      %p73 = por %p71, %p72
      %p74 = scmp.ne.s32.totalorder %s66, %s69
      %p75 = scmp.eq.s32.totalorder %s30, 0
      %p76 = por %p74, %p75
      %p77 = scmp.ne.s32.totalorder %s66, %s69
      %p78 = scmp.eq.s32.totalorder %s35, 1
      %p79 = por %p77, %p78
      %p80 = scmp.ne.s32.totalorder %s69, %s70
      %p81 = scmp.eq.s32.totalorder %s35, 0
      %p82 = por %p80, %p81
      %p83 = scmp.ne.s32.totalorder %s69, %s70
      %p84 = scmp.eq.s32.totalorder %s36, 1
      %p85 = por %p83, %p84
      %p87 = scmp.ne.s32.totalorder %s70, %s86
      %p88 = scmp.eq.s32.totalorder %s36, 0
      %p89 = por %p87, %p88
      %s91 = sadd.s32 %s90, 1
      %p94 = scmp.eq.s32.totalorder %s30, 1
      %p95 = scmp.ne.s32.totalorder %s90, %s92
      %p96 = scmp.eq.s32.totalorder %s30, 0
      %p97 = por %p95, %p96
      %p98 = scmp.ne.s32.totalorder %s90, %s92
      %p99 = scmp.eq.s32.totalorder %s35, 1
      %p100 = por %p98, %p99
      %p101 = scmp.ne.s32.totalorder %s92, %s93
      %p102 = scmp.eq.s32.totalorder %s35, 0
      %p103 = por %p101, %p102
      %p104 = scmp.ne.s32.totalorder %s92, %s93
      %p105 = scmp.eq.s32.totalorder %s36, 1
      %p106 = por %p104, %p105
      %p108 = scmp.ne.s32.totalorder %s93, %s107
      %p109 = scmp.eq.s32.totalorder %s36, 0
      %p110 = por %p108, %p109
      %s112 = sadd.s32 %s111, 1
      %p115 = scmp.eq.s32.totalorder %s30, 1
      %p116 = scmp.ne.s32.totalorder %s111, %s113
      %p117 = scmp.eq.s32.totalorder %s30, 0
      %p118 = por %p116, %p117
      %p119 = scmp.ne.s32.totalorder %s111, %s113
      %p120 = scmp.eq.s32.totalorder %s35, 1
      %p121 = por %p119, %p120
      %p122 = scmp.ne.s32.totalorder %s113, %s114
      %p123 = scmp.eq.s32.totalorder %s35, 0
      %p124 = por %p122, %p123
      %p125 = scmp.ne.s32.totalorder %s113, %s114
      %p126 = scmp.eq.s32.totalorder %s36, 1
      %p127 = por %p125, %p126
      %p129 = scmp.ne.s32.totalorder %s114, %s128
      %p130 = scmp.eq.s32.totalorder %s36, 0
      %p131 = por %p129, %p130
      %s133 = sadd.s32 %s132, 1
      %p136 = scmp.eq.s32.totalorder %s30, 1
      %p137 = scmp.ne.s32.totalorder %s132, %s134
      %p138 = scmp.eq.s32.totalorder %s30, 0
      %p139 = por %p137, %p138
      %p140 = scmp.ne.s32.totalorder %s132, %s134
      %p141 = scmp.eq.s32.totalorder %s35, 1
      %p142 = por %p140, %p141
      %p143 = scmp.ne.s32.totalorder %s134, %s135
      %p144 = scmp.eq.s32.totalorder %s35, 0
      %p145 = por %p143, %p144
      %p146 = scmp.ne.s32.totalorder %s134, %s135
      %p147 = scmp.eq.s32.totalorder %s36, 1
      %p148 = por %p146, %p147
      %p150 = scmp.ne.s32.totalorder %s135, %s149
      %p151 = scmp.eq.s32.totalorder %s36, 0
      %p152 = por %p150, %p151
      %s154 = sadd.s32 %s153, 1
      %p157 = scmp.eq.s32.totalorder %s30, 1
      %p158 = scmp.ne.s32.totalorder %s153, %s155
      %p159 = scmp.eq.s32.totalorder %s30, 0
      %p160 = por %p158, %p159
      %p161 = scmp.ne.s32.totalorder %s153, %s155
      %p162 = scmp.eq.s32.totalorder %s35, 1
      %p163 = por %p161, %p162
      %p164 = scmp.ne.s32.totalorder %s155, %s156
      %p165 = scmp.eq.s32.totalorder %s35, 0
      %p166 = por %p164, %p165
      %p167 = scmp.ne.s32.totalorder %s155, %s156
      %p168 = scmp.eq.s32.totalorder %s36, 1
      %p169 = por %p167, %p168
      %p171 = scmp.ne.s32.totalorder %s156, %s170
      %p172 = scmp.eq.s32.totalorder %s36, 0
      %p173 = por %p171, %p172
      %s175 = sadd.s32 %s174, 1
      %p178 = scmp.eq.s32.totalorder %s30, 1
      %p179 = scmp.ne.s32.totalorder %s174, %s176
      %p180 = scmp.eq.s32.totalorder %s30, 0
      %p181 = por %p179, %p180
      %p182 = scmp.ne.s32.totalorder %s174, %s176
      %p183 = scmp.eq.s32.totalorder %s35, 1
      %p184 = por %p182, %p183
      %p185 = scmp.ne.s32.totalorder %s176, %s177
      %p186 = scmp.eq.s32.totalorder %s35, 0
      %p187 = por %p185, %p186
      %p188 = scmp.ne.s32.totalorder %s176, %s177
      %p189 = scmp.eq.s32.totalorder %s36, 1
      %p190 = por %p188, %p189
      %p192 = scmp.ne.s32.totalorder %s177, %s191
      %p193 = scmp.eq.s32.totalorder %s36, 0
      %p194 = por %p192, %p193
      %s196 = sadd.s32 %s195, 1
      %p199 = scmp.eq.s32.totalorder %s30, 1
      %p200 = scmp.ne.s32.totalorder %s195, %s197
      %p201 = scmp.eq.s32.totalorder %s30, 0
      %p202 = por %p200, %p201
      %p203 = scmp.ne.s32.totalorder %s195, %s197
      %p204 = scmp.eq.s32.totalorder %s35, 1
      %p205 = por %p203, %p204
      %p206 = scmp.ne.s32.totalorder %s197, %s198
      %p207 = scmp.eq.s32.totalorder %s35, 0
      %p208 = por %p206, %p207
      %p209 = scmp.ne.s32.totalorder %s197, %s198
      %p210 = scmp.eq.s32.totalorder %s36, 1
      %p211 = por %p209, %p210
      %p213 = scmp.ne.s32.totalorder %s198, %s212
      %p214 = scmp.eq.s32.totalorder %s36, 0
      %p215 = por %p213, %p214
      %s217 = sadd.s32 %s216, 1
      %p220 = scmp.eq.s32.totalorder %s30, 1
      %p221 = scmp.ne.s32.totalorder %s216, %s218
      %p222 = scmp.eq.s32.totalorder %s30, 0
      %p223 = por %p221, %p222
      %p224 = scmp.ne.s32.totalorder %s216, %s218
      %p225 = scmp.eq.s32.totalorder %s35, 1
      %p226 = por %p224, %p225
      %p227 = scmp.ne.s32.totalorder %s218, %s219
      %p228 = scmp.eq.s32.totalorder %s35, 0
      %p229 = por %p227, %p228
      %p230 = scmp.ne.s32.totalorder %s218, %s219
      %p231 = scmp.eq.s32.totalorder %s36, 1
      %p232 = por %p230, %p231
      %p234 = scmp.ne.s32.totalorder %s219, %s233
      %p235 = scmp.eq.s32.totalorder %s36, 0
      %p236 = por %p234, %p235
      %s238 = sadd.s32 %s237, 1
      %p241 = scmp.eq.s32.totalorder %s30, 1
      %p242 = scmp.ne.s32.totalorder %s237, %s239
      %p243 = scmp.eq.s32.totalorder %s30, 0
      %p244 = por %p242, %p243
      %p245 = scmp.ne.s32.totalorder %s237, %s239
      %p246 = scmp.eq.s32.totalorder %s35, 1
      %p247 = por %p245, %p246
      %p248 = scmp.ne.s32.totalorder %s239, %s240
      %p249 = scmp.eq.s32.totalorder %s35, 0
      %p250 = por %p248, %p249
      %p251 = scmp.ne.s32.totalorder %s239, %s240
      %p252 = scmp.eq.s32.totalorder %s36, 1
      %p253 = por %p251, %p252
      %p255 = scmp.ne.s32.totalorder %s240, %s254
      %p256 = scmp.eq.s32.totalorder %s36, 0
      %p257 = por %p255, %p256
      %s259 = sadd.s32 %s258, 1
      %p262 = scmp.eq.s32.totalorder %s30, 1
      %p263 = scmp.ne.s32.totalorder %s258, %s260
      %p264 = scmp.eq.s32.totalorder %s30, 0
      %p265 = por %p263, %p264
      %p266 = scmp.ne.s32.totalorder %s258, %s260
      %p267 = scmp.eq.s32.totalorder %s35, 1
      %p268 = por %p266, %p267
      %p269 = scmp.ne.s32.totalorder %s260, %s261
      %p270 = scmp.eq.s32.totalorder %s35, 0
      %p271 = por %p269, %p270
      %p272 = scmp.ne.s32.totalorder %s260, %s261
      %p273 = scmp.eq.s32.totalorder %s36, 1
      %p274 = por %p272, %p273
      %p276 = scmp.ne.s32.totalorder %s261, %s275
      %p277 = scmp.eq.s32.totalorder %s36, 0
      %p278 = por %p276, %p277
      %s280 = sadd.s32 %s279, 1
      %p283 = scmp.eq.s32.totalorder %s30, 1
      %p284 = scmp.ne.s32.totalorder %s279, %s281
      %p285 = scmp.eq.s32.totalorder %s30, 0
      %p286 = por %p284, %p285
      %p287 = scmp.ne.s32.totalorder %s279, %s281
      %p288 = scmp.eq.s32.totalorder %s35, 1
      %p289 = por %p287, %p288
      %p290 = scmp.ne.s32.totalorder %s281, %s282
      %p291 = scmp.eq.s32.totalorder %s35, 0
      %p292 = por %p290, %p291
      %p293 = scmp.ne.s32.totalorder %s281, %s282
      %p294 = scmp.eq.s32.totalorder %s36, 1
      %p295 = por %p293, %p294
      %p297 = scmp.ne.s32.totalorder %s282, %s296
      %p298 = scmp.eq.s32.totalorder %s36, 0
      %p299 = por %p297, %p298
      %s301 = sadd.s32 %s300, 1
      %p304 = scmp.eq.s32.totalorder %s30, 1
      %p305 = scmp.ne.s32.totalorder %s300, %s302
      %p306 = scmp.eq.s32.totalorder %s30, 0
      %p307 = por %p305, %p306
      %p308 = scmp.ne.s32.totalorder %s300, %s302
      %p309 = scmp.eq.s32.totalorder %s35, 1
      %p310 = por %p308, %p309
      %p311 = scmp.ne.s32.totalorder %s302, %s303
      %p312 = scmp.eq.s32.totalorder %s35, 0
      %p313 = por %p311, %p312
      %p314 = scmp.ne.s32.totalorder %s302, %s303
      %p315 = scmp.eq.s32.totalorder %s36, 1
      %p316 = por %p314, %p315
      %p318 = scmp.ne.s32.totalorder %s303, %s317
      %p319 = scmp.eq.s32.totalorder %s36, 0
      %p320 = por %p318, %p319
      %s322 = sadd.s32 %s321, 1
      %p325 = scmp.eq.s32.totalorder %s30, 1
      %p326 = scmp.ne.s32.totalorder %s321, %s323
      %p327 = scmp.eq.s32.totalorder %s30, 0
      %p328 = por %p326, %p327
      %p329 = scmp.ne.s32.totalorder %s321, %s323
      %p330 = scmp.eq.s32.totalorder %s35, 1
      %p331 = por %p329, %p330
      %p332 = scmp.ne.s32.totalorder %s323, %s324
      %p333 = scmp.eq.s32.totalorder %s35, 0
      %p334 = por %p332, %p333
      %p335 = scmp.ne.s32.totalorder %s323, %s324
      %p336 = scmp.eq.s32.totalorder %s36, 1
      %p337 = por %p335, %p336
      %p339 = scmp.ne.s32.totalorder %s324, %s338
      %p340 = scmp.eq.s32.totalorder %s36, 0
      %p341 = por %p339, %p340
      %s343 = sadd.s32 %s342, 1
      %p346 = scmp.eq.s32.totalorder %s30, 1
      %p347 = scmp.ne.s32.totalorder %s342, %s344
      %p348 = scmp.eq.s32.totalorder %s30, 0
      %p349 = por %p347, %p348
      %p350 = scmp.ne.s32.totalorder %s342, %s344
      %p351 = scmp.eq.s32.totalorder %s35, 1
      %p352 = por %p350, %p351
      %p353 = scmp.ne.s32.totalorder %s344, %s345
      %p354 = scmp.eq.s32.totalorder %s35, 0
      %p355 = por %p353, %p354
      %p356 = scmp.ne.s32.totalorder %s344, %s345
      %p357 = scmp.eq.s32.totalorder %s36, 1
      %p358 = por %p356, %p357
      %p360 = scmp.ne.s32.totalorder %s345, %s359
      %p361 = scmp.eq.s32.totalorder %s36, 0
      %p362 = por %p360, %p361
      %s364 = sadd.s32 %s363, 1
      %p367 = scmp.eq.s32.totalorder %s30, 1
      %p368 = scmp.ne.s32.totalorder %s363, %s365
      %p369 = scmp.eq.s32.totalorder %s30, 0
      %p370 = por %p368, %p369
      %p371 = scmp.ne.s32.totalorder %s363, %s365
      %p372 = scmp.eq.s32.totalorder %s35, 1
      %p373 = por %p371, %p372
      %p374 = scmp.ne.s32.totalorder %s365, %s366
      %p375 = scmp.eq.s32.totalorder %s35, 0
      %p376 = por %p374, %p375
      %p377 = scmp.ne.s32.totalorder %s365, %s366
      %p378 = scmp.eq.s32.totalorder %s36, 1
      %p379 = por %p377, %p378
      %p381 = scmp.ne.s32.totalorder %s366, %s380
      %p382 = scmp.eq.s32.totalorder %s36, 0
      %p383 = por %p381, %p382
      %s384 = ssub.s32 %s30, %s37
      %p385 = scmp.eq.s32.totalorder %s384, 0
      %s387 = sadd.s32 %s386, 1
      %s388 = scalar_select %p385, %s386, %s387
      %p391 = pneg %p385
      %p392 = scmp.eq.s32.totalorder %s30, 1
      %p393 = por %p391, %p392
      %p394 = scmp.ne.s32.totalorder %s386, %s389
      %p395 = scmp.eq.s32.totalorder %s30, 0
      %p396 = por %p394, %p395
      %p397 = scmp.ne.s32.totalorder %s386, %s389
      %p398 = scmp.eq.s32.totalorder %s35, 1
      %p399 = por %p397, %p398
      %p400 = scmp.ne.s32.totalorder %s389, %s390
      %p401 = scmp.eq.s32.totalorder %s35, 0
      %p402 = por %p400, %p401
      %p403 = scmp.ne.s32.totalorder %s389, %s390
      %p404 = scmp.eq.s32.totalorder %s36, 1
      %p405 = por %p403, %p404
      %p407 = scmp.ne.s32.totalorder %s390, %s406
      %p408 = scmp.eq.s32.totalorder %s36, 0
      %p409 = por %p407, %p408
      %p410 = scmp.le.s32.totalorder 1, %s30
      %p411 = scmp.lt.s32.totalorder %s30, 3
      %p412 = pnand %p410, %p411
      %p413 = pneg %p412
      // Predicated region
      $region9: #{tpu_custom_call.1} parent=5 // pred_check
        _
      $region10: #{tpu_custom_call.1} parent=5 // pred_check_branch
        %415 = sbr.rel (%p412) target = $region12
      $region11: #{tpu_custom_call.1} parent=5 // pred_region
        %s416 = ssub.s32 %s30, 1
        // Predicated region
        $region13: #{tpu_custom_call.1} parent=11 // pred_check
          %p417 = pneg %p103
        $region14: #{tpu_custom_call.1} parent=11 // pred_check_branch
          %419 = sbr.rel (%p417) target = $region16
        $region15: #{tpu_custom_call.1} parent=11 // pred_region
          _
        $region16: #{tpu_custom_call.1} parent=11 // pred_fallthru
          _
        // Predicated region
        $region17: #{tpu_custom_call.1} parent=11 // pred_check
          %p420 = pneg %p124
        $region18: #{tpu_custom_call.1} parent=11 // pred_check_branch
          %422 = sbr.rel (%p420) target = $region20
        $region19: #{tpu_custom_call.1} parent=11 // pred_region
          _
        $region20: #{tpu_custom_call.1} parent=11 // pred_fallthru
          _
        // Predicated region
        $region21: #{tpu_custom_call.1} parent=11 // pred_check
          %p423 = pneg %p145
        $region22: #{tpu_custom_call.1} parent=11 // pred_check_branch
          %425 = sbr.rel (%p423) target = $region24
        $region23: #{tpu_custom_call.1} parent=11 // pred_region
          %427 = vsyncadd [#allocation7], 0
          %s428 = sshll.u32 %s4, 4
          %s429 = int_to_ptr.hbm [resolvable:$true] %s428
          %s430 = sshll.u32 [#allocation6], 4
          %s431 = int_to_ptr.vmem [resolvable:$true] %s430
          %436 = dma.hbm_to_vmem [thread:$0]  %s429, 256, %s431, [#allocation7], 64, 64, 4
        $region24: #{tpu_custom_call.1} parent=11 // pred_fallthru
          _
        // Predicated region
        $region25: #{tpu_custom_call.1} parent=11 // pred_check
          %p437 = pneg %p166
        $region26: #{tpu_custom_call.1} parent=11 // pred_check_branch
          %439 = sbr.rel (%p437) target = $region28
        $region27: #{tpu_custom_call.1} parent=11 // pred_region
          _
        $region28: #{tpu_custom_call.1} parent=11 // pred_fallthru
          _
        // Predicated region
        $region29: #{tpu_custom_call.1} parent=11 // pred_check
          %p440 = pneg %p187
        $region30: #{tpu_custom_call.1} parent=11 // pred_check_branch
          %442 = sbr.rel (%p440) target = $region32
        $region31: #{tpu_custom_call.1} parent=11 // pred_region
          %444 = vsyncadd [#allocation7], 0
          %s445 = sshll.u32 %s6, 4
          %s446 = int_to_ptr.hbm [resolvable:$true] %s445
          %s447 = sshll.u32 [#allocation8], 4
          %s448 = int_to_ptr.vmem [resolvable:$true] %s447
          %453 = dma.hbm_to_vmem [thread:$0]  %s446, 256, %s448, [#allocation7], 64, 64, 4
        $region32: #{tpu_custom_call.1} parent=11 // pred_fallthru
          _
        // Predicated region
        $region33: #{tpu_custom_call.1} parent=11 // pred_check
          %p454 = pneg %p208
        $region34: #{tpu_custom_call.1} parent=11 // pred_check_branch
          %456 = sbr.rel (%p454) target = $region36
        $region35: #{tpu_custom_call.1} parent=11 // pred_region
          _
        $region36: #{tpu_custom_call.1} parent=11 // pred_fallthru
          _
        // Predicated region
        $region37: #{tpu_custom_call.1} parent=11 // pred_check
          %p457 = pneg %p229
        $region38: #{tpu_custom_call.1} parent=11 // pred_check_branch
          %459 = sbr.rel (%p457) target = $region40
        $region39: #{tpu_custom_call.1} parent=11 // pred_region
          %461 = vsyncadd [#allocation10], 0
          %s462 = sshll.u32 %s8, 4
          %s463 = int_to_ptr.hbm [resolvable:$true] %s462
          %s464 = sshll.u32 [#allocation9], 4
          %s465 = int_to_ptr.vmem [resolvable:$true] %s464
          %470 = dma.hbm_to_vmem [thread:$0]  %s463, 256, %s465, [#allocation10], 64, 64, 4
        $region40: #{tpu_custom_call.1} parent=11 // pred_fallthru
          _
        // Predicated region
        $region41: #{tpu_custom_call.1} parent=11 // pred_check
          %p471 = pneg %p250
        $region42: #{tpu_custom_call.1} parent=11 // pred_check_branch
          %473 = sbr.rel (%p471) target = $region44
        $region43: #{tpu_custom_call.1} parent=11 // pred_region
          _
        $region44: #{tpu_custom_call.1} parent=11 // pred_fallthru
          _
        // Predicated region
        $region45: #{tpu_custom_call.1} parent=11 // pred_check
          %p474 = pneg %p271
        $region46: #{tpu_custom_call.1} parent=11 // pred_check_branch
          %476 = sbr.rel (%p474) target = $region48
        $region47: #{tpu_custom_call.1} parent=11 // pred_region
          _
        $region48: #{tpu_custom_call.1} parent=11 // pred_fallthru
          _
        // Predicated region
        $region49: #{tpu_custom_call.1} parent=11 // pred_check
          %p477 = pneg %p292
        $region50: #{tpu_custom_call.1} parent=11 // pred_check_branch
          %479 = sbr.rel (%p477) target = $region52
        $region51: #{tpu_custom_call.1} parent=11 // pred_region
          _
        $region52: #{tpu_custom_call.1} parent=11 // pred_fallthru
          _
        // Predicated region
        $region53: #{tpu_custom_call.1} parent=11 // pred_check
          %p480 = pneg %p313
        $region54: #{tpu_custom_call.1} parent=11 // pred_check_branch
          %482 = sbr.rel (%p480) target = $region56
        $region55: #{tpu_custom_call.1} parent=11 // pred_region
          _
        $region56: #{tpu_custom_call.1} parent=11 // pred_fallthru
          _
        // Predicated region
        $region57: #{tpu_custom_call.1} parent=11 // pred_check
          %p483 = pneg %p334
        $region58: #{tpu_custom_call.1} parent=11 // pred_check_branch
          %485 = sbr.rel (%p483) target = $region60
        $region59: #{tpu_custom_call.1} parent=11 // pred_region
          _
        $region60: #{tpu_custom_call.1} parent=11 // pred_fallthru
          _
        // Predicated region
        $region61: #{tpu_custom_call.1} parent=11 // pred_check
          %p486 = pneg %p355
        $region62: #{tpu_custom_call.1} parent=11 // pred_check_branch
          %488 = sbr.rel (%p486) target = $region64
        $region63: #{tpu_custom_call.1} parent=11 // pred_region
          _
        $region64: #{tpu_custom_call.1} parent=11 // pred_fallthru
          _
        // Predicated region
        $region65: #{tpu_custom_call.1} parent=11 // pred_check
          %p489 = pneg %p376
        $region66: #{tpu_custom_call.1} parent=11 // pred_check_branch
          %491 = sbr.rel (%p489) target = $region68
        $region67: #{tpu_custom_call.1} parent=11 // pred_region
          _
        $region68: #{tpu_custom_call.1} parent=11 // pred_fallthru
          _
      $region12: #{tpu_custom_call.1} parent=5 // pred_fallthru
        _
      %p492 = scmp.lt.s32.totalorder %s30, 2
      // Predicated region
      $region69: #{tpu_custom_call.1} parent=5 // pred_check
        %p493 = pneg %p492
      $region70: #{tpu_custom_call.1} parent=5 // pred_check_branch
        %495 = sbr.rel (%p493) target = $region72
      $region71: #{tpu_custom_call.1} parent=5 // pred_region
        // Predicated region
        $region73: #{tpu_custom_call.1} parent=71 // pred_check
          %p496 = pneg %p50
        $region74: #{tpu_custom_call.1} parent=71 // pred_check_branch
          %498 = sbr.rel (%p496) target = $region76
        $region75: #{tpu_custom_call.1} parent=71 // pred_region
          %p499 = scmp.lt.s32.totalorder %s30, 1
          %s500 = scalar_select %p499, %s30, 1
          %s501 = smul.addr %s500, 2
          %s502 = smul.addr %s501, 8
          %s503 = scalar_lea.vmem %s0, %s502
        $region76: #{tpu_custom_call.1} parent=71 // pred_fallthru
          _
        // Predicated region
        $region77: #{tpu_custom_call.1} parent=71 // pred_check
          %p504 = pneg %p76
        $region78: #{tpu_custom_call.1} parent=71 // pred_check_branch
          %506 = sbr.rel (%p504) target = $region80
        $region79: #{tpu_custom_call.1} parent=71 // pred_region
          %s507 = sand.u32 %s66, 1
          %s508 = scalar_lea.sflag [#allocation4], %s507
          %s509 = sand.u32 %s66, 1
          %s510 = smul.addr %s509, 16
          %s511 = scalar_lea.vmem [#allocation3], %s510
          %513 = vsyncadd %s508, 0
          %s514 = smul.addr %s30, 2
          %s515 = smul.addr %s514, 8
          %s516 = scalar_lea.hbm %s1, %s515
          %s517 = sshll.u32 %s516, 4
          %s518 = int_to_ptr.hbm [resolvable:$true] %s517
          %s519 = sshll.u32 %s511, 4
          %s520 = int_to_ptr.vmem [resolvable:$true] %s519
          %525 = dma.hbm_to_vmem [thread:$0]  %s518, 256, %s520, %s508, 128, 128, 8
        $region80: #{tpu_custom_call.1} parent=71 // pred_fallthru
          _
      $region72: #{tpu_custom_call.1} parent=5 // pred_fallthru
        _
      %p526 = scmp.le.s32.totalorder 1, %s30
      %p527 = scmp.lt.s32.totalorder %s30, 3
      %p528 = pnand %p526, %p527
      %p529 = pneg %p528
      // Predicated region
      $region81: #{tpu_custom_call.1} parent=5 // pred_check
        _
      $region82: #{tpu_custom_call.1} parent=5 // pred_check_branch
        %531 = sbr.rel (%p528) target = $region84
      $region83: #{tpu_custom_call.1} parent=5 // pred_region
        %s532 = ssub.s32 %s30, 1
        %s533 = sand.u32 %s69, 1
        %s534 = scalar_lea.sflag [#allocation4], %s533
        %s535 = sand.u32 %s69, 1
        %s536 = smul.addr %s535, 16
        %s537 = scalar_lea.vmem [#allocation3], %s536
        // Predicated region
        $region85: #{tpu_custom_call.1} parent=83 // pred_check
          %p538 = pneg %p82
        $region86: #{tpu_custom_call.1} parent=83 // pred_check_branch
          %540 = sbr.rel (%p538) target = $region88
        $region87: #{tpu_custom_call.1} parent=83 // pred_region
          %542 = dma.done %s534, 256
        $region88: #{tpu_custom_call.1} parent=83 // pred_fallthru
          _
        // Predicated region
        $region89: #{tpu_custom_call.1} parent=83 // pred_check
          %p543 = pneg %p145
        $region90: #{tpu_custom_call.1} parent=83 // pred_check_branch
          %545 = sbr.rel (%p543) target = $region92
        $region91: #{tpu_custom_call.1} parent=83 // pred_region
          %547 = dma.done [#allocation7], 256
        $region92: #{tpu_custom_call.1} parent=83 // pred_fallthru
          _
        // Predicated region
        $region93: #{tpu_custom_call.1} parent=83 // pred_check
          %p548 = pneg %p187
        $region94: #{tpu_custom_call.1} parent=83 // pred_check_branch
          %550 = sbr.rel (%p548) target = $region96
        $region95: #{tpu_custom_call.1} parent=83 // pred_region
          %552 = dma.done [#allocation7], 256
        $region96: #{tpu_custom_call.1} parent=83 // pred_fallthru
          _
        // Predicated region
        $region97: #{tpu_custom_call.1} parent=83 // pred_check
          %p553 = pneg %p229
        $region98: #{tpu_custom_call.1} parent=83 // pred_check_branch
          %555 = sbr.rel (%p553) target = $region100
        $region99: #{tpu_custom_call.1} parent=83 // pred_region
          %557 = dma.done [#allocation10], 256
        $region100: #{tpu_custom_call.1} parent=83 // pred_fallthru
          _
        %p558 = scmp.lt.s32.totalorder %s35, 1
        %s559 = scalar_select %p558, %s35, 1
        %s560 = smul.addr %s559, 2
        %s561 = smul.addr %s560, 8
        %s562 = scalar_lea.vmem %s0, %s561
        %p563 = pneg %p56
        %p564 = pneg %p53
        %s565 = sand.u32 %s69, 1
        %s566 = scalar_lea.sflag [#allocation4], %s565
        %s567 = sand.u32 %s69, 1
        %s568 = smul.addr %s567, 16
        %s569 = scalar_lea.vmem [#allocation3], %s568
        %p570 = pneg %p82
        %p571 = pneg %p79
        %p572 = pneg %p103
        %p573 = pneg %p100
        %p574 = pneg %p124
        %p575 = pneg %p121
        %p576 = pneg %p145
        %p577 = pneg %p142
        %p578 = pneg %p166
        %p579 = pneg %p163
        %p580 = pneg %p187
        %p581 = pneg %p184
        %p582 = pneg %p208
        %p583 = pneg %p205
        %p584 = pneg %p229
        %p585 = pneg %p226
        %p586 = pneg %p250
        %p587 = pneg %p247
        %p588 = pneg %p271
        %p589 = pneg %p268
        %p590 = pneg %p292
        %p591 = pneg %p289
        %p592 = pneg %p313
        %p593 = pneg %p310
        %p594 = pneg %p334
        %p595 = pneg %p331
        %p596 = pneg %p355
        %p597 = pneg %p352
        %p598 = pneg %p376
        %p599 = pneg %p373
        %p600 = pneg %p402
        %p601 = pneg %p399
        %s602 = sand.u32 %s389, 1
        %s603 = scalar_lea.sflag [#allocation5], %s602
        %s604 = sand.u32 %s389, 1
        %s605 = smul.addr %s604, 16
        %s606 = scalar_lea.vmem [#allocation11], %s605
        %p607 = scmp.lt.s32.totalorder %s35, 1
        %s608 = scalar_select %p607, %s35, 1
        %s609 = smul.addr %s608, 2
        %s610 = smul.addr %s609, 8
        %s611 = scalar_lea.vmem %s0, %s610
        %v613 = vld [vmem:[%s611] sm:$0xff]
        %v614 = vld [vmem:[%s611 + $0x8] sm:$0xff]
        %v615 = vld [vmem:[%s537] sm:$0xff]
        %v616 = vld [vmem:[%s537 + $0x8] sm:$0xff]
        %v617 = vadd.f32 %v613, %v615
        %v618 = vadd.f32 %v614, %v616
        %v619 = vpack.c.bf16 %v618, %v617
        %v620 = vpack.c.bf16 %v614, %v613
        %v621 = vld [vmem:[%s2] sm:$0xf]
        %v622 = vld [vmem:[%s2 + $0x4] sm:$0xf]
        %v623 = vld [vmem:[%s2 + $0x8] sm:$0xf]
        %v624 = vld [vmem:[%s2 + $0xc] sm:$0xf]
        %v625 = vld [vmem:[%s3] sm:$0x1]
        %v627 = vperm.slane %v625, 0
        %v633 = vunpack.c.l.b16 %v621
        %v634 = vunpack.c.l.b16 %v622
        %v635 = vunpack.c.l.b16 %v623
        %v636 = vunpack.c.l.b16 %v624
        %v637 = vpack.c.b16 %v634, %v633
        %v638 = vpack.c.b16 %v636, %v635
        %vm641 = vcmask 261120
        %v643 = vsel %vm641, %v619, 0
        %645 = vmatpush.bf16.msra.mxu0 0
        %646 = vmatpush.bf16.msra.mxu0 0
        %647 = vmatpush.bf16.msra.mxu0 0
        %648 = vmatpush.bf16.msra.mxu0 0
        %649 = vmatpush.bf16.msra.mxu0 0
        %650 = vmatpush.bf16.msra.mxu0 0
        %651 = vmatpush.bf16.msra.mxu0 %v638
        %652 = vmatpush.bf16.msra.mxu0 %v637
        %653 = vmatmul.bf16.gmra.mxu0 %v643
        %v654 = vpop.f32.mrf.mxu0
        %v655 = vadd.f32 %v627, %v654
        %v656 = vpop.f32.mrf.mxu0
        %v657 = vadd.f32 %v627, %v656
        %658 = vdwg.mxu0
        %v659 = vld [vmem:[#allocation6] sm:$0xf]
        %v660 = vld [vmem:[#allocation6 + $0x4] sm:$0xf]
        %v661 = vld [vmem:[#allocation6 + $0x8] sm:$0xf]
        %v662 = vld [vmem:[#allocation6 + $0xc] sm:$0xf]
        %v663 = vld [vmem:[%s5] sm:$0x1]
        %v665 = vperm.slane %v663, 0
        %v671 = vunpack.c.l.b16 %v659
        %v672 = vunpack.c.l.b16 %v660
        %v673 = vunpack.c.l.b16 %v661
        %v674 = vunpack.c.l.b16 %v662
        %v675 = vpack.c.b16 %v672, %v671
        %v676 = vpack.c.b16 %v674, %v673
        %v680 = vsel %vm641, %v620, 0
        %682 = vmatpush.bf16.msra.mxu0 0
        %683 = vmatpush.bf16.msra.mxu0 0
        %684 = vmatpush.bf16.msra.mxu0 0
        %685 = vmatpush.bf16.msra.mxu0 0
        %686 = vmatpush.bf16.msra.mxu0 0
        %687 = vmatpush.bf16.msra.mxu0 0
        %688 = vmatpush.bf16.msra.mxu0 %v676
        %689 = vmatpush.bf16.msra.mxu0 %v675
        %690 = vmatmul.bf16.gmra.mxu0 %v680
        %v691 = vpop.f32.mrf.mxu0
        %v692 = vadd.f32 %v665, %v691
        %v693 = vpop.f32.mrf.mxu0
        %v694 = vadd.f32 %v665, %v693
        %695 = vdwg.mxu0
        %v696 = vpack.c.bf16 %v657, %v655
        %v697 = vpack.c.bf16 %v694, %v692
        %699 = vrot.lane.b32.xlu0 %v696, 96
        %v700 = vpop.permute.xlu0 %699
        %vm701 = vcmask 64512
        %v703 = vsel %vm701, %v696, 0
        %v706 = vsel %vm701, %v700, 0
        %708 = vmatpush.bf16.xpose.msra.mxu0 0
        %709 = vmatpush.bf16.xpose.msra.mxu0 0
        %710 = vmatpush.bf16.xpose.msra.mxu0 0
        %711 = vmatpush.bf16.xpose.msra.mxu0 0
        %712 = vmatpush.bf16.xpose.msra.mxu0 0
        %713 = vmatpush.bf16.xpose.msra.mxu0 0
        %714 = vmatpush.bf16.xpose.msra.mxu0 0
        %715 = vmatpush.bf16.xpose.msra.mxu0 %v706
        %716 = vmatmul.bf16.gmra.mxu0 %v703
        %v717 = vpop.f32.mrf.mxu0
        %v718 = vadd.f32 0.0, %v717
        %v719 = vpop.f32.mrf.mxu0
        %v720 = vadd.f32 0.0, %v719
        %721 = vdwg.mxu0
        %v722 = vmul.f32 %v718, 0.35355338
        %v723 = vmul.f32 %v720, 0.35355338
        %vm724 = vcmask 130048
        %v725 = vsel %vm724, %v722, -inf
        %726 = vmax.xlane.f32.xlu0 %v725
        %v727 = vpop.xlane.xlu0 %726
        %v728 = vsel %vm724, %v723, -inf
        %729 = vmax.xlane.f32.xlu0 %v728
        %v730 = vpop.xlane.xlu0 %729
        %v731 = vsub.f32 %v722, %v727
        %v732 = vsub.f32 %v723, %v730
        %v733 = vmul.f32 %v731, 1.442695
        %v734 = vpow.pop %v733
        %v735 = vmul.f32 %v732, 1.442695
        %v736 = vpow.pop %v735
        %v737 = vsel %vm724, %v734, 0.0
        %738 = vadd.xlane.f32.xlu0 %v737
        %v739 = vpop.xlane.xlu0 %738
        %v740 = vsel %vm724, %v736, 0.0
        %741 = vadd.xlane.f32.xlu0 %v740
        %v742 = vpop.xlane.xlu0 %741
        %v743 = vrcp.pop %v739
        %v744 = vrcp.pop %v742
        %v745 = vmul.f32 %v734, %v743
        %v746 = vmul.f32 %v736, %v744
        %v747 = vpack.c.bf16 %v746, %v745
        %v749 = vsel %vm724, %v747, 0
        %751 = vmatpush.bf16.msra.mxu0 0
        %752 = vmatpush.bf16.msra.mxu0 0
        %753 = vmatpush.bf16.msra.mxu0 0
        %754 = vmatpush.bf16.msra.mxu0 0
        %755 = vmatpush.bf16.msra.mxu0 0
        %756 = vmatpush.bf16.msra.mxu0 0
        %757 = vmatpush.bf16.msra.mxu0 0
        %758 = vmatpush.bf16.msra.mxu0 %v697
        %759 = vmatmul.bf16.gmra.mxu0 %v749
        %v760 = vpop.f32.mrf.mxu0
        %v761 = vadd.f32 0.0, %v760
        %v762 = vpop.f32.mrf.mxu0
        %v763 = vadd.f32 0.0, %v762
        %764 = vdwg.mxu0
        %v765 = vpack.c.bf16 %v761, %v761
        %v766 = vpack.c.bf16 %v763, %v763
        %vm767 = vcmask 60416
        %768 = vst.msk [vmem:[#allocation2] sm:$0xf] %vm767, %v765
        %769 = vst.msk [vmem:[#allocation2 + $0x4] sm:$0xf] %vm767, %v766
        %770 = vrot.lane.b32.xlu0 %v696, 120
        %v771 = vpop.permute.xlu0 %770
        %772 = vrot.lane.b32.xlu0 %v696, 88
        %v773 = vpop.permute.xlu0 %772
        %v775 = vsel %vm701, %v771, 0
        %v778 = vsel %vm701, %v773, 0
        %780 = vmatpush.bf16.xpose.msra.mxu0 0
        %781 = vmatpush.bf16.xpose.msra.mxu0 0
        %782 = vmatpush.bf16.xpose.msra.mxu0 0
        %783 = vmatpush.bf16.xpose.msra.mxu0 0
        %784 = vmatpush.bf16.xpose.msra.mxu0 0
        %785 = vmatpush.bf16.xpose.msra.mxu0 0
        %786 = vmatpush.bf16.xpose.msra.mxu0 0
        %787 = vmatpush.bf16.xpose.msra.mxu0 %v778
        %788 = vmatmul.bf16.gmra.mxu0 %v775
        %v789 = vpop.f32.mrf.mxu0
        %v790 = vadd.f32 0.0, %v789
        %v791 = vpop.f32.mrf.mxu0
        %v792 = vadd.f32 0.0, %v791
        %793 = vdwg.mxu0
        %v794 = vmul.f32 %v790, 0.35355338
        %v795 = vmul.f32 %v792, 0.35355338
        %v796 = vsel %vm724, %v794, -inf
        %797 = vmax.xlane.f32.xlu0 %v796
        %v798 = vpop.xlane.xlu0 %797
        %v799 = vsel %vm724, %v795, -inf
        %800 = vmax.xlane.f32.xlu0 %v799
        %v801 = vpop.xlane.xlu0 %800
        %v802 = vsub.f32 %v794, %v798
        %v803 = vsub.f32 %v795, %v801
        %v804 = vmul.f32 %v802, 1.442695
        %v805 = vpow.pop %v804
        %v806 = vmul.f32 %v803, 1.442695
        %v807 = vpow.pop %v806
        %v808 = vsel %vm724, %v805, 0.0
        %809 = vadd.xlane.f32.xlu0 %v808
        %v810 = vpop.xlane.xlu0 %809
        %v811 = vsel %vm724, %v807, 0.0
        %812 = vadd.xlane.f32.xlu0 %v811
        %v813 = vpop.xlane.xlu0 %812
        %v814 = vrcp.pop %v810
        %v815 = vrcp.pop %v813
        %v816 = vmul.f32 %v805, %v814
        %v817 = vmul.f32 %v807, %v815
        %v818 = vpack.c.bf16 %v817, %v816
        %820 = vrot.lane.b32.xlu0 %v697, 120
        %v821 = vpop.permute.xlu0 %820
        %v824 = vsel %vm724, %v818, 0
        %826 = vmatpush.bf16.msra.mxu0 0
        %827 = vmatpush.bf16.msra.mxu0 0
        %828 = vmatpush.bf16.msra.mxu0 0
        %829 = vmatpush.bf16.msra.mxu0 0
        %830 = vmatpush.bf16.msra.mxu0 0
        %831 = vmatpush.bf16.msra.mxu0 0
        %832 = vmatpush.bf16.msra.mxu0 0
        %833 = vmatpush.bf16.msra.mxu0 %v821
        %834 = vmatmul.bf16.gmra.mxu0 %v824
        %v835 = vpop.f32.mrf.mxu0
        %v836 = vadd.f32 0.0, %v835
        %v837 = vpop.f32.mrf.mxu0
        %v838 = vadd.f32 0.0, %v837
        %839 = vdwg.mxu0
        %v840 = vpack.c.bf16 %v836, %v836
        %v841 = vpack.c.bf16 %v838, %v838
        %844 = vrot.lane.b32.xlu0 %v840, 8
        %v845 = vpop.permute.xlu0 %844
        %846 = vrot.lane.b32.xlu0 %v841, 8
        %v847 = vpop.permute.xlu0 %846
        %vm850 = vcmask 126016
        %851 = vst.msk [vmem:[#allocation2] sm:$0xf] %vm850, %v845
        %852 = vst.msk [vmem:[#allocation2 + $0x4] sm:$0xf] %vm850, %v847
        %853 = vrot.lane.b32.xlu0 %v696, 112
        %v854 = vpop.permute.xlu0 %853
        %855 = vrot.lane.b32.xlu0 %v696, 80
        %v856 = vpop.permute.xlu0 %855
        %v858 = vsel %vm701, %v854, 0
        %v861 = vsel %vm701, %v856, 0
        %863 = vmatpush.bf16.xpose.msra.mxu0 0
        %864 = vmatpush.bf16.xpose.msra.mxu0 0
        %865 = vmatpush.bf16.xpose.msra.mxu0 0
        %866 = vmatpush.bf16.xpose.msra.mxu0 0
        %867 = vmatpush.bf16.xpose.msra.mxu0 0
        %868 = vmatpush.bf16.xpose.msra.mxu0 0
        %869 = vmatpush.bf16.xpose.msra.mxu0 0
        %870 = vmatpush.bf16.xpose.msra.mxu0 %v861
        %871 = vmatmul.bf16.gmra.mxu0 %v858
        %v872 = vpop.f32.mrf.mxu0
        %v873 = vadd.f32 0.0, %v872
        %v874 = vpop.f32.mrf.mxu0
        %v875 = vadd.f32 0.0, %v874
        %876 = vdwg.mxu0
        %v877 = vmul.f32 %v873, 0.35355338
        %v878 = vmul.f32 %v875, 0.35355338
        %v879 = vsel %vm724, %v877, -inf
        %880 = vmax.xlane.f32.xlu0 %v879
        %v881 = vpop.xlane.xlu0 %880
        %v882 = vsel %vm724, %v878, -inf
        %883 = vmax.xlane.f32.xlu0 %v882
        %v884 = vpop.xlane.xlu0 %883
        %v885 = vsub.f32 %v877, %v881
        %v886 = vsub.f32 %v878, %v884
        %v887 = vmul.f32 %v885, 1.442695
        %v888 = vpow.pop %v887
        %v889 = vmul.f32 %v886, 1.442695
        %v890 = vpow.pop %v889
        %v891 = vsel %vm724, %v888, 0.0
        %892 = vadd.xlane.f32.xlu0 %v891
        %v893 = vpop.xlane.xlu0 %892
        %v894 = vsel %vm724, %v890, 0.0
        %895 = vadd.xlane.f32.xlu0 %v894
        %v896 = vpop.xlane.xlu0 %895
        %v897 = vrcp.pop %v893
        %v898 = vrcp.pop %v896
        %v899 = vmul.f32 %v888, %v897
        %v900 = vmul.f32 %v890, %v898
        %v901 = vpack.c.bf16 %v900, %v899
        %902 = vrot.lane.b32.xlu0 %v697, 112
        %v903 = vpop.permute.xlu0 %902
        %v906 = vsel %vm724, %v901, 0
        %908 = vmatpush.bf16.msra.mxu0 0
        %909 = vmatpush.bf16.msra.mxu0 0
        %910 = vmatpush.bf16.msra.mxu0 0
        %911 = vmatpush.bf16.msra.mxu0 0
        %912 = vmatpush.bf16.msra.mxu0 0
        %913 = vmatpush.bf16.msra.mxu0 0
        %914 = vmatpush.bf16.msra.mxu0 0
        %915 = vmatpush.bf16.msra.mxu0 %v903
        %916 = vmatmul.bf16.gmra.mxu0 %v906
        %v917 = vpop.f32.mrf.mxu0
        %v918 = vadd.f32 0.0, %v917
        %v919 = vpop.f32.mrf.mxu0
        %v920 = vadd.f32 0.0, %v919
        %921 = vdwg.mxu0
        %v922 = vpack.c.bf16 %v918, %v918
        %v923 = vpack.c.bf16 %v920, %v920
        %926 = vrot.lane.b32.xlu0 %v922, 16
        %v927 = vpop.permute.xlu0 %926
        %928 = vrot.lane.b32.xlu0 %v923, 16
        %v929 = vpop.permute.xlu0 %928
        %vm932 = vcmask 191616
        %933 = vst.msk [vmem:[#allocation2] sm:$0xf] %vm932, %v927
        %934 = vst.msk [vmem:[#allocation2 + $0x4] sm:$0xf] %vm932, %v929
        %935 = vrot.lane.b32.xlu0 %v696, 104
        %v936 = vpop.permute.xlu0 %935
        %937 = vrot.lane.b32.xlu0 %v696, 72
        %v938 = vpop.permute.xlu0 %937
        %v940 = vsel %vm701, %v936, 0
        %v943 = vsel %vm701, %v938, 0
        %945 = vmatpush.bf16.xpose.msra.mxu0 0
        %946 = vmatpush.bf16.xpose.msra.mxu0 0
        %947 = vmatpush.bf16.xpose.msra.mxu0 0
        %948 = vmatpush.bf16.xpose.msra.mxu0 0
        %949 = vmatpush.bf16.xpose.msra.mxu0 0
        %950 = vmatpush.bf16.xpose.msra.mxu0 0
        %951 = vmatpush.bf16.xpose.msra.mxu0 0
        %952 = vmatpush.bf16.xpose.msra.mxu0 %v943
        %953 = vmatmul.bf16.gmra.mxu0 %v940
        %v954 = vpop.f32.mrf.mxu0
        %v955 = vadd.f32 0.0, %v954
        %v956 = vpop.f32.mrf.mxu0
        %v957 = vadd.f32 0.0, %v956
        %958 = vdwg.mxu0
        %v959 = vmul.f32 %v955, 0.35355338
        %v960 = vmul.f32 %v957, 0.35355338
        %v961 = vsel %vm724, %v959, -inf
        %962 = vmax.xlane.f32.xlu0 %v961
        %v963 = vpop.xlane.xlu0 %962
        %v964 = vsel %vm724, %v960, -inf
        %965 = vmax.xlane.f32.xlu0 %v964
        %v966 = vpop.xlane.xlu0 %965
        %v967 = vsub.f32 %v959, %v963
        %v968 = vsub.f32 %v960, %v966
        %v969 = vmul.f32 %v967, 1.442695
        %v970 = vpow.pop %v969
        %v971 = vmul.f32 %v968, 1.442695
        %v972 = vpow.pop %v971
        %v973 = vsel %vm724, %v970, 0.0
        %974 = vadd.xlane.f32.xlu0 %v973
        %v975 = vpop.xlane.xlu0 %974
        %v976 = vsel %vm724, %v972, 0.0
        %977 = vadd.xlane.f32.xlu0 %v976
        %v978 = vpop.xlane.xlu0 %977
        %v979 = vrcp.pop %v975
        %v980 = vrcp.pop %v978
        %v981 = vmul.f32 %v970, %v979
        %v982 = vmul.f32 %v972, %v980
        %v983 = vpack.c.bf16 %v982, %v981
        %984 = vrot.lane.b32.xlu0 %v697, 104
        %v985 = vpop.permute.xlu0 %984
        %v988 = vsel %vm724, %v983, 0
        %990 = vmatpush.bf16.msra.mxu0 0
        %991 = vmatpush.bf16.msra.mxu0 0
        %992 = vmatpush.bf16.msra.mxu0 0
        %993 = vmatpush.bf16.msra.mxu0 0
        %994 = vmatpush.bf16.msra.mxu0 0
        %995 = vmatpush.bf16.msra.mxu0 0
        %996 = vmatpush.bf16.msra.mxu0 0
        %997 = vmatpush.bf16.msra.mxu0 %v985
        %998 = vmatmul.bf16.gmra.mxu0 %v988
        %v999 = vpop.f32.mrf.mxu0
        %v1000 = vadd.f32 0.0, %v999
        %v1001 = vpop.f32.mrf.mxu0
        %v1002 = vadd.f32 0.0, %v1001
        %1003 = vdwg.mxu0
        %v1004 = vpack.c.bf16 %v1000, %v1000
        %v1005 = vpack.c.bf16 %v1002, %v1002
        %1008 = vrot.lane.b32.xlu0 %v1004, 24
        %v1009 = vpop.permute.xlu0 %1008
        %1010 = vrot.lane.b32.xlu0 %v1005, 24
        %v1011 = vpop.permute.xlu0 %1010
        %vm1014 = vcmask 257216
        %1015 = vst.msk [vmem:[#allocation2] sm:$0xf] %vm1014, %v1009
        %1016 = vst.msk [vmem:[#allocation2 + $0x4] sm:$0xf] %vm1014, %v1011
        %v1017 = vld [vmem:[#allocation2] sm:$0xf]
        %v1018 = vld [vmem:[#allocation2 + $0x4] sm:$0xf]
        %v1019 = vld [vmem:[#allocation8] sm:$0xf]
        %v1020 = vld [vmem:[#allocation8 + $0x4] sm:$0xf]
        %v1021 = vld [vmem:[#allocation8 + $0x8] sm:$0xf]
        %v1022 = vld [vmem:[#allocation8 + $0xc] sm:$0xf]
        %v1023 = vld [vmem:[%s7] sm:$0x1]
        %v1025 = vperm.slane %v1023, 0
        %v1029 = vunpack.c.l.b16 %v1017
        %v1030 = vunpack.c.l.b16 %v1018
        %v1031 = vpack.c.b16 %v1030, %v1029
        %v1036 = vunpack.c.l.b16 %v1019
        %v1037 = vunpack.c.l.b16 %v1020
        %v1038 = vunpack.c.l.b16 %v1021
        %v1039 = vunpack.c.l.b16 %v1022
        %v1040 = vpack.c.b16 %v1037, %v1036
        %v1041 = vpack.c.b16 %v1039, %v1038
        %v1045 = vsel %vm641, %v1031, 0
        %1047 = vmatpush.bf16.msra.mxu0 0
        %1048 = vmatpush.bf16.msra.mxu0 0
        %1049 = vmatpush.bf16.msra.mxu0 0
        %1050 = vmatpush.bf16.msra.mxu0 0
        %1051 = vmatpush.bf16.msra.mxu0 0
        %1052 = vmatpush.bf16.msra.mxu0 0
        %1053 = vmatpush.bf16.msra.mxu0 %v1041
        %1054 = vmatpush.bf16.msra.mxu0 %v1040
        %1055 = vmatmul.bf16.gmra.mxu0 %v1045
        %v1056 = vpop.f32.mrf.mxu0
        %v1057 = vadd.f32 %v1025, %v1056
        %v1058 = vpop.f32.mrf.mxu0
        %v1059 = vadd.f32 %v1025, %v1058
        %1060 = vdwg.mxu0
        %v1061 = vadd.f32 %v613, %v1057
        %v1062 = vadd.f32 %v614, %v1059
        %v1063 = vld [vmem:[%s12] sm:$0x1]
        %v1064 = vld [vmem:[%s13] sm:$0x1]
        %v1065 = vsel %vm641, %v1061, 0.0
        %1066 = vadd.xlane.f32.xlu0 %v1065
        %v1067 = vpop.xlane.xlu0 %1066
        %v1068 = vsel %vm641, %v1062, 0.0
        %1069 = vadd.xlane.f32.xlu0 %v1068
        %v1070 = vpop.xlane.xlu0 %1069
        %v1071 = vrcp.pop 32.0
        %v1072 = vmul.f32 32.0, %v1071
        %v1073 = vsub.f32 1.0, %v1072
        %v1074 = vmul.f32 %v1071, %v1073
        %v1075 = vadd.f32 %v1071, %v1074
        %vm1076 = vweird.f32 %v1071
        %v1077 = vsel %vm1076, %v1071, %v1075
        %v1078 = vmul.f32 %v1067, %v1077
        %v1079 = vmul.f32 %v1070, %v1077
        %v1080 = vsub.f32 %v1061, %v1078
        %v1081 = vsub.f32 %v1062, %v1079
        %v1082 = vmul.f32 %v1080, %v1080
        %v1083 = vmul.f32 %v1081, %v1081
        %v1084 = vsel %vm641, %v1082, 0.0
        %1085 = vadd.xlane.f32.xlu0 %v1084
        %v1086 = vpop.xlane.xlu0 %1085
        %v1087 = vsel %vm641, %v1083, 0.0
        %1088 = vadd.xlane.f32.xlu0 %v1087
        %v1089 = vpop.xlane.xlu0 %1088
        %v1090 = vmul.f32 %v1086, %v1077
        %v1091 = vmul.f32 %v1089, %v1077
        %v1092 = vadd.f32 %v1090, 1e-05
        %v1093 = vadd.f32 %v1091, 1e-05
        %v1094 = vrsqrt.pop %v1092
        %v1095 = vmul.f32 %v1094, %v1092
        %v1096 = vmul.f32 %v1095, %v1094
        %v1097 = vmul.f32 0.5, %v1096
        %v1098 = vsub.f32 1.5, %v1097
        %v1099 = vmul.f32 %v1094, %v1098
        %vm1100 = vweird.f32 %v1092
        %vm1101 = vweird.f32 %v1094
        %vm1102 = vmor %vm1100, %vm1101
        %v1103 = vsel %vm1102, %v1094, %v1099
        %v1104 = vrsqrt.pop %v1093
        %v1105 = vmul.f32 %v1104, %v1093
        %v1106 = vmul.f32 %v1105, %v1104
        %v1107 = vmul.f32 0.5, %v1106
        %v1108 = vsub.f32 1.5, %v1107
        %v1109 = vmul.f32 %v1104, %v1108
        %vm1110 = vweird.f32 %v1093
        %vm1111 = vweird.f32 %v1104
        %vm1112 = vmor %vm1110, %vm1111
        %v1113 = vsel %vm1112, %v1104, %v1109
        %v1114 = vmul.f32 %v1080, %v1103
        %v1115 = vmul.f32 %v1081, %v1113
        %v1117 = vperm.slane %v1063, 0
        %v1119 = vmul.f32 %v1114, %v1117
        %v1120 = vmul.f32 %v1115, %v1117
        %v1122 = vperm.slane %v1064, 0
        %v1124 = vadd.f32 %v1119, %v1122
        %v1125 = vadd.f32 %v1120, %v1122
        %v1126 = vpack.c.bf16 %v1125, %v1124
        %v1127 = vld [vmem:[#allocation9] sm:$0xf]
        %v1128 = vld [vmem:[#allocation9 + $0x4] sm:$0xf]
        %v1129 = vld [vmem:[#allocation9 + $0x8] sm:$0xf]
        %v1130 = vld [vmem:[#allocation9 + $0xc] sm:$0xf]
        %v1131 = vld [vmem:[%s9] sm:$0x1]
        %v1133 = vperm.slane %v1131, 0
        %v1139 = vunpack.c.l.b16 %v1127
        %v1140 = vunpack.c.l.b16 %v1128
        %v1141 = vunpack.c.l.b16 %v1129
        %v1142 = vunpack.c.l.b16 %v1130
        %v1143 = vpack.c.b16 %v1140, %v1139
        %v1144 = vpack.c.b16 %v1142, %v1141
        %v1148 = vsel %vm641, %v1126, 0
        %1150 = vmatpush.bf16.msra.mxu0 0
        %1151 = vmatpush.bf16.msra.mxu0 0
        %1152 = vmatpush.bf16.msra.mxu0 0
        %1153 = vmatpush.bf16.msra.mxu0 0
        %1154 = vmatpush.bf16.msra.mxu0 0
        %1155 = vmatpush.bf16.msra.mxu0 0
        %1156 = vmatpush.bf16.msra.mxu0 %v1144
        %1157 = vmatpush.bf16.msra.mxu0 %v1143
        %1158 = vmatmul.bf16.gmra.mxu0 %v1148
        %v1159 = vpop.f32.mrf.mxu0
        %v1160 = vadd.f32 %v1133, %v1159
        %v1161 = vpop.f32.mrf.mxu0
        %v1162 = vadd.f32 %v1133, %v1161
        %1163 = vdwg.mxu0
        %v1164 = vmul.f32 %v1160, 0.5
        %v1165 = vmul.f32 %v1162, 0.5
        %v1166 = vmul.f32 %v1160, 0.70710677
        %v1167 = vmul.f32 %v1162, 0.70710677
        %v1168 = vmul.f32 %v1166, %v1166
        %v1169 = vmin.f32 16.0, %v1168
        %v1170 = vmul.f32 %v1169, 2.1237322e-06
        %v1171 = vadd.f32 %v1170, 0.00028619796
        %v1172 = vmul.f32 %v1169, %v1171
        %v1173 = vadd.f32 %v1172, 0.0036580483
        %v1174 = vmul.f32 %v1169, %v1173
        %v1175 = vadd.f32 %v1174, 0.05243302
        %v1176 = vmul.f32 %v1169, %v1175
        %v1177 = vadd.f32 %v1176, 0.18741608
        %v1178 = vmul.f32 %v1169, %v1177
        %v1179 = vadd.f32 %v1178, 1.1283791
        %v1180 = vmul.f32 %v1166, %v1179
        %v1181 = vmul.f32 %v1169, 3.8918573e-05
        %v1182 = vadd.f32 %v1181, 0.001143296
        %v1183 = vmul.f32 %v1169, %v1182
        %v1184 = vadd.f32 %v1183, 0.014752088
        %v1185 = vmul.f32 %v1169, %v1184
        %v1186 = vadd.f32 %v1185, 0.112945676
        %v1187 = vmul.f32 %v1169, %v1186
        %v1188 = vadd.f32 %v1187, 0.4994258
        %v1189 = vmul.f32 %v1169, %v1188
        %v1190 = vadd.f32 %v1189, 1.0
        %v1191 = vrcp.pop %v1190
        %v1192 = vmul.f32 %v1190, %v1191
        %v1193 = vsub.f32 1.0, %v1192
        %v1194 = vmul.f32 %v1191, %v1193
        %v1195 = vadd.f32 %v1191, %v1194
        %vm1196 = vweird.f32 %v1190
        %vm1197 = vweird.f32 %v1191
        %vm1198 = vmor %vm1196, %vm1197
        %v1199 = vsel %vm1198, %v1191, %v1195
        %v1200 = vand.u32 2147483647, %v1190
        %vm1201 = vcmp.eq.f32.partialorder %v1200, 8.507059e+37
        %v1202 = vand.u32 %v1190, 2147483648
        %v1203 = vor.u32 1.1754944e-38, %v1202
        %v1204 = vsel %vm1201, %v1203, %v1199
        %v1205 = vmul.f32 %v1180, %v1204
        %v1206 = vmin.f32 %v1205, 1.0
        %v1207 = vmax.f32 %v1206, -1.0
        %v1208 = vmul.f32 %v1167, %v1167
        %v1209 = vmin.f32 16.0, %v1208
        %v1210 = vmul.f32 %v1209, 2.1237322e-06
        %v1211 = vadd.f32 %v1210, 0.00028619796
        %v1212 = vmul.f32 %v1209, %v1211
        %v1213 = vadd.f32 %v1212, 0.0036580483
        %v1214 = vmul.f32 %v1209, %v1213
        %v1215 = vadd.f32 %v1214, 0.05243302
        %v1216 = vmul.f32 %v1209, %v1215
        %v1217 = vadd.f32 %v1216, 0.18741608
        %v1218 = vmul.f32 %v1209, %v1217
        %v1219 = vadd.f32 %v1218, 1.1283791
        %v1220 = vmul.f32 %v1167, %v1219
        %v1221 = vmul.f32 %v1209, 3.8918573e-05
        %v1222 = vadd.f32 %v1221, 0.001143296
        %v1223 = vmul.f32 %v1209, %v1222
        %v1224 = vadd.f32 %v1223, 0.014752088
        %v1225 = vmul.f32 %v1209, %v1224
        %v1226 = vadd.f32 %v1225, 0.112945676
        %v1227 = vmul.f32 %v1209, %v1226
        %v1228 = vadd.f32 %v1227, 0.4994258
        %v1229 = vmul.f32 %v1209, %v1228
        %v1230 = vadd.f32 %v1229, 1.0
        %v1231 = vrcp.pop %v1230
        %v1232 = vmul.f32 %v1230, %v1231
        %v1233 = vsub.f32 1.0, %v1232
        %v1234 = vmul.f32 %v1231, %v1233
        %v1235 = vadd.f32 %v1231, %v1234
        %vm1236 = vweird.f32 %v1230
        %vm1237 = vweird.f32 %v1231
        %vm1238 = vmor %vm1236, %vm1237
        %v1239 = vsel %vm1238, %v1231, %v1235
        %v1240 = vand.u32 2147483647, %v1230
        %vm1241 = vcmp.eq.f32.partialorder %v1240, 8.507059e+37
        %v1242 = vand.u32 %v1230, 2147483648
        %v1243 = vor.u32 1.1754944e-38, %v1242
        %v1244 = vsel %vm1241, %v1243, %v1239
        %v1245 = vmul.f32 %v1220, %v1244
        %v1246 = vmin.f32 %v1245, 1.0
        %v1247 = vmax.f32 %v1246, -1.0
        %v1248 = vadd.f32 %v1207, 1.0
        %v1249 = vadd.f32 %v1247, 1.0
        %v1250 = vmul.f32 %v1164, %v1248
        %v1251 = vmul.f32 %v1165, %v1249
        %v1252 = vpack.c.bf16 %v1251, %v1250
        %v1253 = vld [vmem:[%s10] sm:$0xf]
        %v1254 = vld [vmem:[%s10 + $0x4] sm:$0xf]
        %v1255 = vld [vmem:[%s10 + $0x8] sm:$0xf]
        %v1256 = vld [vmem:[%s10 + $0xc] sm:$0xf]
        %v1257 = vld [vmem:[%s10 + $0x10] sm:$0xf]
        %v1258 = vld [vmem:[%s10 + $0x14] sm:$0xf]
        %v1259 = vld [vmem:[%s10 + $0x18] sm:$0xf]
        %v1260 = vld [vmem:[%s10 + $0x1c] sm:$0xf]
        %v1261 = vld [vmem:[%s11] sm:$0x1]
        %v1263 = vperm.slane %v1261, 0
        %v1273 = vunpack.c.l.b16 %v1253
        %v1274 = vunpack.c.l.b16 %v1254
        %v1275 = vunpack.c.l.b16 %v1255
        %v1276 = vunpack.c.l.b16 %v1256
        %v1277 = vunpack.c.l.b16 %v1257
        %v1278 = vunpack.c.l.b16 %v1258
        %v1279 = vunpack.c.l.b16 %v1259
        %v1280 = vunpack.c.l.b16 %v1260
        %v1281 = vpack.c.b16 %v1274, %v1273
        %v1282 = vpack.c.b16 %v1276, %v1275
        %v1283 = vpack.c.b16 %v1278, %v1277
        %v1284 = vpack.c.b16 %v1280, %v1279
        %vm1289 = vcmask 523264
        %v1291 = vsel %vm1289, %v1252, 0
        %1293 = vmatpush.bf16.msra.mxu0 0
        %1294 = vmatpush.bf16.msra.mxu0 0
        %1295 = vmatpush.bf16.msra.mxu0 0
        %1296 = vmatpush.bf16.msra.mxu0 0
        %1297 = vmatpush.bf16.msra.mxu0 %v1284
        %1298 = vmatpush.bf16.msra.mxu0 %v1283
        %1299 = vmatpush.bf16.msra.mxu0 %v1282
        %1300 = vmatpush.bf16.msra.mxu0 %v1281
        %1301 = vmatmul.bf16.gmra.mxu0 %v1291
        %v1302 = vpop.f32.mrf.mxu0
        %v1303 = vadd.f32 %v1263, %v1302
        %v1304 = vpop.f32.mrf.mxu0
        %v1305 = vadd.f32 %v1263, %v1304
        %1306 = vdwg.mxu0
        %v1307 = vadd.f32 %v1124, %v1303
        %v1308 = vadd.f32 %v1125, %v1305
        %v1309 = vld [vmem:[%s14] sm:$0x1]
        %v1310 = vld [vmem:[%s15] sm:$0x1]
        %v1311 = vsel %vm641, %v1307, 0.0
        %1312 = vadd.xlane.f32.xlu0 %v1311
        %v1313 = vpop.xlane.xlu0 %1312
        %v1314 = vsel %vm641, %v1308, 0.0
        %1315 = vadd.xlane.f32.xlu0 %v1314
        %v1316 = vpop.xlane.xlu0 %1315
        %v1317 = vmul.f32 %v1313, %v1077
        %v1318 = vmul.f32 %v1316, %v1077
        %v1319 = vsub.f32 %v1307, %v1317
        %v1320 = vsub.f32 %v1308, %v1318
        %v1321 = vmul.f32 %v1319, %v1319
        %v1322 = vmul.f32 %v1320, %v1320
        %v1323 = vsel %vm641, %v1321, 0.0
        %1324 = vadd.xlane.f32.xlu0 %v1323
        %v1325 = vpop.xlane.xlu0 %1324
        %v1326 = vsel %vm641, %v1322, 0.0
        %1327 = vadd.xlane.f32.xlu0 %v1326
        %v1328 = vpop.xlane.xlu0 %1327
        %v1329 = vmul.f32 %v1325, %v1077
        %v1330 = vmul.f32 %v1328, %v1077
        %v1331 = vadd.f32 %v1329, 1e-05
        %v1332 = vadd.f32 %v1330, 1e-05
        %v1333 = vrsqrt.pop %v1331
        %v1334 = vmul.f32 %v1333, %v1331
        %v1335 = vmul.f32 %v1334, %v1333
        %v1336 = vmul.f32 0.5, %v1335
        %v1337 = vsub.f32 1.5, %v1336
        %v1338 = vmul.f32 %v1333, %v1337
        %vm1339 = vweird.f32 %v1331
        %vm1340 = vweird.f32 %v1333
        %vm1341 = vmor %vm1339, %vm1340
        %v1342 = vsel %vm1341, %v1333, %v1338
        %v1343 = vrsqrt.pop %v1332
        %v1344 = vmul.f32 %v1343, %v1332
        %v1345 = vmul.f32 %v1344, %v1343
        %v1346 = vmul.f32 0.5, %v1345
        %v1347 = vsub.f32 1.5, %v1346
        %v1348 = vmul.f32 %v1343, %v1347
        %vm1349 = vweird.f32 %v1332
        %vm1350 = vweird.f32 %v1343
        %vm1351 = vmor %vm1349, %vm1350
        %v1352 = vsel %vm1351, %v1343, %v1348
        %v1353 = vmul.f32 %v1319, %v1342
        %v1354 = vmul.f32 %v1320, %v1352
        %v1356 = vperm.slane %v1309, 0
        %v1358 = vmul.f32 %v1353, %v1356
        %v1359 = vmul.f32 %v1354, %v1356
        %v1361 = vperm.slane %v1310, 0
        %v1363 = vadd.f32 %v1358, %v1361
        %v1364 = vadd.f32 %v1359, %v1361
        %1365 = vst.msk [vmem:[%s606] sm:$0xff] %vm641, %v1363
        %1366 = vst.msk [vmem:[%s606 + $0x8] sm:$0xff] %vm641, %v1364
        %s1367 = sand.u32 %s389, 1
        %s1368 = scalar_lea.sflag [#allocation5], %s1367
        %s1369 = sand.u32 %s389, 1
        %s1370 = smul.addr %s1369, 16
        %s1371 = scalar_lea.vmem [#allocation11], %s1370
        // Predicated region
        $region101: #{tpu_custom_call.1} parent=83 // pred_check
          %p1372 = pneg %p399
        $region102: #{tpu_custom_call.1} parent=83 // pred_check_branch
          %1374 = sbr.rel (%p1372) target = $region104
        $region103: #{tpu_custom_call.1} parent=83 // pred_region
          %1376 = vsyncadd %s1368, 0
          %s1377 = smul.addr %s35, 2
          %s1378 = smul.addr %s1377, 8
          %s1379 = scalar_lea.hbm %s16, %s1378
          %s1380 = sshll.u32 %s1371, 4
          %s1381 = int_to_ptr.vmem [resolvable:$true] %s1380
          %s1382 = sshll.u32 %s1379, 4
          %s1383 = int_to_ptr.hbm [resolvable:$true] %s1382
          %1388 = dma.vmem_to_hbm [thread:$0]  %s1381, 256, %s1383, %s1368, 128, 128, 8
        $region104: #{tpu_custom_call.1} parent=83 // pred_fallthru
          _
      $region84: #{tpu_custom_call.1} parent=5 // pred_fallthru
        _
      %p1389 = scmp.le.s32.totalorder 2, %s30
      // Predicated region
      $region105: #{tpu_custom_call.1} parent=5 // pred_check
        %p1390 = pneg %p1389
      $region106: #{tpu_custom_call.1} parent=5 // pred_check_branch
        %1392 = sbr.rel (%p1390) target = $region108
      $region107: #{tpu_custom_call.1} parent=5 // pred_region
        %s1393 = ssub.s32 %s30, 2
        // Predicated region
        $region109: #{tpu_custom_call.1} parent=107 // pred_check
          %p1394 = pneg %p405
        $region110: #{tpu_custom_call.1} parent=107 // pred_check_branch
          %1396 = sbr.rel (%p1394) target = $region112
        $region111: #{tpu_custom_call.1} parent=107 // pred_region
          %s1397 = sand.u32 %s390, 1
          %s1398 = scalar_lea.sflag [#allocation5], %s1397
          %s1399 = sand.u32 %s390, 1
          %s1400 = smul.addr %s1399, 16
          %s1401 = scalar_lea.vmem [#allocation11], %s1400
          %1403 = dma.done %s1398, 256
        $region112: #{tpu_custom_call.1} parent=107 // pred_fallthru
          _
      $region108: #{tpu_custom_call.1} parent=5 // pred_fallthru
        _
    $region6: #{tpu_custom_call.1} parent=1 // loop_footer
      %s34 = sadd.s32 1, %s30
    $region7: #{tpu_custom_call.1} parent=1 // loop_footer_branch
      %29 = sbr.rel target = $region3
    $region8: #{tpu_custom_call.1} parent=1 // loop_exit
      _
    %1404 = vsyncpa [#allocation4], 1
    %s1405 = scalar_lea.sflag [#allocation4], 1
    %1406 = vsyncpa %s1405, 1
    %1407 = vsyncpa [#allocation7], 1
    %1408 = vsyncpa [#allocation10], 1
    %1409 = vsyncpa [#allocation5], 1
    %s1410 = scalar_lea.sflag [#allocation5], 1
    %1411 = vsyncpa %s1410, 1

// kernel: tpu_custom_call.1
$region0: #{tpu_custom_call.1}
  #allocation0 [shape = 'u32[]', space=smem, size = 0x4, offset = 0x4, fixed_abs, tag = 'smem constant byte address 0x4 - core index']
  #allocation1 [shape = 'u32[72,128]{1,0:T(1,128)}', space=vmem, size = 0x9000, scoped, tag = 'internal scratch']
  #allocation2 [shape = 'bf16[16,32]{1,0:T(8,128)(2,1)}', space=vmem, size = 0x1000, scoped, tag = 'scratch operand']
  %s0 = inlined_call_operand.vmem [shape: f32[2,16,32], index: 0, kind: input, shape index: {}]
  %s1 = inlined_call_operand.hbm [shape: f32[2,16,32], index: 1, kind: input, shape index: {}]
  %s2 = inlined_call_operand.vmem [shape: bf16[32,64], index: 2, kind: input, shape index: {}]
  %s3 = inlined_call_operand.vmem [shape: f32[1,64], index: 3, kind: input, shape index: {}]
  %s4 = inlined_call_operand.hbm [shape: bf16[32,32], index: 4, kind: input, shape index: {}]
  %s5 = inlined_call_operand.vmem [shape: f32[1,32], index: 5, kind: input, shape index: {}]
  %s6 = inlined_call_operand.hbm [shape: bf16[32,32], index: 6, kind: input, shape index: {}]
  %s7 = inlined_call_operand.vmem [shape: f32[1,32], index: 7, kind: input, shape index: {}]
  %s8 = inlined_call_operand.hbm [shape: bf16[32,64], index: 8, kind: input, shape index: {}]
  %s9 = inlined_call_operand.vmem [shape: f32[1,64], index: 9, kind: input, shape index: {}]
  %s10 = inlined_call_operand.vmem [shape: bf16[64,32], index: 10, kind: input, shape index: {}]
  %s11 = inlined_call_operand.vmem [shape: f32[1,32], index: 11, kind: input, shape index: {}]
  %s12 = inlined_call_operand.vmem [shape: f32[1,32], index: 12, kind: input, shape index: {}]
  %s13 = inlined_call_operand.vmem [shape: f32[1,32], index: 13, kind: input, shape index: {}]
  %s14 = inlined_call_operand.vmem [shape: f32[1,32], index: 14, kind: input, shape index: {}]
  %s15 = inlined_call_operand.vmem [shape: f32[1,32], index: 15, kind: input, shape index: {}]
  %s16 = inlined_call_operand.hbm [shape: f32[2,16,32], index: 16, kind: output, shape index: {}]
  %s17 = sld [smem:[#allocation0]]
  $region113: #{tpu_custom_call.1} parent=0
    _
  %s19 = ssub.s32 1, %s17
  %s20 = scalar_select 0, %s19, %s17
  $region1: #{tpu_custom_call.1} parent=0
    #allocation3 [shape = 'u8[16384]{0}', space=vmem, size = 0x4000, scoped, tag = 'input window, operand 1']
    #allocation4 [shape = 's32[2]{0}', space=sflag, size = 0x8, scoped, tag = 'scoped memory for tpu_custom_call.1']
    #allocation5 [shape = 's32[2]{0}', space=sflag, size = 0x8, scoped, tag = 'scoped memory for tpu_custom_call.1']
    #allocation6 [shape = 'u8[8192]{0}', space=vmem, size = 0x2000, scoped, tag = 'input window, operand 4, single buffered']
    #allocation7 [shape = 's32[1]{0}', space=sflag, size = 0x4, scoped, tag = 'scoped memory for tpu_custom_call.1']
    #allocation8 [shape = 'u8[8192]{0}', space=vmem, size = 0x2000, scoped, tag = 'input window, operand 6, single buffered']
    #allocation9 [shape = 'u8[8192]{0}', space=vmem, size = 0x2000, scoped, tag = 'input window, operand 8, single buffered']
    #allocation10 [shape = 's32[1]{0}', space=sflag, size = 0x4, scoped, tag = 'scoped memory for tpu_custom_call.1']
    #allocation11 [shape = 'u8[16384]{0}', space=vmem, size = 0x4000, scoped, tag = 'output window, operand 0']
    %21 = vsyncpa [#allocation4], 0
    %s22 = scalar_lea.sflag [#allocation4], 1
    %23 = vsyncpa %s22, 0
    %24 = vsyncpa [#allocation7], 0
    %25 = vsyncpa [#allocation10], 0
    %26 = vsyncpa [#allocation5], 0
    %s27 = scalar_lea.sflag [#allocation5], 1
    %28 = vsyncpa %s27, 0
    loop: start=0, step=1, limit=4
    $region2: #{tpu_custom_call.1} parent=1 // loop_pre_header
      _
    $region3: #{tpu_custom_call.1} parent=1 // loop_header
      %s30 = sphi 0, %s34
      %p31 = scmp.ge.s32.totalorder %s30, 4
      %s40 = sphi 0, %s42
      %s43 = sphi 0, %s40
      %s44 = sphi 0, %s43
      %s60 = sphi 0, %s44
      %s66 = sphi 0, %s68
      %s69 = sphi 0, %s66
      %s70 = sphi 0, %s69
      %s86 = sphi 0, %s70
      %s90 = sphi 0, %s90
      %s92 = sphi 0, %s90
      %s93 = sphi 0, %s92
      %s107 = sphi 0, %s93
      %s111 = sphi 0, %s111
      %s113 = sphi 0, %s111
      %s114 = sphi 0, %s113
      %s128 = sphi 0, %s114
      %s132 = sphi 0, %s132
      %s134 = sphi 0, %s132
      %s135 = sphi 0, %s134
      %s149 = sphi 0, %s135
      %s153 = sphi 0, %s153
      %s155 = sphi 0, %s153
      %s156 = sphi 0, %s155
      %s170 = sphi 0, %s156
      %s174 = sphi 0, %s174
      %s176 = sphi 0, %s174
      %s177 = sphi 0, %s176
      %s191 = sphi 0, %s177
      %s195 = sphi 0, %s195
      %s197 = sphi 0, %s195
      %s198 = sphi 0, %s197
      %s212 = sphi 0, %s198
      %s216 = sphi 0, %s216
      %s218 = sphi 0, %s216
      %s219 = sphi 0, %s218
      %s233 = sphi 0, %s219
      %s237 = sphi 0, %s237
      %s239 = sphi 0, %s237
      %s240 = sphi 0, %s239
      %s254 = sphi 0, %s240
      %s258 = sphi 0, %s258
      %s260 = sphi 0, %s258
      %s261 = sphi 0, %s260
      %s275 = sphi 0, %s261
      %s279 = sphi 0, %s279
      %s281 = sphi 0, %s279
      %s282 = sphi 0, %s281
      %s296 = sphi 0, %s282
      %s300 = sphi 0, %s300
      %s302 = sphi 0, %s300
      %s303 = sphi 0, %s302
      %s317 = sphi 0, %s303
      %s321 = sphi 0, %s321
      %s323 = sphi 0, %s321
      %s324 = sphi 0, %s323
      %s338 = sphi 0, %s324
      %s342 = sphi 0, %s342
      %s344 = sphi 0, %s342
      %s345 = sphi 0, %s344
      %s359 = sphi 0, %s345
      %s363 = sphi 0, %s363
      %s365 = sphi 0, %s363
      %s366 = sphi 0, %s365
      %s380 = sphi 0, %s366
      %s386 = sphi 0, %s388
      %s389 = sphi 0, %s386
      %s390 = sphi 0, %s389
      %s406 = sphi 0, %s390
    $region4: #{tpu_custom_call.1} parent=1 // loop_header_branch
      %33 = sbr.rel (%p31) target = $region8
    $region5: #{tpu_custom_call.1} parent=1 // loop_body
      %s35 = ssub.s32 %s30, 1
      %s36 = ssub.s32 %s30, 2
      %s37 = sadd.s32 %s30, 1
      %s38 = ssub.s32 %s30, %s37
      %p39 = scmp.eq.s32.totalorder %s38, 0
      %s41 = sadd.s32 %s40, 1
      %s42 = scalar_select %p39, %s40, %s41
      %p45 = pneg %p39
      %p46 = scmp.eq.s32.totalorder %s30, 1
      %p47 = por %p45, %p46
      %p48 = scmp.ne.s32.totalorder %s40, %s43
      %p49 = scmp.eq.s32.totalorder %s30, 0
      %p50 = por %p48, %p49
      %p51 = scmp.ne.s32.totalorder %s40, %s43
      %p52 = scmp.eq.s32.totalorder %s35, 1
      %p53 = por %p51, %p52
      %p54 = scmp.ne.s32.totalorder %s43, %s44
      %p55 = scmp.eq.s32.totalorder %s35, 0
      %p56 = por %p54, %p55
      %p57 = scmp.ne.s32.totalorder %s43, %s44
      %p58 = scmp.eq.s32.totalorder %s36, 1
      %p59 = por %p57, %p58
      %p61 = scmp.ne.s32.totalorder %s44, %s60
      %p62 = scmp.eq.s32.totalorder %s36, 0
      %p63 = por %p61, %p62
      %s64 = ssub.s32 %s30, %s37
      %p65 = scmp.eq.s32.totalorder %s64, 0
      %s67 = sadd.s32 %s66, 1
      %s68 = scalar_select %p65, %s66, %s67
      %p71 = pneg %p65
      %p72 = scmp.eq.s32.totalorder %s30, 1
      %p73 = por %p71, %p72
      %p74 = scmp.ne.s32.totalorder %s66, %s69
      %p75 = scmp.eq.s32.totalorder %s30, 0
      %p76 = por %p74, %p75
      %p77 = scmp.ne.s32.totalorder %s66, %s69
      %p78 = scmp.eq.s32.totalorder %s35, 1
      %p79 = por %p77, %p78
      %p80 = scmp.ne.s32.totalorder %s69, %s70
      %p81 = scmp.eq.s32.totalorder %s35, 0
      %p82 = por %p80, %p81
      %p83 = scmp.ne.s32.totalorder %s69, %s70
      %p84 = scmp.eq.s32.totalorder %s36, 1
      %p85 = por %p83, %p84
      %p87 = scmp.ne.s32.totalorder %s70, %s86
      %p88 = scmp.eq.s32.totalorder %s36, 0
      %p89 = por %p87, %p88
      %s91 = sadd.s32 %s90, 1
      %p94 = scmp.eq.s32.totalorder %s30, 1
      %p95 = scmp.ne.s32.totalorder %s90, %s92
      %p96 = scmp.eq.s32.totalorder %s30, 0
      %p97 = por %p95, %p96
      %p98 = scmp.ne.s32.totalorder %s90, %s92
      %p99 = scmp.eq.s32.totalorder %s35, 1
      %p100 = por %p98, %p99
      %p101 = scmp.ne.s32.totalorder %s92, %s93
      %p102 = scmp.eq.s32.totalorder %s35, 0
      %p103 = por %p101, %p102
      %p104 = scmp.ne.s32.totalorder %s92, %s93
      %p105 = scmp.eq.s32.totalorder %s36, 1
      %p106 = por %p104, %p105
      %p108 = scmp.ne.s32.totalorder %s93, %s107
      %p109 = scmp.eq.s32.totalorder %s36, 0
      %p110 = por %p108, %p109
      %s112 = sadd.s32 %s111, 1
      %p115 = scmp.eq.s32.totalorder %s30, 1
      %p116 = scmp.ne.s32.totalorder %s111, %s113
      %p117 = scmp.eq.s32.totalorder %s30, 0
      %p118 = por %p116, %p117
      %p119 = scmp.ne.s32.totalorder %s111, %s113
      %p120 = scmp.eq.s32.totalorder %s35, 1
      %p121 = por %p119, %p120
      %p122 = scmp.ne.s32.totalorder %s113, %s114
      %p123 = scmp.eq.s32.totalorder %s35, 0
      %p124 = por %p122, %p123
      %p125 = scmp.ne.s32.totalorder %s113, %s114
      %p126 = scmp.eq.s32.totalorder %s36, 1
      %p127 = por %p125, %p126
      %p129 = scmp.ne.s32.totalorder %s114, %s128
      %p130 = scmp.eq.s32.totalorder %s36, 0
      %p131 = por %p129, %p130
      %s133 = sadd.s32 %s132, 1
      %p136 = scmp.eq.s32.totalorder %s30, 1
      %p137 = scmp.ne.s32.totalorder %s132, %s134
      %p138 = scmp.eq.s32.totalorder %s30, 0
      %p139 = por %p137, %p138
      %p140 = scmp.ne.s32.totalorder %s132, %s134
      %p141 = scmp.eq.s32.totalorder %s35, 1
      %p142 = por %p140, %p141
      %p143 = scmp.ne.s32.totalorder %s134, %s135
      %p144 = scmp.eq.s32.totalorder %s35, 0
      %p145 = por %p143, %p144
      %p146 = scmp.ne.s32.totalorder %s134, %s135
      %p147 = scmp.eq.s32.totalorder %s36, 1
      %p148 = por %p146, %p147
      %p150 = scmp.ne.s32.totalorder %s135, %s149
      %p151 = scmp.eq.s32.totalorder %s36, 0
      %p152 = por %p150, %p151
      %s154 = sadd.s32 %s153, 1
      %p157 = scmp.eq.s32.totalorder %s30, 1
      %p158 = scmp.ne.s32.totalorder %s153, %s155
      %p159 = scmp.eq.s32.totalorder %s30, 0
      %p160 = por %p158, %p159
      %p161 = scmp.ne.s32.totalorder %s153, %s155
      %p162 = scmp.eq.s32.totalorder %s35, 1
      %p163 = por %p161, %p162
      %p164 = scmp.ne.s32.totalorder %s155, %s156
      %p165 = scmp.eq.s32.totalorder %s35, 0
      %p166 = por %p164, %p165
      %p167 = scmp.ne.s32.totalorder %s155, %s156
      %p168 = scmp.eq.s32.totalorder %s36, 1
      %p169 = por %p167, %p168
      %p171 = scmp.ne.s32.totalorder %s156, %s170
      %p172 = scmp.eq.s32.totalorder %s36, 0
      %p173 = por %p171, %p172
      %s175 = sadd.s32 %s174, 1
      %p178 = scmp.eq.s32.totalorder %s30, 1
      %p179 = scmp.ne.s32.totalorder %s174, %s176
      %p180 = scmp.eq.s32.totalorder %s30, 0
      %p181 = por %p179, %p180
      %p182 = scmp.ne.s32.totalorder %s174, %s176
      %p183 = scmp.eq.s32.totalorder %s35, 1
      %p184 = por %p182, %p183
      %p185 = scmp.ne.s32.totalorder %s176, %s177
      %p186 = scmp.eq.s32.totalorder %s35, 0
      %p187 = por %p185, %p186
      %p188 = scmp.ne.s32.totalorder %s176, %s177
      %p189 = scmp.eq.s32.totalorder %s36, 1
      %p190 = por %p188, %p189
      %p192 = scmp.ne.s32.totalorder %s177, %s191
      %p193 = scmp.eq.s32.totalorder %s36, 0
      %p194 = por %p192, %p193
      %s196 = sadd.s32 %s195, 1
      %p199 = scmp.eq.s32.totalorder %s30, 1
      %p200 = scmp.ne.s32.totalorder %s195, %s197
      %p201 = scmp.eq.s32.totalorder %s30, 0
      %p202 = por %p200, %p201
      %p203 = scmp.ne.s32.totalorder %s195, %s197
      %p204 = scmp.eq.s32.totalorder %s35, 1
      %p205 = por %p203, %p204
      %p206 = scmp.ne.s32.totalorder %s197, %s198
      %p207 = scmp.eq.s32.totalorder %s35, 0
      %p208 = por %p206, %p207
      %p209 = scmp.ne.s32.totalorder %s197, %s198
      %p210 = scmp.eq.s32.totalorder %s36, 1
      %p211 = por %p209, %p210
      %p213 = scmp.ne.s32.totalorder %s198, %s212
      %p214 = scmp.eq.s32.totalorder %s36, 0
      %p215 = por %p213, %p214
      %s217 = sadd.s32 %s216, 1
      %p220 = scmp.eq.s32.totalorder %s30, 1
      %p221 = scmp.ne.s32.totalorder %s216, %s218
      %p222 = scmp.eq.s32.totalorder %s30, 0
      %p223 = por %p221, %p222
      %p224 = scmp.ne.s32.totalorder %s216, %s218
      %p225 = scmp.eq.s32.totalorder %s35, 1
      %p226 = por %p224, %p225
      %p227 = scmp.ne.s32.totalorder %s218, %s219
      %p228 = scmp.eq.s32.totalorder %s35, 0
      %p229 = por %p227, %p228
      %p230 = scmp.ne.s32.totalorder %s218, %s219
      %p231 = scmp.eq.s32.totalorder %s36, 1
      %p232 = por %p230, %p231
      %p234 = scmp.ne.s32.totalorder %s219, %s233
      %p235 = scmp.eq.s32.totalorder %s36, 0
      %p236 = por %p234, %p235
      %s238 = sadd.s32 %s237, 1
      %p241 = scmp.eq.s32.totalorder %s30, 1
      %p242 = scmp.ne.s32.totalorder %s237, %s239
      %p243 = scmp.eq.s32.totalorder %s30, 0
      %p244 = por %p242, %p243
      %p245 = scmp.ne.s32.totalorder %s237, %s239
      %p246 = scmp.eq.s32.totalorder %s35, 1
      %p247 = por %p245, %p246
      %p248 = scmp.ne.s32.totalorder %s239, %s240
      %p249 = scmp.eq.s32.totalorder %s35, 0
      %p250 = por %p248, %p249
      %p251 = scmp.ne.s32.totalorder %s239, %s240
      %p252 = scmp.eq.s32.totalorder %s36, 1
      %p253 = por %p251, %p252
      %p255 = scmp.ne.s32.totalorder %s240, %s254
      %p256 = scmp.eq.s32.totalorder %s36, 0
      %p257 = por %p255, %p256
      %s259 = sadd.s32 %s258, 1
      %p262 = scmp.eq.s32.totalorder %s30, 1
      %p263 = scmp.ne.s32.totalorder %s258, %s260
      %p264 = scmp.eq.s32.totalorder %s30, 0
      %p265 = por %p263, %p264
      %p266 = scmp.ne.s32.totalorder %s258, %s260
      %p267 = scmp.eq.s32.totalorder %s35, 1
      %p268 = por %p266, %p267
      %p269 = scmp.ne.s32.totalorder %s260, %s261
      %p270 = scmp.eq.s32.totalorder %s35, 0
      %p271 = por %p269, %p270
      %p272 = scmp.ne.s32.totalorder %s260, %s261
      %p273 = scmp.eq.s32.totalorder %s36, 1
      %p274 = por %p272, %p273
      %p276 = scmp.ne.s32.totalorder %s261, %s275
      %p277 = scmp.eq.s32.totalorder %s36, 0
      %p278 = por %p276, %p277
      %s280 = sadd.s32 %s279, 1
      %p283 = scmp.eq.s32.totalorder %s30, 1
      %p284 = scmp.ne.s32.totalorder %s279, %s281
      %p285 = scmp.eq.s32.totalorder %s30, 0
      %p286 = por %p284, %p285
      %p287 = scmp.ne.s32.totalorder %s279, %s281
      %p288 = scmp.eq.s32.totalorder %s35, 1
      %p289 = por %p287, %p288
      %p290 = scmp.ne.s32.totalorder %s281, %s282
      %p291 = scmp.eq.s32.totalorder %s35, 0
      %p292 = por %p290, %p291
      %p293 = scmp.ne.s32.totalorder %s281, %s282
      %p294 = scmp.eq.s32.totalorder %s36, 1
      %p295 = por %p293, %p294
      %p297 = scmp.ne.s32.totalorder %s282, %s296
      %p298 = scmp.eq.s32.totalorder %s36, 0
      %p299 = por %p297, %p298
      %s301 = sadd.s32 %s300, 1
      %p304 = scmp.eq.s32.totalorder %s30, 1
      %p305 = scmp.ne.s32.totalorder %s300, %s302
      %p306 = scmp.eq.s32.totalorder %s30, 0
      %p307 = por %p305, %p306
      %p308 = scmp.ne.s32.totalorder %s300, %s302
      %p309 = scmp.eq.s32.totalorder %s35, 1
      %p310 = por %p308, %p309
      %p311 = scmp.ne.s32.totalorder %s302, %s303
      %p312 = scmp.eq.s32.totalorder %s35, 0
      %p313 = por %p311, %p312
      %p314 = scmp.ne.s32.totalorder %s302, %s303
      %p315 = scmp.eq.s32.totalorder %s36, 1
      %p316 = por %p314, %p315
      %p318 = scmp.ne.s32.totalorder %s303, %s317
      %p319 = scmp.eq.s32.totalorder %s36, 0
      %p320 = por %p318, %p319
      %s322 = sadd.s32 %s321, 1
      %p325 = scmp.eq.s32.totalorder %s30, 1
      %p326 = scmp.ne.s32.totalorder %s321, %s323
      %p327 = scmp.eq.s32.totalorder %s30, 0
      %p328 = por %p326, %p327
      %p329 = scmp.ne.s32.totalorder %s321, %s323
      %p330 = scmp.eq.s32.totalorder %s35, 1
      %p331 = por %p329, %p330
      %p332 = scmp.ne.s32.totalorder %s323, %s324
      %p333 = scmp.eq.s32.totalorder %s35, 0
      %p334 = por %p332, %p333
      %p335 = scmp.ne.s32.totalorder %s323, %s324
      %p336 = scmp.eq.s32.totalorder %s36, 1
      %p337 = por %p335, %p336
      %p339 = scmp.ne.s32.totalorder %s324, %s338
      %p340 = scmp.eq.s32.totalorder %s36, 0
      %p341 = por %p339, %p340
      %s343 = sadd.s32 %s342, 1
      %p346 = scmp.eq.s32.totalorder %s30, 1
      %p347 = scmp.ne.s32.totalorder %s342, %s344
      %p348 = scmp.eq.s32.totalorder %s30, 0
      %p349 = por %p347, %p348
      %p350 = scmp.ne.s32.totalorder %s342, %s344
      %p351 = scmp.eq.s32.totalorder %s35, 1
      %p352 = por %p350, %p351
      %p353 = scmp.ne.s32.totalorder %s344, %s345
      %p354 = scmp.eq.s32.totalorder %s35, 0
      %p355 = por %p353, %p354
      %p356 = scmp.ne.s32.totalorder %s344, %s345
      %p357 = scmp.eq.s32.totalorder %s36, 1
      %p358 = por %p356, %p357
      %p360 = scmp.ne.s32.totalorder %s345, %s359
      %p361 = scmp.eq.s32.totalorder %s36, 0
      %p362 = por %p360, %p361
      %s364 = sadd.s32 %s363, 1
      %p367 = scmp.eq.s32.totalorder %s30, 1
      %p368 = scmp.ne.s32.totalorder %s363, %s365
      %p369 = scmp.eq.s32.totalorder %s30, 0
      %p370 = por %p368, %p369
      %p371 = scmp.ne.s32.totalorder %s363, %s365
      %p372 = scmp.eq.s32.totalorder %s35, 1
      %p373 = por %p371, %p372
      %p374 = scmp.ne.s32.totalorder %s365, %s366
      %p375 = scmp.eq.s32.totalorder %s35, 0
      %p376 = por %p374, %p375
      %p377 = scmp.ne.s32.totalorder %s365, %s366
      %p378 = scmp.eq.s32.totalorder %s36, 1
      %p379 = por %p377, %p378
      %p381 = scmp.ne.s32.totalorder %s366, %s380
      %p382 = scmp.eq.s32.totalorder %s36, 0
      %p383 = por %p381, %p382
      %s384 = ssub.s32 %s30, %s37
      %p385 = scmp.eq.s32.totalorder %s384, 0
      %s387 = sadd.s32 %s386, 1
      %s388 = scalar_select %p385, %s386, %s387
      %p391 = pneg %p385
      %p392 = scmp.eq.s32.totalorder %s30, 1
      %p393 = por %p391, %p392
      %p394 = scmp.ne.s32.totalorder %s386, %s389
      %p395 = scmp.eq.s32.totalorder %s30, 0
      %p396 = por %p394, %p395
      %p397 = scmp.ne.s32.totalorder %s386, %s389
      %p398 = scmp.eq.s32.totalorder %s35, 1
      %p399 = por %p397, %p398
      %p400 = scmp.ne.s32.totalorder %s389, %s390
      %p401 = scmp.eq.s32.totalorder %s35, 0
      %p402 = por %p400, %p401
      %p403 = scmp.ne.s32.totalorder %s389, %s390
      %p404 = scmp.eq.s32.totalorder %s36, 1
      %p405 = por %p403, %p404
      %p407 = scmp.ne.s32.totalorder %s390, %s406
      %p408 = scmp.eq.s32.totalorder %s36, 0
      %p409 = por %p407, %p408
      %p410 = scmp.le.s32.totalorder 1, %s30
      %p411 = scmp.lt.s32.totalorder %s30, 3
      %p412 = pnand %p410, %p411
      %p413 = pneg %p412
      // Predicated region
      $region9: #{tpu_custom_call.1} parent=5 // pred_check
        _
      $region10: #{tpu_custom_call.1} parent=5 // pred_check_branch
        %415 = sbr.rel (%p412) target = $region12
      $region11: #{tpu_custom_call.1} parent=5 // pred_region
        %s416 = ssub.s32 %s30, 1
        // Predicated region
        $region13: #{tpu_custom_call.1} parent=11 // pred_check
          %p417 = pneg %p103
        $region14: #{tpu_custom_call.1} parent=11 // pred_check_branch
          %419 = sbr.rel (%p417) target = $region16
        $region15: #{tpu_custom_call.1} parent=11 // pred_region
          _
        $region16: #{tpu_custom_call.1} parent=11 // pred_fallthru
          _
        // Predicated region
        $region17: #{tpu_custom_call.1} parent=11 // pred_check
          %p420 = pneg %p124
        $region18: #{tpu_custom_call.1} parent=11 // pred_check_branch
          %422 = sbr.rel (%p420) target = $region20
        $region19: #{tpu_custom_call.1} parent=11 // pred_region
          _
        $region20: #{tpu_custom_call.1} parent=11 // pred_fallthru
          _
        // Predicated region
        $region21: #{tpu_custom_call.1} parent=11 // pred_check
          %p423 = pneg %p145
        $region22: #{tpu_custom_call.1} parent=11 // pred_check_branch
          %425 = sbr.rel (%p423) target = $region24
        $region23: #{tpu_custom_call.1} parent=11 // pred_region
          %427 = vsyncadd [#allocation7], 0
          %s428 = sshll.u32 %s4, 4
          %s429 = int_to_ptr.hbm [resolvable:$true] %s428
          %s430 = sshll.u32 [#allocation6], 4
          %s431 = int_to_ptr.vmem [resolvable:$true] %s430
          %436 = dma.hbm_to_vmem [thread:$0]  %s429, 256, %s431, [#allocation7], 64, 64, 4
        $region24: #{tpu_custom_call.1} parent=11 // pred_fallthru
          _
        // Predicated region
        $region25: #{tpu_custom_call.1} parent=11 // pred_check
          %p437 = pneg %p166
        $region26: #{tpu_custom_call.1} parent=11 // pred_check_branch
          %439 = sbr.rel (%p437) target = $region28
        $region27: #{tpu_custom_call.1} parent=11 // pred_region
          _
        $region28: #{tpu_custom_call.1} parent=11 // pred_fallthru
          _
        // Predicated region
        $region29: #{tpu_custom_call.1} parent=11 // pred_check
          %p440 = pneg %p187
        $region30: #{tpu_custom_call.1} parent=11 // pred_check_branch
          %442 = sbr.rel (%p440) target = $region32
        $region31: #{tpu_custom_call.1} parent=11 // pred_region
          %444 = vsyncadd [#allocation7], 0
          %s445 = sshll.u32 %s6, 4
          %s446 = int_to_ptr.hbm [resolvable:$true] %s445
          %s447 = sshll.u32 [#allocation8], 4
          %s448 = int_to_ptr.vmem [resolvable:$true] %s447
          %453 = dma.hbm_to_vmem [thread:$0]  %s446, 256, %s448, [#allocation7], 64, 64, 4
        $region32: #{tpu_custom_call.1} parent=11 // pred_fallthru
          _
        // Predicated region
        $region33: #{tpu_custom_call.1} parent=11 // pred_check
          %p454 = pneg %p208
        $region34: #{tpu_custom_call.1} parent=11 // pred_check_branch
          %456 = sbr.rel (%p454) target = $region36
        $region35: #{tpu_custom_call.1} parent=11 // pred_region
          _
        $region36: #{tpu_custom_call.1} parent=11 // pred_fallthru
          _
        // Predicated region
        $region37: #{tpu_custom_call.1} parent=11 // pred_check
          %p457 = pneg %p229
        $region38: #{tpu_custom_call.1} parent=11 // pred_check_branch
          %459 = sbr.rel (%p457) target = $region40
        $region39: #{tpu_custom_call.1} parent=11 // pred_region
          %461 = vsyncadd [#allocation10], 0
          %s462 = sshll.u32 %s8, 4
          %s463 = int_to_ptr.hbm [resolvable:$true] %s462
          %s464 = sshll.u32 [#allocation9], 4
          %s465 = int_to_ptr.vmem [resolvable:$true] %s464
          %470 = dma.hbm_to_vmem [thread:$0]  %s463, 256, %s465, [#allocation10], 64, 64, 4
        $region40: #{tpu_custom_call.1} parent=11 // pred_fallthru
          _
        // Predicated region
        $region41: #{tpu_custom_call.1} parent=11 // pred_check
          %p471 = pneg %p250
        $region42: #{tpu_custom_call.1} parent=11 // pred_check_branch
          %473 = sbr.rel (%p471) target = $region44
        $region43: #{tpu_custom_call.1} parent=11 // pred_region
          _
        $region44: #{tpu_custom_call.1} parent=11 // pred_fallthru
          _
        // Predicated region
        $region45: #{tpu_custom_call.1} parent=11 // pred_check
          %p474 = pneg %p271
        $region46: #{tpu_custom_call.1} parent=11 // pred_check_branch
          %476 = sbr.rel (%p474) target = $region48
        $region47: #{tpu_custom_call.1} parent=11 // pred_region
          _
        $region48: #{tpu_custom_call.1} parent=11 // pred_fallthru
          _
        // Predicated region
        $region49: #{tpu_custom_call.1} parent=11 // pred_check
          %p477 = pneg %p292
        $region50: #{tpu_custom_call.1} parent=11 // pred_check_branch
          %479 = sbr.rel (%p477) target = $region52
        $region51: #{tpu_custom_call.1} parent=11 // pred_region
          _
        $region52: #{tpu_custom_call.1} parent=11 // pred_fallthru
          _
        // Predicated region
        $region53: #{tpu_custom_call.1} parent=11 // pred_check
          %p480 = pneg %p313
        $region54: #{tpu_custom_call.1} parent=11 // pred_check_branch
          %482 = sbr.rel (%p480) target = $region56
        $region55: #{tpu_custom_call.1} parent=11 // pred_region
          _
        $region56: #{tpu_custom_call.1} parent=11 // pred_fallthru
          _
        // Predicated region
        $region57: #{tpu_custom_call.1} parent=11 // pred_check
          %p483 = pneg %p334
        $region58: #{tpu_custom_call.1} parent=11 // pred_check_branch
          %485 = sbr.rel (%p483) target = $region60
        $region59: #{tpu_custom_call.1} parent=11 // pred_region
          _
        $region60: #{tpu_custom_call.1} parent=11 // pred_fallthru
          _
        // Predicated region
        $region61: #{tpu_custom_call.1} parent=11 // pred_check
          %p486 = pneg %p355
        $region62: #{tpu_custom_call.1} parent=11 // pred_check_branch
          %488 = sbr.rel (%p486) target = $region64
        $region63: #{tpu_custom_call.1} parent=11 // pred_region
          _
        $region64: #{tpu_custom_call.1} parent=11 // pred_fallthru
          _
        // Predicated region
        $region65: #{tpu_custom_call.1} parent=11 // pred_check
          %p489 = pneg %p376
        $region66: #{tpu_custom_call.1} parent=11 // pred_check_branch
          %491 = sbr.rel (%p489) target = $region68
        $region67: #{tpu_custom_call.1} parent=11 // pred_region
          _
        $region68: #{tpu_custom_call.1} parent=11 // pred_fallthru
          _
      $region12: #{tpu_custom_call.1} parent=5 // pred_fallthru
        _
      %p492 = scmp.lt.s32.totalorder %s30, 2
      // Predicated region
      $region69: #{tpu_custom_call.1} parent=5 // pred_check
        %p493 = pneg %p492
      $region70: #{tpu_custom_call.1} parent=5 // pred_check_branch
        %495 = sbr.rel (%p493) target = $region72
      $region71: #{tpu_custom_call.1} parent=5 // pred_region
        // Predicated region
        $region73: #{tpu_custom_call.1} parent=71 // pred_check
          %p496 = pneg %p50
        $region74: #{tpu_custom_call.1} parent=71 // pred_check_branch
          %498 = sbr.rel (%p496) target = $region76
        $region75: #{tpu_custom_call.1} parent=71 // pred_region
          %p499 = scmp.lt.s32.totalorder %s30, 1
          %s500 = scalar_select %p499, %s30, 1
          %s501 = smul.addr %s500, 2
          %s502 = smul.addr %s501, 8
          %s503 = scalar_lea.vmem %s0, %s502
        $region76: #{tpu_custom_call.1} parent=71 // pred_fallthru
          _
        // Predicated region
        $region77: #{tpu_custom_call.1} parent=71 // pred_check
          %p504 = pneg %p76
        $region78: #{tpu_custom_call.1} parent=71 // pred_check_branch
          %506 = sbr.rel (%p504) target = $region80
        $region79: #{tpu_custom_call.1} parent=71 // pred_region
          %s507 = sand.u32 %s66, 1
          %s508 = scalar_lea.sflag [#allocation4], %s507
          %s509 = sand.u32 %s66, 1
          %s510 = smul.addr %s509, 16
          %s511 = scalar_lea.vmem [#allocation3], %s510
          %513 = vsyncadd %s508, 0
          %s514 = smul.addr %s30, 2
          %s515 = smul.addr %s514, 8
          %s516 = scalar_lea.hbm %s1, %s515
          %s517 = sshll.u32 %s516, 4
          %s518 = int_to_ptr.hbm [resolvable:$true] %s517
          %s519 = sshll.u32 %s511, 4
          %s520 = int_to_ptr.vmem [resolvable:$true] %s519
          %525 = dma.hbm_to_vmem [thread:$0]  %s518, 256, %s520, %s508, 128, 128, 8
        $region80: #{tpu_custom_call.1} parent=71 // pred_fallthru
          _
      $region72: #{tpu_custom_call.1} parent=5 // pred_fallthru
        _
      %p526 = scmp.le.s32.totalorder 1, %s30
      %p527 = scmp.lt.s32.totalorder %s30, 3
      %p528 = pnand %p526, %p527
      %p529 = pneg %p528
      // Predicated region
      $region81: #{tpu_custom_call.1} parent=5 // pred_check
        _
      $region82: #{tpu_custom_call.1} parent=5 // pred_check_branch
        %531 = sbr.rel (%p528) target = $region84
      $region83: #{tpu_custom_call.1} parent=5 // pred_region
        %s532 = ssub.s32 %s30, 1
        %s533 = sand.u32 %s69, 1
        %s534 = scalar_lea.sflag [#allocation4], %s533
        %s535 = sand.u32 %s69, 1
        %s536 = smul.addr %s535, 16
        %s537 = scalar_lea.vmem [#allocation3], %s536
        // Predicated region
        $region85: #{tpu_custom_call.1} parent=83 // pred_check
          %p538 = pneg %p82
        $region86: #{tpu_custom_call.1} parent=83 // pred_check_branch
          %540 = sbr.rel (%p538) target = $region88
        $region87: #{tpu_custom_call.1} parent=83 // pred_region
          %542 = dma.done %s534, 256
        $region88: #{tpu_custom_call.1} parent=83 // pred_fallthru
          _
        // Predicated region
        $region89: #{tpu_custom_call.1} parent=83 // pred_check
          %p543 = pneg %p145
        $region90: #{tpu_custom_call.1} parent=83 // pred_check_branch
          %545 = sbr.rel (%p543) target = $region92
        $region91: #{tpu_custom_call.1} parent=83 // pred_region
          %547 = dma.done [#allocation7], 256
        $region92: #{tpu_custom_call.1} parent=83 // pred_fallthru
          _
        // Predicated region
        $region93: #{tpu_custom_call.1} parent=83 // pred_check
          %p548 = pneg %p187
        $region94: #{tpu_custom_call.1} parent=83 // pred_check_branch
          %550 = sbr.rel (%p548) target = $region96
        $region95: #{tpu_custom_call.1} parent=83 // pred_region
          %552 = dma.done [#allocation7], 256
        $region96: #{tpu_custom_call.1} parent=83 // pred_fallthru
          _
        // Predicated region
        $region97: #{tpu_custom_call.1} parent=83 // pred_check
          %p553 = pneg %p229
        $region98: #{tpu_custom_call.1} parent=83 // pred_check_branch
          %555 = sbr.rel (%p553) target = $region100
        $region99: #{tpu_custom_call.1} parent=83 // pred_region
          %557 = dma.done [#allocation10], 256
        $region100: #{tpu_custom_call.1} parent=83 // pred_fallthru
          _
        %p558 = scmp.lt.s32.totalorder %s35, 1
        %s559 = scalar_select %p558, %s35, 1
        %s560 = smul.addr %s559, 2
        %s561 = smul.addr %s560, 8
        %s562 = scalar_lea.vmem %s0, %s561
        %p563 = pneg %p56
        %p564 = pneg %p53
        %s565 = sand.u32 %s69, 1
        %s566 = scalar_lea.sflag [#allocation4], %s565
        %s567 = sand.u32 %s69, 1
        %s568 = smul.addr %s567, 16
        %s569 = scalar_lea.vmem [#allocation3], %s568
        %p570 = pneg %p82
        %p571 = pneg %p79
        %p572 = pneg %p103
        %p573 = pneg %p100
        %p574 = pneg %p124
        %p575 = pneg %p121
        %p576 = pneg %p145
        %p577 = pneg %p142
        %p578 = pneg %p166
        %p579 = pneg %p163
        %p580 = pneg %p187
        %p581 = pneg %p184
        %p582 = pneg %p208
        %p583 = pneg %p205
        %p584 = pneg %p229
        %p585 = pneg %p226
        %p586 = pneg %p250
        %p587 = pneg %p247
        %p588 = pneg %p271
        %p589 = pneg %p268
        %p590 = pneg %p292
        %p591 = pneg %p289
        %p592 = pneg %p313
        %p593 = pneg %p310
        %p594 = pneg %p334
        %p595 = pneg %p331
        %p596 = pneg %p355
        %p597 = pneg %p352
        %p598 = pneg %p376
        %p599 = pneg %p373
        %p600 = pneg %p402
        %p601 = pneg %p399
        %s602 = sand.u32 %s389, 1
        %s603 = scalar_lea.sflag [#allocation5], %s602
        %s604 = sand.u32 %s389, 1
        %s605 = smul.addr %s604, 16
        %s606 = scalar_lea.vmem [#allocation11], %s605
        %p607 = scmp.lt.s32.totalorder %s35, 1
        %s608 = scalar_select %p607, %s35, 1
        %s609 = smul.addr %s608, 2
        %s610 = smul.addr %s609, 8
        %s611 = scalar_lea.vmem %s0, %s610
        %v613 = vld [vmem:[%s611] sm:$0xff]
        %v614 = vld [vmem:[%s611 + $0x8] sm:$0xff]
        %v615 = vld [vmem:[%s537] sm:$0xff]
        %v616 = vld [vmem:[%s537 + $0x8] sm:$0xff]
        %v617 = vadd.f32 %v613, %v615
        %v618 = vadd.f32 %v614, %v616
        %v619 = vpack.c.bf16 %v618, %v617
        %v620 = vpack.c.bf16 %v614, %v613
        %v621 = vld [vmem:[%s2] sm:$0xf]
        %v622 = vld [vmem:[%s2 + $0x4] sm:$0xf]
        %v623 = vld [vmem:[%s2 + $0x8] sm:$0xf]
        %v624 = vld [vmem:[%s2 + $0xc] sm:$0xf]
        %v625 = vld [vmem:[%s3] sm:$0x1]
        %v627 = vperm.slane %v625, 0
        %v633 = vunpack.c.l.b16 %v621
        %v634 = vunpack.c.l.b16 %v622
        %v635 = vunpack.c.l.b16 %v623
        %v636 = vunpack.c.l.b16 %v624
        %v637 = vpack.c.b16 %v634, %v633
        %v638 = vpack.c.b16 %v636, %v635
        %vm641 = vcmask 261120
        %v643 = vsel %vm641, %v619, 0
        %645 = vmatpush.bf16.msra.mxu0 0
        %646 = vmatpush.bf16.msra.mxu0 0
        %647 = vmatpush.bf16.msra.mxu0 0
        %648 = vmatpush.bf16.msra.mxu0 0
        %649 = vmatpush.bf16.msra.mxu0 0
        %650 = vmatpush.bf16.msra.mxu0 0
        %651 = vmatpush.bf16.msra.mxu0 %v638
        %652 = vmatpush.bf16.msra.mxu0 %v637
        %653 = vmatmul.bf16.gmra.mxu0 %v643
        %v654 = vpop.f32.mrf.mxu0
        %v655 = vadd.f32 %v627, %v654
        %v656 = vpop.f32.mrf.mxu0
        %v657 = vadd.f32 %v627, %v656
        %658 = vdwg.mxu0
        %v659 = vld [vmem:[#allocation6] sm:$0xf]
        %v660 = vld [vmem:[#allocation6 + $0x4] sm:$0xf]
        %v661 = vld [vmem:[#allocation6 + $0x8] sm:$0xf]
        %v662 = vld [vmem:[#allocation6 + $0xc] sm:$0xf]
        %v663 = vld [vmem:[%s5] sm:$0x1]
        %v665 = vperm.slane %v663, 0
        %v671 = vunpack.c.l.b16 %v659
        %v672 = vunpack.c.l.b16 %v660
        %v673 = vunpack.c.l.b16 %v661
        %v674 = vunpack.c.l.b16 %v662
        %v675 = vpack.c.b16 %v672, %v671
        %v676 = vpack.c.b16 %v674, %v673
        %v680 = vsel %vm641, %v620, 0
        %682 = vmatpush.bf16.msra.mxu0 0
        %683 = vmatpush.bf16.msra.mxu0 0
        %684 = vmatpush.bf16.msra.mxu0 0
        %685 = vmatpush.bf16.msra.mxu0 0
        %686 = vmatpush.bf16.msra.mxu0 0
        %687 = vmatpush.bf16.msra.mxu0 0
        %688 = vmatpush.bf16.msra.mxu0 %v676
        %689 = vmatpush.bf16.msra.mxu0 %v675
        %690 = vmatmul.bf16.gmra.mxu0 %v680
        %v691 = vpop.f32.mrf.mxu0
        %v692 = vadd.f32 %v665, %v691
        %v693 = vpop.f32.mrf.mxu0
        %v694 = vadd.f32 %v665, %v693
        %695 = vdwg.mxu0
        %v696 = vpack.c.bf16 %v657, %v655
        %v697 = vpack.c.bf16 %v694, %v692
        %699 = vrot.lane.b32.xlu0 %v696, 96
        %v700 = vpop.permute.xlu0 %699
        %vm701 = vcmask 64512
        %v703 = vsel %vm701, %v696, 0
        %v706 = vsel %vm701, %v700, 0
        %708 = vmatpush.bf16.xpose.msra.mxu0 0
        %709 = vmatpush.bf16.xpose.msra.mxu0 0
        %710 = vmatpush.bf16.xpose.msra.mxu0 0
        %711 = vmatpush.bf16.xpose.msra.mxu0 0
        %712 = vmatpush.bf16.xpose.msra.mxu0 0
        %713 = vmatpush.bf16.xpose.msra.mxu0 0
        %714 = vmatpush.bf16.xpose.msra.mxu0 0
        %715 = vmatpush.bf16.xpose.msra.mxu0 %v706
        %716 = vmatmul.bf16.gmra.mxu0 %v703
        %v717 = vpop.f32.mrf.mxu0
        %v718 = vadd.f32 0.0, %v717
        %v719 = vpop.f32.mrf.mxu0
        %v720 = vadd.f32 0.0, %v719
        %721 = vdwg.mxu0
        %v722 = vmul.f32 %v718, 0.35355338
        %v723 = vmul.f32 %v720, 0.35355338
        %vm724 = vcmask 130048
        %v725 = vsel %vm724, %v722, -inf
        %726 = vmax.xlane.f32.xlu0 %v725
        %v727 = vpop.xlane.xlu0 %726
        %v728 = vsel %vm724, %v723, -inf
        %729 = vmax.xlane.f32.xlu0 %v728
        %v730 = vpop.xlane.xlu0 %729
        %v731 = vsub.f32 %v722, %v727
        %v732 = vsub.f32 %v723, %v730
        %v733 = vmul.f32 %v731, 1.442695
        %v734 = vpow.pop %v733
        %v735 = vmul.f32 %v732, 1.442695
        %v736 = vpow.pop %v735
        %v737 = vsel %vm724, %v734, 0.0
        %738 = vadd.xlane.f32.xlu0 %v737
        %v739 = vpop.xlane.xlu0 %738
        %v740 = vsel %vm724, %v736, 0.0
        %741 = vadd.xlane.f32.xlu0 %v740
        %v742 = vpop.xlane.xlu0 %741
        %v743 = vrcp.pop %v739
        %v744 = vrcp.pop %v742
        %v745 = vmul.f32 %v734, %v743
        %v746 = vmul.f32 %v736, %v744
        %v747 = vpack.c.bf16 %v746, %v745
        %v749 = vsel %vm724, %v747, 0
        %751 = vmatpush.bf16.msra.mxu0 0
        %752 = vmatpush.bf16.msra.mxu0 0
        %753 = vmatpush.bf16.msra.mxu0 0
        %754 = vmatpush.bf16.msra.mxu0 0
        %755 = vmatpush.bf16.msra.mxu0 0
        %756 = vmatpush.bf16.msra.mxu0 0
        %757 = vmatpush.bf16.msra.mxu0 0
        %758 = vmatpush.bf16.msra.mxu0 %v697
        %759 = vmatmul.bf16.gmra.mxu0 %v749
        %v760 = vpop.f32.mrf.mxu0
        %v761 = vadd.f32 0.0, %v760
        %v762 = vpop.f32.mrf.mxu0
        %v763 = vadd.f32 0.0, %v762
        %764 = vdwg.mxu0
        %v765 = vpack.c.bf16 %v761, %v761
        %v766 = vpack.c.bf16 %v763, %v763
        %vm767 = vcmask 60416
        %768 = vst.msk [vmem:[#allocation2] sm:$0xf] %vm767, %v765
        %769 = vst.msk [vmem:[#allocation2 + $0x4] sm:$0xf] %vm767, %v766
        %770 = vrot.lane.b32.xlu0 %v696, 120
        %v771 = vpop.permute.xlu0 %770
        %772 = vrot.lane.b32.xlu0 %v696, 88
        %v773 = vpop.permute.xlu0 %772
        %v775 = vsel %vm701, %v771, 0
        %v778 = vsel %vm701, %v773, 0
        %780 = vmatpush.bf16.xpose.msra.mxu0 0
        %781 = vmatpush.bf16.xpose.msra.mxu0 0
        %782 = vmatpush.bf16.xpose.msra.mxu0 0
        %783 = vmatpush.bf16.xpose.msra.mxu0 0
        %784 = vmatpush.bf16.xpose.msra.mxu0 0
        %785 = vmatpush.bf16.xpose.msra.mxu0 0
        %786 = vmatpush.bf16.xpose.msra.mxu0 0
        %787 = vmatpush.bf16.xpose.msra.mxu0 %v778
        %788 = vmatmul.bf16.gmra.mxu0 %v775
        %v789 = vpop.f32.mrf.mxu0
        %v790 = vadd.f32 0.0, %v789
        %v791 = vpop.f32.mrf.mxu0
        %v792 = vadd.f32 0.0, %v791
        %793 = vdwg.mxu0
        %v794 = vmul.f32 %v790, 0.35355338
        %v795 = vmul.f32 %v792, 0.35355338
        %v796 = vsel %vm724, %v794, -inf
        %797 = vmax.xlane.f32.xlu0 %v796
        %v798 = vpop.xlane.xlu0 %797
        %v799 = vsel %vm724, %v795, -inf
        %800 = vmax.xlane.f32.xlu0 %v799
        %v801 = vpop.xlane.xlu0 %800
        %v802 = vsub.f32 %v794, %v798
        %v803 = vsub.f32 %v795, %v801
        %v804 = vmul.f32 %v802, 1.442695
        %v805 = vpow.pop %v804
        %v806 = vmul.f32 %v803, 1.442695
        %v807 = vpow.pop %v806
        %v808 = vsel %vm724, %v805, 0.0
        %809 = vadd.xlane.f32.xlu0 %v808
        %v810 = vpop.xlane.xlu0 %809
        %v811 = vsel %vm724, %v807, 0.0
        %812 = vadd.xlane.f32.xlu0 %v811
        %v813 = vpop.xlane.xlu0 %812
        %v814 = vrcp.pop %v810
        %v815 = vrcp.pop %v813
        %v816 = vmul.f32 %v805, %v814
        %v817 = vmul.f32 %v807, %v815
        %v818 = vpack.c.bf16 %v817, %v816
        %820 = vrot.lane.b32.xlu0 %v697, 120
        %v821 = vpop.permute.xlu0 %820
        %v824 = vsel %vm724, %v818, 0
        %826 = vmatpush.bf16.msra.mxu0 0
        %827 = vmatpush.bf16.msra.mxu0 0
        %828 = vmatpush.bf16.msra.mxu0 0
        %829 = vmatpush.bf16.msra.mxu0 0
        %830 = vmatpush.bf16.msra.mxu0 0
        %831 = vmatpush.bf16.msra.mxu0 0
        %832 = vmatpush.bf16.msra.mxu0 0
        %833 = vmatpush.bf16.msra.mxu0 %v821
        %834 = vmatmul.bf16.gmra.mxu0 %v824
        %v835 = vpop.f32.mrf.mxu0
        %v836 = vadd.f32 0.0, %v835
        %v837 = vpop.f32.mrf.mxu0
        %v838 = vadd.f32 0.0, %v837
        %839 = vdwg.mxu0
        %v840 = vpack.c.bf16 %v836, %v836
        %v841 = vpack.c.bf16 %v838, %v838
        %844 = vrot.lane.b32.xlu0 %v840, 8
        %v845 = vpop.permute.xlu0 %844
        %846 = vrot.lane.b32.xlu0 %v841, 8
        %v847 = vpop.permute.xlu0 %846
        %vm850 = vcmask 126016
        %851 = vst.msk [vmem:[#allocation2] sm:$0xf] %vm850, %v845
        %852 = vst.msk [vmem:[#allocation2 + $0x4] sm:$0xf] %vm850, %v847
        %853 = vrot.lane.b32.xlu0 %v696, 112
        %v854 = vpop.permute.xlu0 %853
        %855 = vrot.lane.b32.xlu0 %v696, 80
        %v856 = vpop.permute.xlu0 %855
        %v858 = vsel %vm701, %v854, 0
        %v861 = vsel %vm701, %v856, 0
        %863 = vmatpush.bf16.xpose.msra.mxu0 0
        %864 = vmatpush.bf16.xpose.msra.mxu0 0
        %865 = vmatpush.bf16.xpose.msra.mxu0 0
        %866 = vmatpush.bf16.xpose.msra.mxu0 0
        %867 = vmatpush.bf16.xpose.msra.mxu0 0
        %868 = vmatpush.bf16.xpose.msra.mxu0 0
        %869 = vmatpush.bf16.xpose.msra.mxu0 0
        %870 = vmatpush.bf16.xpose.msra.mxu0 %v861
        %871 = vmatmul.bf16.gmra.mxu0 %v858
        %v872 = vpop.f32.mrf.mxu0
        %v873 = vadd.f32 0.0, %v872
        %v874 = vpop.f32.mrf.mxu0
        %v875 = vadd.f32 0.0, %v874
        %876 = vdwg.mxu0
        %v877 = vmul.f32 %v873, 0.35355338
        %v878 = vmul.f32 %v875, 0.35355338
        %v879 = vsel %vm724, %v877, -inf
        %880 = vmax.xlane.f32.xlu0 %v879
        %v881 = vpop.xlane.xlu0 %880
        %v882 = vsel %vm724, %v878, -inf
        %883 = vmax.xlane.f32.xlu0 %v882
        %v884 = vpop.xlane.xlu0 %883
        %v885 = vsub.f32 %v877, %v881
        %v886 = vsub.f32 %v878, %v884
        %v887 = vmul.f32 %v885, 1.442695
        %v888 = vpow.pop %v887
        %v889 = vmul.f32 %v886, 1.442695
        %v890 = vpow.pop %v889
        %v891 = vsel %vm724, %v888, 0.0
        %892 = vadd.xlane.f32.xlu0 %v891
        %v893 = vpop.xlane.xlu0 %892
        %v894 = vsel %vm724, %v890, 0.0
        %895 = vadd.xlane.f32.xlu0 %v894
        %v896 = vpop.xlane.xlu0 %895
        %v897 = vrcp.pop %v893
        %v898 = vrcp.pop %v896
        %v899 = vmul.f32 %v888, %v897
        %v900 = vmul.f32 %v890, %v898
        %v901 = vpack.c.bf16 %v900, %v899
        %902 = vrot.lane.b32.xlu0 %v697, 112
        %v903 = vpop.permute.xlu0 %902
        %v906 = vsel %vm724, %v901, 0
        %908 = vmatpush.bf16.msra.mxu0 0
        %909 = vmatpush.bf16.msra.mxu0 0
        %910 = vmatpush.bf16.msra.mxu0 0
        %911 = vmatpush.bf16.msra.mxu0 0
        %912 = vmatpush.bf16.msra.mxu0 0
        %913 = vmatpush.bf16.msra.mxu0 0
        %914 = vmatpush.bf16.msra.mxu0 0
        %915 = vmatpush.bf16.msra.mxu0 %v903
        %916 = vmatmul.bf16.gmra.mxu0 %v906
        %v917 = vpop.f32.mrf.mxu0
        %v918 = vadd.f32 0.0, %v917
        %v919 = vpop.f32.mrf.mxu0
        %v920 = vadd.f32 0.0, %v919
        %921 = vdwg.mxu0
        %v922 = vpack.c.bf16 %v918, %v918
        %v923 = vpack.c.bf16 %v920, %v920
        %926 = vrot.lane.b32.xlu0 %v922, 16
        %v927 = vpop.permute.xlu0 %926
        %928 = vrot.lane.b32.xlu0 %v923, 16
        %v929 = vpop.permute.xlu0 %928
        %vm932 = vcmask 191616
        %933 = vst.msk [vmem:[#allocation2] sm:$0xf] %vm932, %v927
        %934 = vst.msk [vmem:[#allocation2 + $0x4] sm:$0xf] %vm932, %v929
        %935 = vrot.lane.b32.xlu0 %v696, 104
        %v936 = vpop.permute.xlu0 %935
        %937 = vrot.lane.b32.xlu0 %v696, 72
        %v938 = vpop.permute.xlu0 %937
        %v940 = vsel %vm701, %v936, 0
        %v943 = vsel %vm701, %v938, 0
        %945 = vmatpush.bf16.xpose.msra.mxu0 0
        %946 = vmatpush.bf16.xpose.msra.mxu0 0
        %947 = vmatpush.bf16.xpose.msra.mxu0 0
        %948 = vmatpush.bf16.xpose.msra.mxu0 0
        %949 = vmatpush.bf16.xpose.msra.mxu0 0
        %950 = vmatpush.bf16.xpose.msra.mxu0 0
        %951 = vmatpush.bf16.xpose.msra.mxu0 0
        %952 = vmatpush.bf16.xpose.msra.mxu0 %v943
        %953 = vmatmul.bf16.gmra.mxu0 %v940
        %v954 = vpop.f32.mrf.mxu0
        %v955 = vadd.f32 0.0, %v954
        %v956 = vpop.f32.mrf.mxu0
        %v957 = vadd.f32 0.0, %v956
        %958 = vdwg.mxu0
        %v959 = vmul.f32 %v955, 0.35355338
        %v960 = vmul.f32 %v957, 0.35355338
        %v961 = vsel %vm724, %v959, -inf
        %962 = vmax.xlane.f32.xlu0 %v961
        %v963 = vpop.xlane.xlu0 %962
        %v964 = vsel %vm724, %v960, -inf
        %965 = vmax.xlane.f32.xlu0 %v964
        %v966 = vpop.xlane.xlu0 %965
        %v967 = vsub.f32 %v959, %v963
        %v968 = vsub.f32 %v960, %v966
        %v969 = vmul.f32 %v967, 1.442695
        %v970 = vpow.pop %v969
        %v971 = vmul.f32 %v968, 1.442695
        %v972 = vpow.pop %v971
        %v973 = vsel %vm724, %v970, 0.0
        %974 = vadd.xlane.f32.xlu0 %v973
        %v975 = vpop.xlane.xlu0 %974
        %v976 = vsel %vm724, %v972, 0.0
        %977 = vadd.xlane.f32.xlu0 %v976
        %v978 = vpop.xlane.xlu0 %977
        %v979 = vrcp.pop %v975
        %v980 = vrcp.pop %v978
        %v981 = vmul.f32 %v970, %v979
        %v982 = vmul.f32 %v972, %v980
        %v983 = vpack.c.bf16 %v982, %v981
        %984 = vrot.lane.b32.xlu0 %v697, 104
        %v985 = vpop.permute.xlu0 %984
        %v988 = vsel %vm724, %v983, 0
        %990 = vmatpush.bf16.msra.mxu0 0
        %991 = vmatpush.bf16.msra.mxu0 0
        %992 = vmatpush.bf16.msra.mxu0 0
        %993 = vmatpush.bf16.msra.mxu0 0
        %994 = vmatpush.bf16.msra.mxu0 0
        %995 = vmatpush.bf16.msra.mxu0 0
        %996 = vmatpush.bf16.msra.mxu0 0
        %997 = vmatpush.bf16.msra.mxu0 %v985
        %998 = vmatmul.bf16.gmra.mxu0 %v988
        %v999 = vpop.f32.mrf.mxu0
        %v1000 = vadd.f32 0.0, %v999
        %v1001 = vpop.f32.mrf.mxu0
        %v1002 = vadd.f32 0.0, %v1001
        %1003 = vdwg.mxu0
        %v1004 = vpack.c.bf16 %v1000, %v1000
        %v1005 = vpack.c.bf16 %v1002, %v1002
        %1008 = vrot.lane.b32.xlu0 %v1004, 24
        %v1009 = vpop.permute.xlu0 %1008
        %1010 = vrot.lane.b32.xlu0 %v1005, 24
        %v1011 = vpop.permute.xlu0 %1010
        %vm1014 = vcmask 257216
        %1015 = vst.msk [vmem:[#allocation2] sm:$0xf] %vm1014, %v1009
        %1016 = vst.msk [vmem:[#allocation2 + $0x4] sm:$0xf] %vm1014, %v1011
        %v1017 = vld [vmem:[#allocation2] sm:$0xf]
        %v1018 = vld [vmem:[#allocation2 + $0x4] sm:$0xf]
        %v1019 = vld [vmem:[#allocation8] sm:$0xf]
        %v1020 = vld [vmem:[#allocation8 + $0x4] sm:$0xf]
        %v1021 = vld [vmem:[#allocation8 + $0x8] sm:$0xf]
        %v1022 = vld [vmem:[#allocation8 + $0xc] sm:$0xf]
        %v1023 = vld [vmem:[%s7] sm:$0x1]
        %v1025 = vperm.slane %v1023, 0
        %v1029 = vunpack.c.l.b16 %v1017
        %v1030 = vunpack.c.l.b16 %v1018
        %v1031 = vpack.c.b16 %v1030, %v1029
        %v1036 = vunpack.c.l.b16 %v1019
        %v1037 = vunpack.c.l.b16 %v1020
        %v1038 = vunpack.c.l.b16 %v1021
        %v1039 = vunpack.c.l.b16 %v1022
        %v1040 = vpack.c.b16 %v1037, %v1036
        %v1041 = vpack.c.b16 %v1039, %v1038
        %v1045 = vsel %vm641, %v1031, 0
        %1047 = vmatpush.bf16.msra.mxu0 0
        %1048 = vmatpush.bf16.msra.mxu0 0
        %1049 = vmatpush.bf16.msra.mxu0 0
        %1050 = vmatpush.bf16.msra.mxu0 0
        %1051 = vmatpush.bf16.msra.mxu0 0
        %1052 = vmatpush.bf16.msra.mxu0 0
        %1053 = vmatpush.bf16.msra.mxu0 %v1041
        %1054 = vmatpush.bf16.msra.mxu0 %v1040
        %1055 = vmatmul.bf16.gmra.mxu0 %v1045
        %v1056 = vpop.f32.mrf.mxu0
        %v1057 = vadd.f32 %v1025, %v1056
        %v1058 = vpop.f32.mrf.mxu0
        %v1059 = vadd.f32 %v1025, %v1058
        %1060 = vdwg.mxu0
        %v1061 = vadd.f32 %v613, %v1057
        %v1062 = vadd.f32 %v614, %v1059
        %v1063 = vld [vmem:[%s12] sm:$0x1]
        %v1064 = vld [vmem:[%s13] sm:$0x1]
        %v1065 = vsel %vm641, %v1061, 0.0
        %1066 = vadd.xlane.f32.xlu0 %v1065
        %v1067 = vpop.xlane.xlu0 %1066
        %v1068 = vsel %vm641, %v1062, 0.0
        %1069 = vadd.xlane.f32.xlu0 %v1068
        %v1070 = vpop.xlane.xlu0 %1069
        %v1071 = vrcp.pop 32.0
        %v1072 = vmul.f32 32.0, %v1071
        %v1073 = vsub.f32 1.0, %v1072
        %v1074 = vmul.f32 %v1071, %v1073
        %v1075 = vadd.f32 %v1071, %v1074
        %vm1076 = vweird.f32 %v1071
        %v1077 = vsel %vm1076, %v1071, %v1075
        %v1078 = vmul.f32 %v1067, %v1077
        %v1079 = vmul.f32 %v1070, %v1077
        %v1080 = vsub.f32 %v1061, %v1078
        %v1081 = vsub.f32 %v1062, %v1079
        %v1082 = vmul.f32 %v1080, %v1080
        %v1083 = vmul.f32 %v1081, %v1081
        %v1084 = vsel %vm641, %v1082, 0.0
        %1085 = vadd.xlane.f32.xlu0 %v1084
        %v1086 = vpop.xlane.xlu0 %1085
        %v1087 = vsel %vm641, %v1083, 0.0
        %1088 = vadd.xlane.f32.xlu0 %v1087
        %v1089 = vpop.xlane.xlu0 %1088
        %v1090 = vmul.f32 %v1086, %v1077
        %v1091 = vmul.f32 %v1089, %v1077
        %v1092 = vadd.f32 %v1090, 1e-05
        %v1093 = vadd.f32 %v1091, 1e-05
        %v1094 = vrsqrt.pop %v1092
        %v1095 = vmul.f32 %v1094, %v1092
        %v1096 = vmul.f32 %v1095, %v1094
        %v1097 = vmul.f32 0.5, %v1096
        %v1098 = vsub.f32 1.5, %v1097
        %v1099 = vmul.f32 %v1094, %v1098
        %vm1100 = vweird.f32 %v1092
        %vm1101 = vweird.f32 %v1094
        %vm1102 = vmor %vm1100, %vm1101
        %v1103 = vsel %vm1102, %v1094, %v1099
        %v1104 = vrsqrt.pop %v1093
        %v1105 = vmul.f32 %v1104, %v1093
        %v1106 = vmul.f32 %v1105, %v1104
        %v1107 = vmul.f32 0.5, %v1106
        %v1108 = vsub.f32 1.5, %v1107
        %v1109 = vmul.f32 %v1104, %v1108
        %vm1110 = vweird.f32 %v1093
        %vm1111 = vweird.f32 %v1104
        %vm1112 = vmor %vm1110, %vm1111
        %v1113 = vsel %vm1112, %v1104, %v1109
        %v1114 = vmul.f32 %v1080, %v1103
        %v1115 = vmul.f32 %v1081, %v1113
        %v1117 = vperm.slane %v1063, 0
        %v1119 = vmul.f32 %v1114, %v1117
        %v1120 = vmul.f32 %v1115, %v1117
        %v1122 = vperm.slane %v1064, 0
        %v1124 = vadd.f32 %v1119, %v1122
        %v1125 = vadd.f32 %v1120, %v1122
        %v1126 = vpack.c.bf16 %v1125, %v1124
        %v1127 = vld [vmem:[#allocation9] sm:$0xf]
        %v1128 = vld [vmem:[#allocation9 + $0x4] sm:$0xf]
        %v1129 = vld [vmem:[#allocation9 + $0x8] sm:$0xf]
        %v1130 = vld [vmem:[#allocation9 + $0xc] sm:$0xf]
        %v1131 = vld [vmem:[%s9] sm:$0x1]
        %v1133 = vperm.slane %v1131, 0
        %v1139 = vunpack.c.l.b16 %v1127
        %v1140 = vunpack.c.l.b16 %v1128
        %v1141 = vunpack.c.l.b16 %v1129
        %v1142 = vunpack.c.l.b16 %v1130
        %v1143 = vpack.c.b16 %v1140, %v1139
        %v1144 = vpack.c.b16 %v1142, %v1141
        %v1148 = vsel %vm641, %v1126, 0
        %1150 = vmatpush.bf16.msra.mxu0 0
        %1151 = vmatpush.bf16.msra.mxu0 0
        %1152 = vmatpush.bf16.msra.mxu0 0
        %1153 = vmatpush.bf16.msra.mxu0 0
        %1154 = vmatpush.bf16.msra.mxu0 0
        %1155 = vmatpush.bf16.msra.mxu0 0
        %1156 = vmatpush.bf16.msra.mxu0 %v1144
        %1157 = vmatpush.bf16.msra.mxu0 %v1143
        %1158 = vmatmul.bf16.gmra.mxu0 %v1148
        %v1159 = vpop.f32.mrf.mxu0
        %v1160 = vadd.f32 %v1133, %v1159
        %v1161 = vpop.f32.mrf.mxu0
        %v1162 = vadd.f32 %v1133, %v1161
        %1163 = vdwg.mxu0
        %v1164 = vmul.f32 %v1160, 0.5
        %v1165 = vmul.f32 %v1162, 0.5
        %v1166 = vmul.f32 %v1160, 0.70710677
        %v1167 = vmul.f32 %v1162, 0.70710677
        %v1168 = vmul.f32 %v1166, %v1166
        %v1169 = vmin.f32 16.0, %v1168
        %v1170 = vmul.f32 %v1169, 2.1237322e-06
        %v1171 = vadd.f32 %v1170, 0.00028619796
        %v1172 = vmul.f32 %v1169, %v1171
        %v1173 = vadd.f32 %v1172, 0.0036580483
        %v1174 = vmul.f32 %v1169, %v1173
        %v1175 = vadd.f32 %v1174, 0.05243302
        %v1176 = vmul.f32 %v1169, %v1175
        %v1177 = vadd.f32 %v1176, 0.18741608
        %v1178 = vmul.f32 %v1169, %v1177
        %v1179 = vadd.f32 %v1178, 1.1283791
        %v1180 = vmul.f32 %v1166, %v1179
        %v1181 = vmul.f32 %v1169, 3.8918573e-05
        %v1182 = vadd.f32 %v1181, 0.001143296
        %v1183 = vmul.f32 %v1169, %v1182
        %v1184 = vadd.f32 %v1183, 0.014752088
        %v1185 = vmul.f32 %v1169, %v1184
        %v1186 = vadd.f32 %v1185, 0.112945676
        %v1187 = vmul.f32 %v1169, %v1186
        %v1188 = vadd.f32 %v1187, 0.4994258
        %v1189 = vmul.f32 %v1169, %v1188
        %v1190 = vadd.f32 %v1189, 1.0
        %v1191 = vrcp.pop %v1190
        %v1192 = vmul.f32 %v1190, %v1191
        %v1193 = vsub.f32 1.0, %v1192
        %v1194 = vmul.f32 %v1191, %v1193
        %v1195 = vadd.f32 %v1191, %v1194
        %vm1196 = vweird.f32 %v1190
        %vm1197 = vweird.f32 %v1191
        %vm1198 = vmor %vm1196, %vm1197
        %v1199 = vsel %vm1198, %v1191, %v1195
        %v1200 = vand.u32 2147483647, %v1190
        %vm1201 = vcmp.eq.f32.partialorder %v1200, 8.507059e+37
        %v1202 = vand.u32 %v1190, 2147483648
        %v1203 = vor.u32 1.1754944e-38, %v1202
        %v1204 = vsel %vm1201, %v1203, %v1199
        %v1205 = vmul.f32 %v1180, %v1204
        %v1206 = vmin.f32 %v1205, 1.0
        %v1207 = vmax.f32 %v1206, -1.0
        %v1208 = vmul.f32 %v1167, %v1167
        %v1209 = vmin.f32 16.0, %v1208
        %v1210 = vmul.f32 %v1209, 2.1237322e-06
        %v1211 = vadd.f32 %v1210, 0.00028619796
        %v1212 = vmul.f32 %v1209, %v1211
        %v1213 = vadd.f32 %v1212, 0.0036580483
        %v1214 = vmul.f32 %v1209, %v1213
        %v1215 = vadd.f32 %v1214, 0.05243302
        %v1216 = vmul.f32 %v1209, %v1215
        %v1217 = vadd.f32 %v1216, 0.18741608
        %v1218 = vmul.f32 %v1209, %v1217
        %v1219 = vadd.f32 %v1218, 1.1283791
        %v1220 = vmul.f32 %v1167, %v1219
        %v1221 = vmul.f32 %v1209, 3.8918573e-05
        %v1222 = vadd.f32 %v1221, 0.001143296
        %v1223 = vmul.f32 %v1209, %v1222
        %v1224 = vadd.f32 %v1223, 0.014752088
        %v1225 = vmul.f32 %v1209, %v1224
        %v1226 = vadd.f32 %v1225, 0.112945676
        %v1227 = vmul.f32 %v1209, %v1226
        %v1228 = vadd.f32 %v1227, 0.4994258
        %v1229 = vmul.f32 %v1209, %v1228
        %v1230 = vadd.f32 %v1229, 1.0
        %v1231 = vrcp.pop %v1230
        %v1232 = vmul.f32 %v1230, %v1231
        %v1233 = vsub.f32 1.0, %v1232
        %v1234 = vmul.f32 %v1231, %v1233
        %v1235 = vadd.f32 %v1231, %v1234
        %vm1236 = vweird.f32 %v1230
        %vm1237 = vweird.f32 %v1231
        %vm1238 = vmor %vm1236, %vm1237
        %v1239 = vsel %vm1238, %v1231, %v1235
        %v1240 = vand.u32 2147483647, %v1230
        %vm1241 = vcmp.eq.f32.partialorder %v1240, 8.507059e+37
        %v1242 = vand.u32 %v1230, 2147483648
        %v1243 = vor.u32 1.1754944e-38, %v1242
        %v1244 = vsel %vm1241, %v1243, %v1239
        %v1245 = vmul.f32 %v1220, %v1244
        %v1246 = vmin.f32 %v1245, 1.0
        %v1247 = vmax.f32 %v1246, -1.0
        %v1248 = vadd.f32 %v1207, 1.0
        %v1249 = vadd.f32 %v1247, 1.0
        %v1250 = vmul.f32 %v1164, %v1248
        %v1251 = vmul.f32 %v1165, %v1249
        %v1252 = vpack.c.bf16 %v1251, %v1250
        %v1253 = vld [vmem:[%s10] sm:$0xf]
        %v1254 = vld [vmem:[%s10 + $0x4] sm:$0xf]
        %v1255 = vld [vmem:[%s10 + $0x8] sm:$0xf]
        %v1256 = vld [vmem:[%s10 + $0xc] sm:$0xf]
        %v1257 = vld [vmem:[%s10 + $0x10] sm:$0xf]
        %v1258 = vld [vmem:[%s10 + $0x14] sm:$0xf]
        %v1259 = vld [vmem:[%s10 + $0x18] sm:$0xf]
        %v1260 = vld [vmem:[%s10 + $0x1c] sm:$0xf]
        %v1261 = vld [vmem:[%s11] sm:$0x1]
        %v1263 = vperm.slane %v1261, 0
        %v1273 = vunpack.c.l.b16 %v1253
        %v1274 = vunpack.c.l.b16 %v1254
        %v1275 = vunpack.c.l.b16 %v1255
        %v1276 = vunpack.c.l.b16 %v1256
        %v1277 = vunpack.c.l.b16 %v1257
        %v1278 = vunpack.c.l.b16 %v1258
        %v1279 = vunpack.c.l.b16 %v1259
        %v1280 = vunpack.c.l.b16 %v1260
        %v1281 = vpack.c.b16 %v1274, %v1273
        %v1282 = vpack.c.b16 %v1276, %v1275
        %v1283 = vpack.c.b16 %v1278, %v1277
        %v1284 = vpack.c.b16 %v1280, %v1279
        %vm1289 = vcmask 523264
        %v1291 = vsel %vm1289, %v1252, 0
        %1293 = vmatpush.bf16.msra.mxu0 0
        %1294 = vmatpush.bf16.msra.mxu0 0
        %1295 = vmatpush.bf16.msra.mxu0 0
        %1296 = vmatpush.bf16.msra.mxu0 0
        %1297 = vmatpush.bf16.msra.mxu0 %v1284
        %1298 = vmatpush.bf16.msra.mxu0 %v1283
        %1299 = vmatpush.bf16.msra.mxu0 %v1282
        %1300 = vmatpush.bf16.msra.mxu0 %v1281
        %1301 = vmatmul.bf16.gmra.mxu0 %v1291
        %v1302 = vpop.f32.mrf.mxu0
        %v1303 = vadd.f32 %v1263, %v1302
        %v1304 = vpop.f32.mrf.mxu0
        %v1305 = vadd.f32 %v1263, %v1304
        %1306 = vdwg.mxu0
        %v1307 = vadd.f32 %v1124, %v1303
        %v1308 = vadd.f32 %v1125, %v1305
        %v1309 = vld [vmem:[%s14] sm:$0x1]
        %v1310 = vld [vmem:[%s15] sm:$0x1]
        %v1311 = vsel %vm641, %v1307, 0.0
        %1312 = vadd.xlane.f32.xlu0 %v1311
        %v1313 = vpop.xlane.xlu0 %1312
        %v1314 = vsel %vm641, %v1308, 0.0
        %1315 = vadd.xlane.f32.xlu0 %v1314
        %v1316 = vpop.xlane.xlu0 %1315
        %v1317 = vmul.f32 %v1313, %v1077
        %v1318 = vmul.f32 %v1316, %v1077
        %v1319 = vsub.f32 %v1307, %v1317
        %v1320 = vsub.f32 %v1308, %v1318
        %v1321 = vmul.f32 %v1319, %v1319
        %v1322 = vmul.f32 %v1320, %v1320
        %v1323 = vsel %vm641, %v1321, 0.0
        %1324 = vadd.xlane.f32.xlu0 %v1323
        %v1325 = vpop.xlane.xlu0 %1324
        %v1326 = vsel %vm641, %v1322, 0.0
        %1327 = vadd.xlane.f32.xlu0 %v1326
        %v1328 = vpop.xlane.xlu0 %1327
        %v1329 = vmul.f32 %v1325, %v1077
        %v1330 = vmul.f32 %v1328, %v1077
        %v1331 = vadd.f32 %v1329, 1e-05
        %v1332 = vadd.f32 %v1330, 1e-05
        %v1333 = vrsqrt.pop %v1331
        %v1334 = vmul.f32 %v1333, %v1331
        %v1335 = vmul.f32 %v1334, %v1333
        %v1336 = vmul.f32 0.5, %v1335
        %v1337 = vsub.f32 1.5, %v1336
        %v1338 = vmul.f32 %v1333, %v1337
        %vm1339 = vweird.f32 %v1331
        %vm1340 = vweird.f32 %v1333
        %vm1341 = vmor %vm1339, %vm1340
        %v1342 = vsel %vm1341, %v1333, %v1338
        %v1343 = vrsqrt.pop %v1332
        %v1344 = vmul.f32 %v1343, %v1332
        %v1345 = vmul.f32 %v1344, %v1343
        %v1346 = vmul.f32 0.5, %v1345
        %v1347 = vsub.f32 1.5, %v1346
        %v1348 = vmul.f32 %v1343, %v1347
        %vm1349 = vweird.f32 %v1332
        %vm1350 = vweird.f32 %v1343
        %vm1351 = vmor %vm1349, %vm1350
        %v1352 = vsel %vm1351, %v1343, %v1348
        %v1353 = vmul.f32 %v1319, %v1342
        %v1354 = vmul.f32 %v1320, %v1352
        %v1356 = vperm.slane %v1309, 0
        %v1358 = vmul.f32 %v1353, %v1356
        %v1359 = vmul.f32 %v1354, %v1356
        %v1361 = vperm.slane %v1310, 0
        %v1363 = vadd.f32 %v1358, %v1361
        %v1364 = vadd.f32 %v1359, %v1361
        %1365 = vst.msk [vmem:[%s606] sm:$0xff] %vm641, %v1363
        %1366 = vst.msk [vmem:[%s606 + $0x8] sm:$0xff] %vm641, %v1364
        %s1367 = sand.u32 %s389, 1
        %s1368 = scalar_lea.sflag [#allocation5], %s1367
        %s1369 = sand.u32 %s389, 1
        %s1370 = smul.addr %s1369, 16
        %s1371 = scalar_lea.vmem [#allocation11], %s1370
        // Predicated region
        $region101: #{tpu_custom_call.1} parent=83 // pred_check
          %p1372 = pneg %p399
        $region102: #{tpu_custom_call.1} parent=83 // pred_check_branch
          %1374 = sbr.rel (%p1372) target = $region104
        $region103: #{tpu_custom_call.1} parent=83 // pred_region
          %1376 = vsyncadd %s1368, 0
          %s1377 = smul.addr %s35, 2
          %s1378 = smul.addr %s1377, 8
          %s1379 = scalar_lea.hbm %s16, %s1378
          %s1380 = sshll.u32 %s1371, 4
          %s1381 = int_to_ptr.vmem [resolvable:$true] %s1380
          %s1382 = sshll.u32 %s1379, 4
          %s1383 = int_to_ptr.hbm [resolvable:$true] %s1382
          %1388 = dma.vmem_to_hbm [thread:$0]  %s1381, 256, %s1383, %s1368, 128, 128, 8
        $region104: #{tpu_custom_call.1} parent=83 // pred_fallthru
          _
      $region84: #{tpu_custom_call.1} parent=5 // pred_fallthru
        _
      %p1389 = scmp.le.s32.totalorder 2, %s30
      // Predicated region
      $region105: #{tpu_custom_call.1} parent=5 // pred_check
        %p1390 = pneg %p1389
      $region106: #{tpu_custom_call.1} parent=5 // pred_check_branch
        %1392 = sbr.rel (%p1390) target = $region108
      $region107: #{tpu_custom_call.1} parent=5 // pred_region
        %s1393 = ssub.s32 %s30, 2
        // Predicated region
        $region109: #{tpu_custom_call.1} parent=107 // pred_check
          %p1394 = pneg %p405
        $region110: #{tpu_custom_call.1} parent=107 // pred_check_branch
          %1396 = sbr.rel (%p1394) target = $region112
        $region111: #{tpu_custom_call.1} parent=107 // pred_region
          %s1397 = sand.u32 %s390, 1
          %s1398 = scalar_lea.sflag [#allocation5], %s1397
          %s1399 = sand.u32 %s390, 1
          %s1400 = smul.addr %s1399, 16
          %s1401 = scalar_lea.vmem [#allocation11], %s1400
          %1403 = dma.done %s1398, 256
        $region112: #{tpu_custom_call.1} parent=107 // pred_fallthru
          _
      $region108: #{tpu_custom_call.1} parent=5 // pred_fallthru
        _
    $region6: #{tpu_custom_call.1} parent=1 // loop_footer
      %s34 = sadd.s32 1, %s30
    $region7: #{tpu_custom_call.1} parent=1 // loop_footer_branch
      %29 = sbr.rel target = $region3
    $region8: #{tpu_custom_call.1} parent=1 // loop_exit
      _
    %1404 = vsyncpa [#allocation4], 1
    %s1405 = scalar_lea.sflag [#allocation4], 1
    %1406 = vsyncpa %s1405, 1
    %1407 = vsyncpa [#allocation7], 1
    %1408 = vsyncpa [#allocation10], 1
    %1409 = vsyncpa [#allocation5], 1
    %s1410 = scalar_lea.sflag [#allocation5], 1
    %1411 = vsyncpa %s1410, 1

</llo_original>
